<compile_context>
chip_gen: v5e
topology: v5e:2x2
jax: 0.10.0
libtpu: 0.0.40
codegen_flags: <defaults>
</compile_context>

<pallas_src>
import functools

import jax
import jax.numpy as jnp
import numpy as np
from jax.experimental import pallas as pl
from jax.experimental.pallas import tpu as pltpu

K = 3
EPS = 1e-5                       # nn.BatchNorm1d default eps
OUT_PAD = 128                    # lane-dense fc3 output width (k*k=9 -> 128)
VMEM_LIMIT = 48 * 1024 * 1024    # explicit scoped-VMEM cap, safe on all gens


# ----------------------------------------------------------------------------
# In-kernel helpers
# ----------------------------------------------------------------------------
def _partial_stats(h, with_minmax):
    """Per-tile BN partial statistics packed as a lane-dense (8, C) block.

    row 0: sum(h)   row 1: sum(h*h)   [row 2: max(h)   row 3: min(h)]
    remaining rows are zero padding so the output block stays (8, C)-tileable
    and every grid step writes a distinct block (grid stays "parallel").
    """
    c = h.shape[-1]
    rows = [jnp.sum(h, axis=0, keepdims=True),
            jnp.sum(h * h, axis=0, keepdims=True)]
    if with_minmax:
        rows.append(jnp.max(h, axis=0, keepdims=True))
        rows.append(jnp.min(h, axis=0, keepdims=True))
    rows.append(jnp.zeros((8 - len(rows), c), jnp.float32))
    return jnp.concatenate(rows, axis=0)


def _bn_relu_train(h, g, b):
    """Train-mode BatchNorm1d (one-pass stats, biased var) + ReLU, f32."""
    cnt = h.shape[0]
    mean = jnp.sum(h, axis=0, keepdims=True) / cnt
    var = jnp.maximum(jnp.sum(h * h, axis=0, keepdims=True) / cnt - mean * mean,
                      0.0)
    return jnp.maximum((h - mean) * jax.lax.rsqrt(var + EPS) * g + b, 0.0)


# ----------------------------------------------------------------------------
# Kernels
# ----------------------------------------------------------------------------
def conv12_kernel(x_ref, w1_ref, scale1_ref, shift1_ref, w2_ref,
                  h2_ref, stats_ref):
    # Fused conv1 (k -> 64, VPU FMAs) -> bn1+relu (analytic scale/shift)
    # -> conv2 (64 -> 128, bf16 MXU, f32 acc).  h1 stays in VMEM only.
    # conv1/conv2 biases are dropped: they cancel under train-mode BN.
    x = x_ref[...]                                   # (tile, k)    f32
    w1 = w1_ref[...]                                 # (k, 64)      f32
    h1 = x[:, 0:1] * w1[0:1, :]
    for c in range(1, w1.shape[0]):
        h1 = h1 + x[:, c:c + 1] * w1[c:c + 1, :]
    hn = jnp.maximum(h1 * scale1_ref[...] + shift1_ref[...], 0.0)
    h2 = jnp.dot(hn.astype(jnp.bfloat16), w2_ref[...],
                 preferred_element_type=jnp.float32)
    h2_ref[...] = h2                                 # raw conv2 output (f32)
    stats_ref[...] = _partial_stats(h2, with_minmax=False)


def conv_bn_reduce_kernel(h_ref, scale_ref, shift_ref, w_ref, stats_ref):
    # relu(bn2(h2)) in f32, conv3 (128 -> 1024) on the MXU; the (tile, 1024)
    # activation never leaves the kernel -- only per-tile sum/sum^2/max/min.
    hn = jnp.maximum(h_ref[...] * scale_ref[...] + shift_ref[...], 0.0)
    h3 = jnp.dot(hn.astype(jnp.bfloat16), w_ref[...],
                 preferred_element_type=jnp.float32)
    stats_ref[...] = _partial_stats(h3, with_minmax=True)


def head_kernel(pooled_ref, fw1_ref, g4_ref, be4_ref, fw2_ref, g5_ref, be5_ref,
                fw3_ref, out_ref):
    # fc1 -> bn4 -> relu -> fc2 -> bn5 -> relu -> fc3 (all tiny, one program).
    # fc1/fc2 biases are dropped (absorbed by BN); fc3 bias is added in the
    # wrapper.  fc3 weight is pre-padded to 128 output lanes (lane-dense store).
    f = pooled_ref[...]                               # (bs, 1024) f32
    f = _bn_relu_train(
        jnp.dot(f.astype(jnp.bfloat16), fw1_ref[...],
                preferred_element_type=jnp.float32), g4_ref[...], be4_ref[...])
    f = _bn_relu_train(
        jnp.dot(f.astype(jnp.bfloat16), fw2_ref[...],
                preferred_element_type=jnp.float32), g5_ref[...], be5_ref[...])
    out_ref[...] = jnp.dot(f.astype(jnp.bfloat16), fw3_ref[...],
                           preferred_element_type=jnp.float32)


# ----------------------------------------------------------------------------
# Wrapper
# ----------------------------------------------------------------------------
def _pick_tile_rows(n, target=512):
    """Largest multiple of 8 that divides n and is <= target."""
    best = 0
    for t in range(8, min(n, target) + 1, 8):
        if n % t == 0:
            best = t
    if best == 0:
        raise ValueError("points-per-cloud must be a multiple of 8")
    return best


def _finalize_bn(stats, gamma, beta, count):
    """Per-tile partial stats (T, 8, C) -> fused train-mode BN scale/shift."""
    s = jnp.sum(stats[:, 0, :], axis=0, keepdims=True)          # (1, C)
    ss = jnp.sum(stats[:, 1, :], axis=0, keepdims=True)         # (1, C)
    mean = s / count
    var = jnp.maximum(ss / count - mean * mean, 0.0)             # biased
    scale = gamma * jax.lax.rsqrt(var + EPS)
    shift = beta - mean * scale
    return scale, shift


def tnet_forward(x, params, k=K, tile_rows=None):
    """x: (bs, k, N) float32 in PyTorch NCW layout."""
    bs, k_in, n = x.shape
    assert k_in == k
    rows = bs * n

    if tile_rows is None:
        tile_rows = _pick_tile_rows(n)
    assert tile_rows % 8 == 0 and n % tile_rows == 0, \
        "tile_rows must be a multiple of 8 that divides n"
    num_tiles = rows // tile_rows
    tiles_per_b = n // tile_rows

    # NCW -> channels-last points slab (rows = bs*n points, lane dim = channels).
    xt = jnp.transpose(x, (0, 2, 1)).reshape(rows, k).astype(jnp.float32)

    bf16 = jnp.bfloat16
    w1 = params["w1"].astype(jnp.float32)                 # VPU path stays f32
    w2 = params["w2"].astype(bf16)
    w3 = params["w3"].astype(bf16)
    fw1 = params["fw1"].astype(bf16)
    fw2 = params["fw2"].astype(bf16)
    fw3p = jnp.pad(params["fw3"], ((0, 0), (0, OUT_PAD - k * k))).astype(bf16)

    # ---- bn1 statistics, analytically from x's moments (tiny XLA glue) ------
    # h1_c = x . w1[:, c] (+ b1_c, which cancels under train-mode BN), hence
    #   E[h1_c]   = E[x] . w1[:, c]
    #   E[h1_c^2] = w1[:, c]^T (X^T X / rows) w1[:, c]
    # so conv1 + bn1 + relu + conv2 can fuse into a single Pallas pass and the
    # (rows, 64) conv1 activation never hits HBM.
    m_x = jnp.mean(xt, axis=0, keepdims=True)                        # (1, k)
    sxx = jnp.dot(xt.T, xt, preferred_element_type=jnp.float32) / rows
    mean1 = jnp.dot(m_x, w1)                                         # (1, 64)
    ex2 = jnp.sum(w1 * jnp.dot(sxx, w1), axis=0, keepdims=True)      # (1, 64)
    var1 = jnp.maximum(ex2 - mean1 * mean1, 0.0)                     # biased
    scale1 = params["g1"] * jax.lax.rsqrt(var1 + EPS)
    shift1 = params["be1"] - mean1 * scale1

    grid_cparams = pltpu.CompilerParams(
        dimension_semantics=("parallel",),      # both TCs on v7x; no revisits
        vmem_limit_bytes=VMEM_LIMIT)
    head_cparams = pltpu.CompilerParams(vmem_limit_bytes=VMEM_LIMIT)

    def row_spec(c):
        return pl.BlockSpec((tile_rows, c), lambda i: (i, 0))

    def const_spec(shape):
        nd = len(shape)
        return pl.BlockSpec(shape, lambda i: (0,) * nd)

    def stats_spec(c):
        return pl.BlockSpec((8, c), lambda i: (i, 0))

    def stats_shape(c):
        return jax.ShapeDtypeStruct((num_tiles * 8, c), jnp.float32)

    # ---- fused conv1 -> bn1+relu -> conv2 (k -> 64 -> 128) ------------------
    h2, st2 = pl.pallas_call(
        conv12_kernel,
        grid=(num_tiles,),
        in_specs=[row_spec(k), const_spec((k, 64)), const_spec((1, 64)),
                  const_spec((1, 64)), const_spec((64, 128))],
        out_specs=(row_spec(128), stats_spec(128)),
        out_shape=(jax.ShapeDtypeStruct((rows, 128), jnp.float32),
                   stats_shape(128)),
        compiler_params=grid_cparams,
    )(xt, w1, scale1, shift1, w2)
    scale2, shift2 = _finalize_bn(st2.reshape(num_tiles, 8, 128),
                                  params["g2"], params["be2"], rows)

    # ---- bn2+relu fused with conv3 (128 -> 1024); only reductions leave -----
    st3 = pl.pallas_call(
        conv_bn_reduce_kernel,
        grid=(num_tiles,),
        in_specs=[row_spec(128), const_spec((1, 128)), const_spec((1, 128)),
                  const_spec((128, 1024))],
        out_specs=stats_spec(1024),
        out_shape=stats_shape(1024),
        compiler_params=grid_cparams,
    )(h2, scale2, shift2, w3)

    st3 = st3.reshape(num_tiles, 8, 1024)
    scale3, shift3 = _finalize_bn(st3, params["g3"], params["be3"], rows)

    # Max-pool over the N points, folded through the monotone BN affine + ReLU:
    #   max_p relu(s*h + t) = relu(s * (max_p h if s>0 else min_p h) + t)
    maxs = st3[:, 2, :].reshape(bs, tiles_per_b, 1024).max(axis=1)
    mins = st3[:, 3, :].reshape(bs, tiles_per_b, 1024).min(axis=1)
    pooled = jnp.maximum(jnp.where(scale3 > 0, maxs, mins) * scale3 + shift3,
                         0.0)                                     # (bs, 1024)

    # ---- fc head ------------------------------------------------------------
    vmem = pl.BlockSpec(memory_space=pltpu.MemorySpace.VMEM)
    out = pl.pallas_call(
        head_kernel,
        out_shape=jax.ShapeDtypeStruct((bs, OUT_PAD), jnp.float32),
        in_specs=[vmem] * 8,
        out_specs=vmem,
        compiler_params=head_cparams,
    )(pooled, fw1, params["g4"], params["be4"], fw2, params["g5"],
      params["be5"], fw3p)

    # matrix = fc3(xb).view(-1, k, k) + eye(k)   (fc3 bias + identity as glue)
    mat = out[:, :k * k] + params["fb3"]
    return mat.reshape(bs, k, k) + jnp.eye(k, dtype=jnp.float32)[None]


# ----------------------------------------------------------------------------
# Parameters & pure-JAX reference
# ----------------------------------------------------------------------------
def init_params(key, k=K):
    ks = list(jax.random.split(key, 22))

    def w(key, fan_in, shape):
        return jax.random.normal(key, shape, jnp.float32) / np.sqrt(fan_in)

    p = {}
    # conv/fc weights stored already transposed: (C_in, C_out)
    p["w1"], p["b1"] = w(ks[0], k, (k, 64)), w(ks[1], k, (1, 64))
    p["w2"], p["b2"] = w(ks[2], 64, (64, 128)), w(ks[3], 64, (1, 128))
    p["w3"], p["b3"] = w(ks[4], 128, (128, 1024)), w(ks[5], 128, (1, 1024))
    p["fw1"], p["fb1"] = w(ks[6], 1024, (1024, 512)), w(ks[7], 1024, (1, 512))
    p["fw2"], p["fb2"] = w(ks[8], 512, (512, 256)), w(ks[9], 512, (1, 256))
    p["fw3"], p["fb3"] = w(ks[10], 256, (256, k * k)), w(ks[11], 256, (1, k * k))
    # Randomized BN affine params (incl. negative gammas) so the test exercises
    # the sign-aware pooled max/min selection and non-trivial scale/shift.
    idx = 12
    for name, c in (("1", 64), ("2", 128), ("3", 1024), ("4", 512), ("5", 256)):
        p["g" + name] = jax.random.normal(ks[idx], (1, c), jnp.float32)
        idx += 1
        p["be" + name] = 0.1 * jax.random.normal(ks[idx], (1, c), jnp.float32)
        idx += 1
    return p


def tnet_ref(x, p, k=K, op_dtype=jnp.bfloat16):
    """Pure-JAX reference with the exact PyTorch train-mode forward (biases
    included, two-pass variance).  `op_dtype` mirrors the kernel's deliberate
    bf16 matmul-operand quantization (the only numeric deviation from f32)."""
    bs, _, n = x.shape
    xt = jnp.transpose(x, (0, 2, 1)).reshape(bs * n, k).astype(jnp.float32)

    def mm(a, w):
        return jnp.dot(a.astype(op_dtype), w.astype(op_dtype),
                       preferred_element_type=jnp.float32)

    def bnrelu(h, g, b):
        m = h.mean(0, keepdims=True)
        v = ((h - m) ** 2).mean(0, keepdims=True)          # biased (train mode)
        return jnp.maximum((h - m) * jax.lax.rsqrt(v + EPS) * g + b, 0.0)

    h = bnrelu(jnp.dot(xt, p["w1"], preferred_element_type=jnp.float32)
               + p["b1"], p["g1"], p["be1"])               # conv1 kept in f32
    h = bnrelu(mm(h, p["w2"]) + p["b2"], p["g2"], p["be2"])
    h = bnrelu(mm(h, p["w3"]) + p["b3"], p["g3"], p["be3"])
    pooled = jnp.max(h.reshape(bs, n, -1), axis=1)
    f = bnrelu(mm(pooled, p["fw1"]) + p["fb1"], p["g4"], p["be4"])
    f = bnrelu(mm(f, p["fw2"]) + p["fb2"], p["g5"], p["be5"])
    out = mm(f, p["fw3"]) + p["fb3"]
    return out.reshape(bs, k, k) + jnp.eye(k, dtype=jnp.float32)[None]


if __name__ == "__main__":
    key = jax.random.PRNGKey(0)
    pkey, xkey = jax.random.split(key)

    # Small demo shape: 4 clouds x 64 points, k=3 (bs=4 keeps the tiny-batch
    # BN4/BN5 statistics well-conditioned for the numerical comparison).
    bs, n = 4, 64
    params = init_params(pkey)
    x = jax.random.normal(xkey, (bs, K, n), jnp.float32)    # PyTorch NCW layout

    # tile_rows=32 -> 8 row tiles, 2 tiles per cloud: exercises the parallel
    # grid, the per-tile stat reduction and the segmented max/min pooling path.
    fwd = jax.jit(functools.partial(tnet_forward, tile_rows=32))
    out = jax.block_until_ready(fwd(x, params))

    # Validate against a reference that mirrors the deliberate bf16 matmul
    # operand quantization; everything else (BN stats, bias handling, pooling)
    # is full PyTorch train-mode semantics in f32.
    ref = jax.block_until_ready(tnet_ref(x, params, op_dtype=jnp.bfloat16))
    np.testing.assert_allclose(np.asarray(out), np.asarray(ref),
                               rtol=5e-3, atol=5e-3)
    assert out.shape == (bs, K, K)
    print("KERNEL_OK")
</pallas_src>

<mosaic_0001>
module attributes {stable_mosaic.version = 11 : i64} {
  func.func @conv12_kernel(%arg0: i32, %arg1: memref<32x3xf32, #tpu.memory_space<vmem>>, %arg2: memref<3x64xf32, #tpu.memory_space<vmem>>, %arg3: memref<1x64xf32, #tpu.memory_space<vmem>>, %arg4: memref<1x64xf32, #tpu.memory_space<vmem>>, %arg5: memref<64x128xbf16, #tpu.memory_space<vmem>>, %arg6: memref<32x128xf32, #tpu.memory_space<vmem>>, %arg7: memref<8x128xf32, #tpu.memory_space<vmem>>) attributes {dimension_semantics = [#tpu.dimension_semantics<parallel>], iteration_bounds = array<i64: 8>, scalar_prefetch = 0 : i64, scratch_operands = 0 : i64, tpu.core_type = #tpu.core_type<tc>, window_params = [{transform_indices = @transform_0, window_bounds = array<i64: 32, 3>}, {pipeline_mode = #tpu.pipeline_mode<synchronous>, transform_indices = @transform_1, window_bounds = array<i64: 3, 64>}, {pipeline_mode = #tpu.pipeline_mode<synchronous>, transform_indices = @transform_2, window_bounds = array<i64: 1, 64>}, {pipeline_mode = #tpu.pipeline_mode<synchronous>, transform_indices = @transform_3, window_bounds = array<i64: 1, 64>}, {pipeline_mode = #tpu.pipeline_mode<synchronous>, transform_indices = @transform_4, window_bounds = array<i64: 64, 128>}, {transform_indices = @transform_5, window_bounds = array<i64: 32, 128>}, {transform_indices = @transform_6, window_bounds = array<i64: 8, 128>}]} {
    %c0 = arith.constant 0 : index
    %c0_0 = arith.constant 0 : index
    %0 = vector.load %arg1[%c0, %c0_0] : memref<32x3xf32, #tpu.memory_space<vmem>>, vector<32x3xf32>
    %c0_1 = arith.constant 0 : index
    %c0_2 = arith.constant 0 : index
    %1 = vector.load %arg2[%c0_1, %c0_2] : memref<3x64xf32, #tpu.memory_space<vmem>>, vector<3x64xf32>
    %2 = vector.extract_strided_slice %0 {offsets = [0, 0], sizes = [32, 1], strides = [1, 1]} : vector<32x3xf32> to vector<32x1xf32>
    %3 = vector.extract_strided_slice %1 {offsets = [0, 0], sizes = [1, 64], strides = [1, 1]} : vector<3x64xf32> to vector<1x64xf32>
    %4 = vector.broadcast %2 : vector<32x1xf32> to vector<32x64xf32>
    %5 = vector.broadcast %3 : vector<1x64xf32> to vector<32x64xf32>
    %6 = arith.mulf %4, %5 : vector<32x64xf32>
    %7 = vector.extract_strided_slice %0 {offsets = [0, 1], sizes = [32, 1], strides = [1, 1]} : vector<32x3xf32> to vector<32x1xf32>
    %8 = vector.extract_strided_slice %1 {offsets = [1, 0], sizes = [1, 64], strides = [1, 1]} : vector<3x64xf32> to vector<1x64xf32>
    %9 = vector.broadcast %7 : vector<32x1xf32> to vector<32x64xf32>
    %10 = vector.broadcast %8 : vector<1x64xf32> to vector<32x64xf32>
    %11 = arith.mulf %9, %10 : vector<32x64xf32>
    %12 = arith.addf %6, %11 : vector<32x64xf32>
    %13 = vector.extract_strided_slice %0 {offsets = [0, 2], sizes = [32, 1], strides = [1, 1]} : vector<32x3xf32> to vector<32x1xf32>
    %14 = vector.extract_strided_slice %1 {offsets = [2, 0], sizes = [1, 64], strides = [1, 1]} : vector<3x64xf32> to vector<1x64xf32>
    %15 = vector.broadcast %13 : vector<32x1xf32> to vector<32x64xf32>
    %16 = vector.broadcast %14 : vector<1x64xf32> to vector<32x64xf32>
    %17 = arith.mulf %15, %16 : vector<32x64xf32>
    %18 = arith.addf %12, %17 : vector<32x64xf32>
    %c0_3 = arith.constant 0 : index
    %c0_4 = arith.constant 0 : index
    %19 = vector.load %arg3[%c0_3, %c0_4] : memref<1x64xf32, #tpu.memory_space<vmem>>, vector<1x64xf32>
    %20 = vector.broadcast %19 : vector<1x64xf32> to vector<32x64xf32>
    %21 = arith.mulf %18, %20 : vector<32x64xf32>
    %c0_5 = arith.constant 0 : index
    %c0_6 = arith.constant 0 : index
    %22 = vector.load %arg4[%c0_5, %c0_6] : memref<1x64xf32, #tpu.memory_space<vmem>>, vector<1x64xf32>
    %23 = vector.broadcast %22 : vector<1x64xf32> to vector<32x64xf32>
    %24 = arith.addf %21, %23 : vector<32x64xf32>
    %cst = arith.constant 0.000000e+00 : f32
    %25 = vector.broadcast %cst : f32 to vector<32x64xf32>
    %26 = arith.maximumf %24, %25 : vector<32x64xf32>
    %27 = arith.truncf %26 : vector<32x64xf32> to vector<32x64xbf16>
    %c0_7 = arith.constant 0 : index
    %c0_8 = arith.constant 0 : index
    %28 = vector.load %arg5[%c0_7, %c0_8] : memref<64x128xbf16, #tpu.memory_space<vmem>>, vector<64x128xbf16>
    %cst_9 = arith.constant dense<0.000000e+00> : vector<32x128xf32>
    %29 = tpu.matmul %27, %28, %cst_9 {dimension_numbers = #tpu.dot_dimension_numbers<[1], [0], [0], [1], [0, 0, 1, 1], [], []>} : vector<32x64xbf16>, vector<64x128xbf16>, vector<32x128xf32> -> vector<32x128xf32>
    %c0_10 = arith.constant 0 : index
    %c0_11 = arith.constant 0 : index
    %30 = vector.load %arg6[%c0_10, %c0_11] : memref<32x128xf32, #tpu.memory_space<vmem>>, vector<32x128xf32>
    tpu.vector_store %arg6[%c0_10, %c0_11], %29 {strides = array<i32>} : memref<32x128xf32, #tpu.memory_space<vmem>>, vector<32x128xf32>,
    %cst_12 = arith.constant dense<0.000000e+00> : vector<128xf32>
    %31 = vector.multi_reduction <add>, %29, %cst_12 [0] : vector<32x128xf32> to vector<128xf32>
    %32 = vector.shape_cast %31 : vector<128xf32> to vector<1x128xf32>
    %33 = arith.mulf %29, %29 : vector<32x128xf32>
    %cst_13 = arith.constant dense<0.000000e+00> : vector<128xf32>
    %34 = vector.multi_reduction <add>, %33, %cst_13 [0] : vector<32x128xf32> to vector<128xf32>
    %35 = vector.shape_cast %34 : vector<128xf32> to vector<1x128xf32>
    %cst_14 = arith.constant 0.000000e+00 : f32
    %36 = vector.broadcast %cst_14 : f32 to vector<6x128xf32>
    %37 = tpu.concatenate %32, %35, %36 in 0 : vector<1x128xf32>, vector<1x128xf32>, vector<6x128xf32> -> vector<8x128xf32>
    %c0_15 = arith.constant 0 : index
    %c0_16 = arith.constant 0 : index
    %38 = vector.load %arg7[%c0_15, %c0_16] : memref<8x128xf32, #tpu.memory_space<vmem>>, vector<8x128xf32>
    tpu.vector_store %arg7[%c0_15, %c0_16], %37 {strides = array<i32>} : memref<8x128xf32, #tpu.memory_space<vmem>>, vector<8x128xf32>,
    return
  }
  func.func @transform_0(%arg0: i32) -> (i32, i32) {
    %c0_i32 = arith.constant 0 : i32
    %c0_i32_0 = arith.constant 0 : i32
    return %arg0, %c0_i32 : i32, i32
  }
  func.func @transform_1(%arg0: i32) -> (i32, i32) {
    %c0_i32 = arith.constant 0 : i32
    %c0_i32_0 = arith.constant 0 : i32
    %c0_i32_1 = arith.constant 0 : i32
    return %c0_i32, %c0_i32_0 : i32, i32
  }
  func.func @transform_2(%arg0: i32) -> (i32, i32) {
    %c0_i32 = arith.constant 0 : i32
    %c0_i32_0 = arith.constant 0 : i32
    %c0_i32_1 = arith.constant 0 : i32
    return %c0_i32, %c0_i32_0 : i32, i32
  }
  func.func @transform_3(%arg0: i32) -> (i32, i32) {
    %c0_i32 = arith.constant 0 : i32
    %c0_i32_0 = arith.constant 0 : i32
    %c0_i32_1 = arith.constant 0 : i32
    return %c0_i32, %c0_i32_0 : i32, i32
  }
  func.func @transform_4(%arg0: i32) -> (i32, i32) {
    %c0_i32 = arith.constant 0 : i32
    %c0_i32_0 = arith.constant 0 : i32
    %c0_i32_1 = arith.constant 0 : i32
    return %c0_i32, %c0_i32_0 : i32, i32
  }
  func.func @transform_5(%arg0: i32) -> (i32, i32) {
    %c0_i32 = arith.constant 0 : i32
    %c0_i32_0 = arith.constant 0 : i32
    return %arg0, %c0_i32 : i32, i32
  }
  func.func @transform_6(%arg0: i32) -> (i32, i32) {
    %c0_i32 = arith.constant 0 : i32
    %c0_i32_0 = arith.constant 0 : i32
    return %arg0, %c0_i32 : i32, i32
  }
}

module attributes {stable_mosaic.version = 11 : i64} {
  func.func @conv_bn_reduce_kernel(%arg0: i32, %arg1: memref<32x128xf32, #tpu.memory_space<vmem>>, %arg2: memref<1x128xf32, #tpu.memory_space<vmem>>, %arg3: memref<1x128xf32, #tpu.memory_space<vmem>>, %arg4: memref<128x1024xbf16, #tpu.memory_space<vmem>>, %arg5: memref<8x1024xf32, #tpu.memory_space<vmem>>) attributes {dimension_semantics = [#tpu.dimension_semantics<parallel>], iteration_bounds = array<i64: 8>, scalar_prefetch = 0 : i64, scratch_operands = 0 : i64, tpu.core_type = #tpu.core_type<tc>, window_params = [{transform_indices = @transform_0, window_bounds = array<i64: 32, 128>}, {pipeline_mode = #tpu.pipeline_mode<synchronous>, transform_indices = @transform_1, window_bounds = array<i64: 1, 128>}, {pipeline_mode = #tpu.pipeline_mode<synchronous>, transform_indices = @transform_2, window_bounds = array<i64: 1, 128>}, {pipeline_mode = #tpu.pipeline_mode<synchronous>, transform_indices = @transform_3, window_bounds = array<i64: 128, 1024>}, {transform_indices = @transform_4, window_bounds = array<i64: 8, 1024>}]} {
    %c0 = arith.constant 0 : index
    %c0_0 = arith.constant 0 : index
    %0 = vector.load %arg1[%c0, %c0_0] : memref<32x128xf32, #tpu.memory_space<vmem>>, vector<32x128xf32>
    %c0_1 = arith.constant 0 : index
    %c0_2 = arith.constant 0 : index
    %1 = vector.load %arg2[%c0_1, %c0_2] : memref<1x128xf32, #tpu.memory_space<vmem>>, vector<1x128xf32>
    %2 = vector.broadcast %1 : vector<1x128xf32> to vector<32x128xf32>
    %3 = arith.mulf %0, %2 : vector<32x128xf32>
    %c0_3 = arith.constant 0 : index
    %c0_4 = arith.constant 0 : index
    %4 = vector.load %arg3[%c0_3, %c0_4] : memref<1x128xf32, #tpu.memory_space<vmem>>, vector<1x128xf32>
    %5 = vector.broadcast %4 : vector<1x128xf32> to vector<32x128xf32>
    %6 = arith.addf %3, %5 : vector<32x128xf32>
    %cst = arith.constant 0.000000e+00 : f32
    %7 = vector.broadcast %cst : f32 to vector<32x128xf32>
    %8 = arith.maximumf %6, %7 : vector<32x128xf32>
    %9 = arith.truncf %8 : vector<32x128xf32> to vector<32x128xbf16>
    %c0_5 = arith.constant 0 : index
    %c0_6 = arith.constant 0 : index
    %10 = vector.load %arg4[%c0_5, %c0_6] : memref<128x1024xbf16, #tpu.memory_space<vmem>>, vector<128x1024xbf16>
    %cst_7 = arith.constant dense<0.000000e+00> : vector<32x1024xf32>
    %11 = tpu.matmul %9, %10, %cst_7 {dimension_numbers = #tpu.dot_dimension_numbers<[1], [0], [0], [1], [0, 0, 1, 1], [], []>} : vector<32x128xbf16>, vector<128x1024xbf16>, vector<32x1024xf32> -> vector<32x1024xf32>
    %cst_8 = arith.constant dense<0.000000e+00> : vector<1024xf32>
    %12 = vector.multi_reduction <add>, %11, %cst_8 [0] : vector<32x1024xf32> to vector<1024xf32>
    %13 = vector.shape_cast %12 : vector<1024xf32> to vector<1x1024xf32>
    %14 = arith.mulf %11, %11 : vector<32x1024xf32>
    %cst_9 = arith.constant dense<0.000000e+00> : vector<1024xf32>
    %15 = vector.multi_reduction <add>, %14, %cst_9 [0] : vector<32x1024xf32> to vector<1024xf32>
    %16 = vector.shape_cast %15 : vector<1024xf32> to vector<1x1024xf32>
    %cst_10 = arith.constant dense<0xFF800000> : vector<1024xf32>
    %17 = vector.multi_reduction <maximumf>, %11, %cst_10 [0] : vector<32x1024xf32> to vector<1024xf32>
    %18 = vector.shape_cast %17 : vector<1024xf32> to vector<1x1024xf32>
    %cst_11 = arith.constant dense<0x7F800000> : vector<1024xf32>
    %19 = vector.multi_reduction <minimumf>, %11, %cst_11 [0] : vector<32x1024xf32> to vector<1024xf32>
    %20 = vector.shape_cast %19 : vector<1024xf32> to vector<1x1024xf32>
    %cst_12 = arith.constant 0.000000e+00 : f32
    %21 = vector.broadcast %cst_12 : f32 to vector<4x1024xf32>
    %22 = tpu.concatenate %13, %16, %18, %20, %21 in 0 : vector<1x1024xf32>, vector<1x1024xf32>, vector<1x1024xf32>, vector<1x1024xf32>, vector<4x1024xf32> -> vector<8x1024xf32>
    %c0_13 = arith.constant 0 : index
    %c0_14 = arith.constant 0 : index
    %23 = vector.load %arg5[%c0_13, %c0_14] : memref<8x1024xf32, #tpu.memory_space<vmem>>, vector<8x1024xf32>
    tpu.vector_store %arg5[%c0_13, %c0_14], %22 {strides = array<i32>} : memref<8x1024xf32, #tpu.memory_space<vmem>>, vector<8x1024xf32>,
    return
  }
  func.func @transform_0(%arg0: i32) -> (i32, i32) {
    %c0_i32 = arith.constant 0 : i32
    %c0_i32_0 = arith.constant 0 : i32
    return %arg0, %c0_i32 : i32, i32
  }
  func.func @transform_1(%arg0: i32) -> (i32, i32) {
    %c0_i32 = arith.constant 0 : i32
    %c0_i32_0 = arith.constant 0 : i32
    %c0_i32_1 = arith.constant 0 : i32
    return %c0_i32, %c0_i32_0 : i32, i32
  }
  func.func @transform_2(%arg0: i32) -> (i32, i32) {
    %c0_i32 = arith.constant 0 : i32
    %c0_i32_0 = arith.constant 0 : i32
    %c0_i32_1 = arith.constant 0 : i32
    return %c0_i32, %c0_i32_0 : i32, i32
  }
  func.func @transform_3(%arg0: i32) -> (i32, i32) {
    %c0_i32 = arith.constant 0 : i32
    %c0_i32_0 = arith.constant 0 : i32
    %c0_i32_1 = arith.constant 0 : i32
    return %c0_i32, %c0_i32_0 : i32, i32
  }
  func.func @transform_4(%arg0: i32) -> (i32, i32) {
    %c0_i32 = arith.constant 0 : i32
    %c0_i32_0 = arith.constant 0 : i32
    return %arg0, %c0_i32 : i32, i32
  }
}

module attributes {stable_mosaic.version = 11 : i64} {
  func.func @head_kernel(%arg0: memref<4x1024xf32, #tpu.memory_space<vmem>>, %arg1: memref<1024x512xbf16, #tpu.memory_space<vmem>>, %arg2: memref<1x512xf32, #tpu.memory_space<vmem>>, %arg3: memref<1x512xf32, #tpu.memory_space<vmem>>, %arg4: memref<512x256xbf16, #tpu.memory_space<vmem>>, %arg5: memref<1x256xf32, #tpu.memory_space<vmem>>, %arg6: memref<1x256xf32, #tpu.memory_space<vmem>>, %arg7: memref<256x128xbf16, #tpu.memory_space<vmem>>, %arg8: memref<4x128xf32, #tpu.memory_space<vmem>>) attributes {dimension_semantics = [], scalar_prefetch = 0 : i64, scratch_operands = 0 : i64, tpu.core_type = #tpu.core_type<tc>} {
    %c0 = arith.constant 0 : index
    %c0_0 = arith.constant 0 : index
    %0 = vector.load %arg0[%c0, %c0_0] : memref<4x1024xf32, #tpu.memory_space<vmem>>, vector<4x1024xf32>
    %1 = arith.truncf %0 : vector<4x1024xf32> to vector<4x1024xbf16>
    %c0_1 = arith.constant 0 : index
    %c0_2 = arith.constant 0 : index
    %2 = vector.load %arg1[%c0_1, %c0_2] : memref<1024x512xbf16, #tpu.memory_space<vmem>>, vector<1024x512xbf16>
    %cst = arith.constant dense<0.000000e+00> : vector<4x512xf32>
    %3 = tpu.matmul %1, %2, %cst {dimension_numbers = #tpu.dot_dimension_numbers<[1], [0], [0], [1], [0, 0, 1, 1], [], []>} : vector<4x1024xbf16>, vector<1024x512xbf16>, vector<4x512xf32> -> vector<4x512xf32>
    %c0_3 = arith.constant 0 : index
    %c0_4 = arith.constant 0 : index
    %4 = vector.load %arg2[%c0_3, %c0_4] : memref<1x512xf32, #tpu.memory_space<vmem>>, vector<1x512xf32>
    %c0_5 = arith.constant 0 : index
    %c0_6 = arith.constant 0 : index
    %5 = vector.load %arg3[%c0_5, %c0_6] : memref<1x512xf32, #tpu.memory_space<vmem>>, vector<1x512xf32>
    %cst_7 = arith.constant dense<0.000000e+00> : vector<512xf32>
    %6 = vector.multi_reduction <add>, %3, %cst_7 [0] : vector<4x512xf32> to vector<512xf32>
    %7 = vector.shape_cast %6 : vector<512xf32> to vector<1x512xf32>
    %cst_8 = arith.constant 4.000000e+00 : f32
    %8 = vector.broadcast %cst_8 : f32 to vector<1x512xf32>
    %9 = arith.divf %7, %8 : vector<1x512xf32>
    %10 = arith.mulf %3, %3 : vector<4x512xf32>
    %cst_9 = arith.constant dense<0.000000e+00> : vector<512xf32>
    %11 = vector.multi_reduction <add>, %10, %cst_9 [0] : vector<4x512xf32> to vector<512xf32>
    %12 = vector.shape_cast %11 : vector<512xf32> to vector<1x512xf32>
    %cst_10 = arith.constant 4.000000e+00 : f32
    %13 = vector.broadcast %cst_10 : f32 to vector<1x512xf32>
    %14 = arith.divf %12, %13 : vector<1x512xf32>
    %15 = arith.mulf %9, %9 : vector<1x512xf32>
    %16 = arith.subf %14, %15 : vector<1x512xf32>
    %cst_11 = arith.constant 0.000000e+00 : f32
    %17 = vector.broadcast %cst_11 : f32 to vector<1x512xf32>
    %18 = arith.maximumf %16, %17 : vector<1x512xf32>
    %19 = vector.broadcast %9 : vector<1x512xf32> to vector<4x512xf32>
    %20 = arith.subf %3, %19 : vector<4x512xf32>
    %cst_12 = arith.constant 9.99999974E-6 : f32
    %21 = vector.broadcast %cst_12 : f32 to vector<1x512xf32>
    %22 = arith.addf %18, %21 : vector<1x512xf32>
    %23 = math.rsqrt %22 : vector<1x512xf32>
    %24 = vector.broadcast %23 : vector<1x512xf32> to vector<4x512xf32>
    %25 = arith.mulf %20, %24 : vector<4x512xf32>
    %26 = vector.broadcast %4 : vector<1x512xf32> to vector<4x512xf32>
    %27 = arith.mulf %25, %26 : vector<4x512xf32>
    %28 = vector.broadcast %5 : vector<1x512xf32> to vector<4x512xf32>
    %29 = arith.addf %27, %28 : vector<4x512xf32>
    %cst_13 = arith.constant 0.000000e+00 : f32
    %30 = vector.broadcast %cst_13 : f32 to vector<4x512xf32>
    %31 = arith.maximumf %29, %30 : vector<4x512xf32>
    %32 = arith.truncf %31 : vector<4x512xf32> to vector<4x512xbf16>
    %c0_14 = arith.constant 0 : index
    %c0_15 = arith.constant 0 : index
    %33 = vector.load %arg4[%c0_14, %c0_15] : memref<512x256xbf16, #tpu.memory_space<vmem>>, vector<512x256xbf16>
    %cst_16 = arith.constant dense<0.000000e+00> : vector<4x256xf32>
    %34 = tpu.matmul %32, %33, %cst_16 {dimension_numbers = #tpu.dot_dimension_numbers<[1], [0], [0], [1], [0, 0, 1, 1], [], []>} : vector<4x512xbf16>, vector<512x256xbf16>, vector<4x256xf32> -> vector<4x256xf32>
    %c0_17 = arith.constant 0 : index
    %c0_18 = arith.constant 0 : index
    %35 = vector.load %arg5[%c0_17, %c0_18] : memref<1x256xf32, #tpu.memory_space<vmem>>, vector<1x256xf32>
    %c0_19 = arith.constant 0 : index
    %c0_20 = arith.constant 0 : index
    %36 = vector.load %arg6[%c0_19, %c0_20] : memref<1x256xf32, #tpu.memory_space<vmem>>, vector<1x256xf32>
    %cst_21 = arith.constant dense<0.000000e+00> : vector<256xf32>
    %37 = vector.multi_reduction <add>, %34, %cst_21 [0] : vector<4x256xf32> to vector<256xf32>
    %38 = vector.shape_cast %37 : vector<256xf32> to vector<1x256xf32>
    %cst_22 = arith.constant 4.000000e+00 : f32
    %39 = vector.broadcast %cst_22 : f32 to vector<1x256xf32>
    %40 = arith.divf %38, %39 : vector<1x256xf32>
    %41 = arith.mulf %34, %34 : vector<4x256xf32>
    %cst_23 = arith.constant dense<0.000000e+00> : vector<256xf32>
    %42 = vector.multi_reduction <add>, %41, %cst_23 [0] : vector<4x256xf32> to vector<256xf32>
    %43 = vector.shape_cast %42 : vector<256xf32> to vector<1x256xf32>
    %cst_24 = arith.constant 4.000000e+00 : f32
    %44 = vector.broadcast %cst_24 : f32 to vector<1x256xf32>
    %45 = arith.divf %43, %44 : vector<1x256xf32>
    %46 = arith.mulf %40, %40 : vector<1x256xf32>
    %47 = arith.subf %45, %46 : vector<1x256xf32>
    %cst_25 = arith.constant 0.000000e+00 : f32
    %48 = vector.broadcast %cst_25 : f32 to vector<1x256xf32>
    %49 = arith.maximumf %47, %48 : vector<1x256xf32>
    %50 = vector.broadcast %40 : vector<1x256xf32> to vector<4x256xf32>
    %51 = arith.subf %34, %50 : vector<4x256xf32>
    %cst_26 = arith.constant 9.99999974E-6 : f32
    %52 = vector.broadcast %cst_26 : f32 to vector<1x256xf32>
    %53 = arith.addf %49, %52 : vector<1x256xf32>
    %54 = math.rsqrt %53 : vector<1x256xf32>
    %55 = vector.broadcast %54 : vector<1x256xf32> to vector<4x256xf32>
    %56 = arith.mulf %51, %55 : vector<4x256xf32>
    %57 = vector.broadcast %35 : vector<1x256xf32> to vector<4x256xf32>
    %58 = arith.mulf %56, %57 : vector<4x256xf32>
    %59 = vector.broadcast %36 : vector<1x256xf32> to vector<4x256xf32>
    %60 = arith.addf %58, %59 : vector<4x256xf32>
    %cst_27 = arith.constant 0.000000e+00 : f32
    %61 = vector.broadcast %cst_27 : f32 to vector<4x256xf32>
    %62 = arith.maximumf %60, %61 : vector<4x256xf32>
    %63 = arith.truncf %62 : vector<4x256xf32> to vector<4x256xbf16>
    %c0_28 = arith.constant 0 : index
    %c0_29 = arith.constant 0 : index
    %64 = vector.load %arg7[%c0_28, %c0_29] : memref<256x128xbf16, #tpu.memory_space<vmem>>, vector<256x128xbf16>
    %cst_30 = arith.constant dense<0.000000e+00> : vector<4x128xf32>
    %65 = tpu.matmul %63, %64, %cst_30 {dimension_numbers = #tpu.dot_dimension_numbers<[1], [0], [0], [1], [0, 0, 1, 1], [], []>} : vector<4x256xbf16>, vector<256x128xbf16>, vector<4x128xf32> -> vector<4x128xf32>
    %c0_31 = arith.constant 0 : index
    %c0_32 = arith.constant 0 : index
    %66 = vector.load %arg8[%c0_31, %c0_32] : memref<4x128xf32, #tpu.memory_space<vmem>>, vector<4x128xf32>
    tpu.vector_store %arg8[%c0_31, %c0_32], %65 {strides = array<i32>} : memref<4x128xf32, #tpu.memory_space<vmem>>, vector<4x128xf32>,
    return
  }
}

</mosaic_0001>

<llo_original>
// kernel: squeeze.11
$region0: #{squeeze.11}
  %s0 = inlined_call_operand.vmem [shape: f32[8,1024], index: 0, kind: input, shape index: {}]
  %s1 = inlined_call_operand.vmem [shape: f32[4,2,1024], index: 1, kind: output, shape index: {}]
  $region1: #{squeeze.11} parent=0
    #allocation0 [shape = 'u8[131072]{0}', space=vmem, size = 0x20000, scoped, tag = 'scoped mem for output reshape']
    %v2 = vld [vmem:[%s0] sm:$0xff]
    %3 = vst [vmem:[#allocation0] sm:$0x3] %v2
    %s4 = scalar_lea.vmem [#allocation0], 62
    %5 = vst [vmem:[%s4] sm:$0xc] %v2
    %s6 = scalar_lea.vmem [#allocation0], 124
    %7 = vst [vmem:[%s6] sm:$0x30] %v2
    %s8 = scalar_lea.vmem [#allocation0], 186
    %9 = vst [vmem:[%s8] sm:$0xc0] %v2
    %s10 = scalar_lea.vmem %s0, 8
    %v11 = vld [vmem:[%s10] sm:$0xff]
    %s12 = scalar_lea.vmem [#allocation0], 8
    %13 = vst [vmem:[%s12] sm:$0x3] %v11
    %s14 = scalar_lea.vmem [#allocation0], 70
    %15 = vst [vmem:[%s14] sm:$0xc] %v11
    %s16 = scalar_lea.vmem [#allocation0], 132
    %17 = vst [vmem:[%s16] sm:$0x30] %v11
    %s18 = scalar_lea.vmem [#allocation0], 194
    %19 = vst [vmem:[%s18] sm:$0xc0] %v11
    %s20 = scalar_lea.vmem %s0, 16
    %v21 = vld [vmem:[%s20] sm:$0xff]
    %s22 = scalar_lea.vmem [#allocation0], 16
    %23 = vst [vmem:[%s22] sm:$0x3] %v21
    %s24 = scalar_lea.vmem [#allocation0], 78
    %25 = vst [vmem:[%s24] sm:$0xc] %v21
    %s26 = scalar_lea.vmem [#allocation0], 140
    %27 = vst [vmem:[%s26] sm:$0x30] %v21
    %s28 = scalar_lea.vmem [#allocation0], 202
    %29 = vst [vmem:[%s28] sm:$0xc0] %v21
    %s30 = scalar_lea.vmem %s0, 24
    %v31 = vld [vmem:[%s30] sm:$0xff]
    %s32 = scalar_lea.vmem [#allocation0], 24
    %33 = vst [vmem:[%s32] sm:$0x3] %v31
    %s34 = scalar_lea.vmem [#allocation0], 86
    %35 = vst [vmem:[%s34] sm:$0xc] %v31
    %s36 = scalar_lea.vmem [#allocation0], 148
    %37 = vst [vmem:[%s36] sm:$0x30] %v31
    %s38 = scalar_lea.vmem [#allocation0], 210
    %39 = vst [vmem:[%s38] sm:$0xc0] %v31
    %s40 = scalar_lea.vmem %s0, 32
    %v41 = vld [vmem:[%s40] sm:$0xff]
    %s42 = scalar_lea.vmem [#allocation0], 32
    %43 = vst [vmem:[%s42] sm:$0x3] %v41
    %s44 = scalar_lea.vmem [#allocation0], 94
    %45 = vst [vmem:[%s44] sm:$0xc] %v41
    %s46 = scalar_lea.vmem [#allocation0], 156
    %47 = vst [vmem:[%s46] sm:$0x30] %v41
    %s48 = scalar_lea.vmem [#allocation0], 218
    %49 = vst [vmem:[%s48] sm:$0xc0] %v41
    %s50 = scalar_lea.vmem %s0, 40
    %v51 = vld [vmem:[%s50] sm:$0xff]
    %s52 = scalar_lea.vmem [#allocation0], 40
    %53 = vst [vmem:[%s52] sm:$0x3] %v51
    %s54 = scalar_lea.vmem [#allocation0], 102
    %55 = vst [vmem:[%s54] sm:$0xc] %v51
    %s56 = scalar_lea.vmem [#allocation0], 164
    %57 = vst [vmem:[%s56] sm:$0x30] %v51
    %s58 = scalar_lea.vmem [#allocation0], 226
    %59 = vst [vmem:[%s58] sm:$0xc0] %v51
    %s60 = scalar_lea.vmem %s0, 48
    %v61 = vld [vmem:[%s60] sm:$0xff]
    %s62 = scalar_lea.vmem [#allocation0], 48
    %63 = vst [vmem:[%s62] sm:$0x3] %v61
    %s64 = scalar_lea.vmem [#allocation0], 110
    %65 = vst [vmem:[%s64] sm:$0xc] %v61
    %s66 = scalar_lea.vmem [#allocation0], 172
    %67 = vst [vmem:[%s66] sm:$0x30] %v61
    %s68 = scalar_lea.vmem [#allocation0], 234
    %69 = vst [vmem:[%s68] sm:$0xc0] %v61
    %s70 = scalar_lea.vmem %s0, 56
    %v71 = vld [vmem:[%s70] sm:$0xff]
    %s72 = scalar_lea.vmem [#allocation0], 56
    %73 = vst [vmem:[%s72] sm:$0x3] %v71
    %s74 = scalar_lea.vmem [#allocation0], 118
    %75 = vst [vmem:[%s74] sm:$0xc] %v71
    %s76 = scalar_lea.vmem [#allocation0], 180
    %77 = vst [vmem:[%s76] sm:$0x30] %v71
    %s78 = scalar_lea.vmem [#allocation0], 242
    %79 = vst [vmem:[%s78] sm:$0xc0] %v71
    %s81 = ssub.s32 4, 1
    %v82 = vld [vmem:[#allocation0] sm:%s81]
    %s84 = ssub.s32 4, 1
    %85 = vst [vmem:[%s1] sm:%s84] %v82
    %s86 = scalar_lea.vmem [#allocation0], 8
    %v87 = vld [vmem:[%s86] sm:%s81]
    %s89 = ssub.s32 4, 1
    %s90 = scalar_lea.vmem %s1, 2
    %91 = vst [vmem:[%s90] sm:%s89] %v87
    %s92 = scalar_lea.vmem [#allocation0], 16
    %v93 = vld [vmem:[%s92] sm:%s81]
    %s95 = ssub.s32 4, 1
    %s96 = scalar_lea.vmem %s1, 4
    %97 = vst [vmem:[%s96] sm:%s95] %v93
    %s98 = scalar_lea.vmem [#allocation0], 24
    %v99 = vld [vmem:[%s98] sm:%s81]
    %s101 = ssub.s32 4, 1
    %s102 = scalar_lea.vmem %s1, 6
    %103 = vst [vmem:[%s102] sm:%s101] %v99
    %s104 = scalar_lea.vmem [#allocation0], 32
    %v105 = vld [vmem:[%s104] sm:%s81]
    %s107 = ssub.s32 4, 1
    %s108 = scalar_lea.vmem %s1, 8
    %109 = vst [vmem:[%s108] sm:%s107] %v105
    %s110 = scalar_lea.vmem [#allocation0], 40
    %v111 = vld [vmem:[%s110] sm:%s81]
    %s113 = ssub.s32 4, 1
    %s114 = scalar_lea.vmem %s1, 10
    %115 = vst [vmem:[%s114] sm:%s113] %v111
    %s116 = scalar_lea.vmem [#allocation0], 48
    %v117 = vld [vmem:[%s116] sm:%s81]
    %s119 = ssub.s32 4, 1
    %s120 = scalar_lea.vmem %s1, 12
    %121 = vst [vmem:[%s120] sm:%s119] %v117
    %s122 = scalar_lea.vmem [#allocation0], 56
    %v123 = vld [vmem:[%s122] sm:%s81]
    %s125 = ssub.s32 4, 1
    %s126 = scalar_lea.vmem %s1, 14
    %127 = vst [vmem:[%s126] sm:%s125] %v123
    %s128 = scalar_lea.vmem [#allocation0], 64
    %v129 = vld [vmem:[%s128] sm:%s81]
    %s131 = ssub.s32 4, 1
    %s132 = scalar_lea.vmem %s1, 16
    %133 = vst [vmem:[%s132] sm:%s131] %v129
    %s134 = scalar_lea.vmem [#allocation0], 72
    %v135 = vld [vmem:[%s134] sm:%s81]
    %s137 = ssub.s32 4, 1
    %s138 = scalar_lea.vmem %s1, 18
    %139 = vst [vmem:[%s138] sm:%s137] %v135
    %s140 = scalar_lea.vmem [#allocation0], 80
    %v141 = vld [vmem:[%s140] sm:%s81]
    %s143 = ssub.s32 4, 1
    %s144 = scalar_lea.vmem %s1, 20
    %145 = vst [vmem:[%s144] sm:%s143] %v141
    %s146 = scalar_lea.vmem [#allocation0], 88
    %v147 = vld [vmem:[%s146] sm:%s81]
    %s149 = ssub.s32 4, 1
    %s150 = scalar_lea.vmem %s1, 22
    %151 = vst [vmem:[%s150] sm:%s149] %v147
    %s152 = scalar_lea.vmem [#allocation0], 96
    %v153 = vld [vmem:[%s152] sm:%s81]
    %s155 = ssub.s32 4, 1
    %s156 = scalar_lea.vmem %s1, 24
    %157 = vst [vmem:[%s156] sm:%s155] %v153
    %s158 = scalar_lea.vmem [#allocation0], 104
    %v159 = vld [vmem:[%s158] sm:%s81]
    %s161 = ssub.s32 4, 1
    %s162 = scalar_lea.vmem %s1, 26
    %163 = vst [vmem:[%s162] sm:%s161] %v159
    %s164 = scalar_lea.vmem [#allocation0], 112
    %v165 = vld [vmem:[%s164] sm:%s81]
    %s167 = ssub.s32 4, 1
    %s168 = scalar_lea.vmem %s1, 28
    %169 = vst [vmem:[%s168] sm:%s167] %v165
    %s170 = scalar_lea.vmem [#allocation0], 120
    %v171 = vld [vmem:[%s170] sm:%s81]
    %s173 = ssub.s32 4, 1
    %s174 = scalar_lea.vmem %s1, 30
    %175 = vst [vmem:[%s174] sm:%s173] %v171
    %s176 = scalar_lea.vmem [#allocation0], 128
    %v177 = vld [vmem:[%s176] sm:%s81]
    %s179 = ssub.s32 4, 1
    %s180 = scalar_lea.vmem %s1, 32
    %181 = vst [vmem:[%s180] sm:%s179] %v177
    %s182 = scalar_lea.vmem [#allocation0], 136
    %v183 = vld [vmem:[%s182] sm:%s81]
    %s185 = ssub.s32 4, 1
    %s186 = scalar_lea.vmem %s1, 34
    %187 = vst [vmem:[%s186] sm:%s185] %v183
    %s188 = scalar_lea.vmem [#allocation0], 144
    %v189 = vld [vmem:[%s188] sm:%s81]
    %s191 = ssub.s32 4, 1
    %s192 = scalar_lea.vmem %s1, 36
    %193 = vst [vmem:[%s192] sm:%s191] %v189
    %s194 = scalar_lea.vmem [#allocation0], 152
    %v195 = vld [vmem:[%s194] sm:%s81]
    %s197 = ssub.s32 4, 1
    %s198 = scalar_lea.vmem %s1, 38
    %199 = vst [vmem:[%s198] sm:%s197] %v195
    %s200 = scalar_lea.vmem [#allocation0], 160
    %v201 = vld [vmem:[%s200] sm:%s81]
    %s203 = ssub.s32 4, 1
    %s204 = scalar_lea.vmem %s1, 40
    %205 = vst [vmem:[%s204] sm:%s203] %v201
    %s206 = scalar_lea.vmem [#allocation0], 168
    %v207 = vld [vmem:[%s206] sm:%s81]
    %s209 = ssub.s32 4, 1
    %s210 = scalar_lea.vmem %s1, 42
    %211 = vst [vmem:[%s210] sm:%s209] %v207
    %s212 = scalar_lea.vmem [#allocation0], 176
    %v213 = vld [vmem:[%s212] sm:%s81]
    %s215 = ssub.s32 4, 1
    %s216 = scalar_lea.vmem %s1, 44
    %217 = vst [vmem:[%s216] sm:%s215] %v213
    %s218 = scalar_lea.vmem [#allocation0], 184
    %v219 = vld [vmem:[%s218] sm:%s81]
    %s221 = ssub.s32 4, 1
    %s222 = scalar_lea.vmem %s1, 46
    %223 = vst [vmem:[%s222] sm:%s221] %v219
    %s224 = scalar_lea.vmem [#allocation0], 192
    %v225 = vld [vmem:[%s224] sm:%s81]
    %s227 = ssub.s32 4, 1
    %s228 = scalar_lea.vmem %s1, 48
    %229 = vst [vmem:[%s228] sm:%s227] %v225
    %s230 = scalar_lea.vmem [#allocation0], 200
    %v231 = vld [vmem:[%s230] sm:%s81]
    %s233 = ssub.s32 4, 1
    %s234 = scalar_lea.vmem %s1, 50
    %235 = vst [vmem:[%s234] sm:%s233] %v231
    %s236 = scalar_lea.vmem [#allocation0], 208
    %v237 = vld [vmem:[%s236] sm:%s81]
    %s239 = ssub.s32 4, 1
    %s240 = scalar_lea.vmem %s1, 52
    %241 = vst [vmem:[%s240] sm:%s239] %v237
    %s242 = scalar_lea.vmem [#allocation0], 216
    %v243 = vld [vmem:[%s242] sm:%s81]
    %s245 = ssub.s32 4, 1
    %s246 = scalar_lea.vmem %s1, 54
    %247 = vst [vmem:[%s246] sm:%s245] %v243
    %s248 = scalar_lea.vmem [#allocation0], 224
    %v249 = vld [vmem:[%s248] sm:%s81]
    %s251 = ssub.s32 4, 1
    %s252 = scalar_lea.vmem %s1, 56
    %253 = vst [vmem:[%s252] sm:%s251] %v249
    %s254 = scalar_lea.vmem [#allocation0], 232
    %v255 = vld [vmem:[%s254] sm:%s81]
    %s257 = ssub.s32 4, 1
    %s258 = scalar_lea.vmem %s1, 58
    %259 = vst [vmem:[%s258] sm:%s257] %v255
    %s260 = scalar_lea.vmem [#allocation0], 240
    %v261 = vld [vmem:[%s260] sm:%s81]
    %s263 = ssub.s32 4, 1
    %s264 = scalar_lea.vmem %s1, 60
    %265 = vst [vmem:[%s264] sm:%s263] %v261
    %s266 = scalar_lea.vmem [#allocation0], 248
    %v267 = vld [vmem:[%s266] sm:%s81]
    %s269 = ssub.s32 4, 1
    %s270 = scalar_lea.vmem %s1, 62
    %271 = vst [vmem:[%s270] sm:%s269] %v267

// kernel: tnet_forward.3
$region0: #{tnet_forward.3}
  #allocation0 [shape = 'u32[]', space=smem, size = 0x4, offset = 0x4, fixed_abs, tag = 'smem constant byte address 0x4 - core index']
  #allocation1 [shape = 'u32[72,128]{1,0:T(1,128)}', space=vmem, size = 0x9000, scoped, tag = 'internal scratch']
  %s0 = inlined_call_operand.vmem [shape: f32[256,3], index: 0, kind: input, shape index: {}]
  %s1 = inlined_call_operand.hbm [shape: f32[3,64], index: 1, kind: input, shape index: {}]
  %s2 = inlined_call_operand.vmem [shape: f32[1,64], index: 2, kind: input, shape index: {}]
  %s3 = inlined_call_operand.vmem [shape: f32[1,64], index: 3, kind: input, shape index: {}]
  %s4 = inlined_call_operand.vmem [shape: bf16[64,128], index: 4, kind: input, shape index: {}]
  %s5 = inlined_call_operand.vmem [shape: f32[256,128], index: 5, kind: output, shape index: {0}]
  %s6 = inlined_call_operand.vmem [shape: f32[64,128], index: 6, kind: output, shape index: {1}]
  %7 = xla_tuple %s5, %s6
  %s8 = sld [smem:[#allocation0]]
  $region65: #{tnet_forward.3} parent=0
    _
  %s10 = ssub.s32 1, %s8
  %s11 = scalar_select 0, %s10, %s8
  $region1: #{tnet_forward.3} parent=0
    #allocation2 [shape = 'u8[2048]{0}', space=vmem, size = 0x800, scoped, tag = 'input window, operand 1, single buffered']
    #allocation3 [shape = 's32[2]{0}', space=sflag, size = 0x8, scoped, tag = 'scoped memory for tnet_forward.3']
    %12 = vsyncpa [#allocation3], 0
    loop: start=0, step=1, limit=10
    $region2: #{tnet_forward.3} parent=1 // loop_pre_header
      _
    $region3: #{tnet_forward.3} parent=1 // loop_header
      %s14 = sphi 0, %s18
      %p15 = scmp.ge.s32.totalorder %s14, 10
      %s24 = sphi 0, %s26
      %s27 = sphi 0, %s24
      %s28 = sphi 0, %s27
      %s44 = sphi 0, %s28
      %s48 = sphi 0, %s48
      %s50 = sphi 0, %s48
      %s51 = sphi 0, %s50
      %s65 = sphi 0, %s51
      %s69 = sphi 0, %s69
      %s71 = sphi 0, %s69
      %s72 = sphi 0, %s71
      %s86 = sphi 0, %s72
      %s90 = sphi 0, %s90
      %s92 = sphi 0, %s90
      %s93 = sphi 0, %s92
      %s107 = sphi 0, %s93
      %s111 = sphi 0, %s111
      %s113 = sphi 0, %s111
      %s114 = sphi 0, %s113
      %s128 = sphi 0, %s114
      %s134 = sphi 0, %s136
      %s137 = sphi 0, %s134
      %s138 = sphi 0, %s137
      %s154 = sphi 0, %s138
      %s160 = sphi 0, %s162
      %s163 = sphi 0, %s160
      %s164 = sphi 0, %s163
      %s180 = sphi 0, %s164
    $region4: #{tnet_forward.3} parent=1 // loop_header_branch
      %17 = sbr.rel (%p15) target = $region8
    $region5: #{tnet_forward.3} parent=1 // loop_body
      %s19 = ssub.s32 %s14, 1
      %s20 = ssub.s32 %s14, 2
      %s21 = sadd.s32 %s14, 1
      %s22 = ssub.s32 %s14, %s21
      %p23 = scmp.eq.s32.totalorder %s22, 0
      %s25 = sadd.s32 %s24, 1
      %s26 = scalar_select %p23, %s24, %s25
      %p29 = pneg %p23
      %p30 = scmp.eq.s32.totalorder %s14, 7
      %p31 = por %p29, %p30
      %p32 = scmp.ne.s32.totalorder %s24, %s27
      %p33 = scmp.eq.s32.totalorder %s14, 0
      %p34 = por %p32, %p33
      %p35 = scmp.ne.s32.totalorder %s24, %s27
      %p36 = scmp.eq.s32.totalorder %s19, 7
      %p37 = por %p35, %p36
      %p38 = scmp.ne.s32.totalorder %s27, %s28
      %p39 = scmp.eq.s32.totalorder %s19, 0
      %p40 = por %p38, %p39
      %p41 = scmp.ne.s32.totalorder %s27, %s28
      %p42 = scmp.eq.s32.totalorder %s20, 7
      %p43 = por %p41, %p42
      %p45 = scmp.ne.s32.totalorder %s28, %s44
      %p46 = scmp.eq.s32.totalorder %s20, 0
      %p47 = por %p45, %p46
      %s49 = sadd.s32 %s48, 1
      %p52 = scmp.eq.s32.totalorder %s14, 7
      %p53 = scmp.ne.s32.totalorder %s48, %s50
      %p54 = scmp.eq.s32.totalorder %s14, 0
      %p55 = por %p53, %p54
      %p56 = scmp.ne.s32.totalorder %s48, %s50
      %p57 = scmp.eq.s32.totalorder %s19, 7
      %p58 = por %p56, %p57
      %p59 = scmp.ne.s32.totalorder %s50, %s51
      %p60 = scmp.eq.s32.totalorder %s19, 0
      %p61 = por %p59, %p60
      %p62 = scmp.ne.s32.totalorder %s50, %s51
      %p63 = scmp.eq.s32.totalorder %s20, 7
      %p64 = por %p62, %p63
      %p66 = scmp.ne.s32.totalorder %s51, %s65
      %p67 = scmp.eq.s32.totalorder %s20, 0
      %p68 = por %p66, %p67
      %s70 = sadd.s32 %s69, 1
      %p73 = scmp.eq.s32.totalorder %s14, 7
      %p74 = scmp.ne.s32.totalorder %s69, %s71
      %p75 = scmp.eq.s32.totalorder %s14, 0
      %p76 = por %p74, %p75
      %p77 = scmp.ne.s32.totalorder %s69, %s71
      %p78 = scmp.eq.s32.totalorder %s19, 7
      %p79 = por %p77, %p78
      %p80 = scmp.ne.s32.totalorder %s71, %s72
      %p81 = scmp.eq.s32.totalorder %s19, 0
      %p82 = por %p80, %p81
      %p83 = scmp.ne.s32.totalorder %s71, %s72
      %p84 = scmp.eq.s32.totalorder %s20, 7
      %p85 = por %p83, %p84
      %p87 = scmp.ne.s32.totalorder %s72, %s86
      %p88 = scmp.eq.s32.totalorder %s20, 0
      %p89 = por %p87, %p88
      %s91 = sadd.s32 %s90, 1
      %p94 = scmp.eq.s32.totalorder %s14, 7
      %p95 = scmp.ne.s32.totalorder %s90, %s92
      %p96 = scmp.eq.s32.totalorder %s14, 0
      %p97 = por %p95, %p96
      %p98 = scmp.ne.s32.totalorder %s90, %s92
      %p99 = scmp.eq.s32.totalorder %s19, 7
      %p100 = por %p98, %p99
      %p101 = scmp.ne.s32.totalorder %s92, %s93
      %p102 = scmp.eq.s32.totalorder %s19, 0
      %p103 = por %p101, %p102
      %p104 = scmp.ne.s32.totalorder %s92, %s93
      %p105 = scmp.eq.s32.totalorder %s20, 7
      %p106 = por %p104, %p105
      %p108 = scmp.ne.s32.totalorder %s93, %s107
      %p109 = scmp.eq.s32.totalorder %s20, 0
      %p110 = por %p108, %p109
      %s112 = sadd.s32 %s111, 1
      %p115 = scmp.eq.s32.totalorder %s14, 7
      %p116 = scmp.ne.s32.totalorder %s111, %s113
      %p117 = scmp.eq.s32.totalorder %s14, 0
      %p118 = por %p116, %p117
      %p119 = scmp.ne.s32.totalorder %s111, %s113
      %p120 = scmp.eq.s32.totalorder %s19, 7
      %p121 = por %p119, %p120
      %p122 = scmp.ne.s32.totalorder %s113, %s114
      %p123 = scmp.eq.s32.totalorder %s19, 0
      %p124 = por %p122, %p123
      %p125 = scmp.ne.s32.totalorder %s113, %s114
      %p126 = scmp.eq.s32.totalorder %s20, 7
      %p127 = por %p125, %p126
      %p129 = scmp.ne.s32.totalorder %s114, %s128
      %p130 = scmp.eq.s32.totalorder %s20, 0
      %p131 = por %p129, %p130
      %s132 = ssub.s32 %s14, %s21
      %p133 = scmp.eq.s32.totalorder %s132, 0
      %s135 = sadd.s32 %s134, 1
      %s136 = scalar_select %p133, %s134, %s135
      %p139 = pneg %p133
      %p140 = scmp.eq.s32.totalorder %s14, 7
      %p141 = por %p139, %p140
      %p142 = scmp.ne.s32.totalorder %s134, %s137
      %p143 = scmp.eq.s32.totalorder %s14, 0
      %p144 = por %p142, %p143
      %p145 = scmp.ne.s32.totalorder %s134, %s137
      %p146 = scmp.eq.s32.totalorder %s19, 7
      %p147 = por %p145, %p146
      %p148 = scmp.ne.s32.totalorder %s137, %s138
      %p149 = scmp.eq.s32.totalorder %s19, 0
      %p150 = por %p148, %p149
      %p151 = scmp.ne.s32.totalorder %s137, %s138
      %p152 = scmp.eq.s32.totalorder %s20, 7
      %p153 = por %p151, %p152
      %p155 = scmp.ne.s32.totalorder %s138, %s154
      %p156 = scmp.eq.s32.totalorder %s20, 0
      %p157 = por %p155, %p156
      %s158 = ssub.s32 %s14, %s21
      %p159 = scmp.eq.s32.totalorder %s158, 0
      %s161 = sadd.s32 %s160, 1
      %s162 = scalar_select %p159, %s160, %s161
      %p165 = pneg %p159
      %p166 = scmp.eq.s32.totalorder %s14, 7
      %p167 = por %p165, %p166
      %p168 = scmp.ne.s32.totalorder %s160, %s163
      %p169 = scmp.eq.s32.totalorder %s14, 0
      %p170 = por %p168, %p169
      %p171 = scmp.ne.s32.totalorder %s160, %s163
      %p172 = scmp.eq.s32.totalorder %s19, 7
      %p173 = por %p171, %p172
      %p174 = scmp.ne.s32.totalorder %s163, %s164
      %p175 = scmp.eq.s32.totalorder %s19, 0
      %p176 = por %p174, %p175
      %p177 = scmp.ne.s32.totalorder %s163, %s164
      %p178 = scmp.eq.s32.totalorder %s20, 7
      %p179 = por %p177, %p178
      %p181 = scmp.ne.s32.totalorder %s164, %s180
      %p182 = scmp.eq.s32.totalorder %s20, 0
      %p183 = por %p181, %p182
      %p184 = scmp.le.s32.totalorder 1, %s14
      %p185 = scmp.lt.s32.totalorder %s14, 9
      %p186 = pnand %p184, %p185
      %p187 = pneg %p186
      // Predicated region
      $region9: #{tnet_forward.3} parent=5 // pred_check
        _
      $region10: #{tnet_forward.3} parent=5 // pred_check_branch
        %189 = sbr.rel (%p186) target = $region12
      $region11: #{tnet_forward.3} parent=5 // pred_region
        %s190 = ssub.s32 %s14, 1
        // Predicated region
        $region13: #{tnet_forward.3} parent=11 // pred_check
          %p191 = pneg %p61
        $region14: #{tnet_forward.3} parent=11 // pred_check_branch
          %193 = sbr.rel (%p191) target = $region16
        $region15: #{tnet_forward.3} parent=11 // pred_region
          %195 = vsyncadd [#allocation3], 0
          %s197 = sshll.u32 %s1, 4
          %s198 = int_to_ptr.hbm [resolvable:$true] %s197
          %s199 = sshll.u32 [#allocation2], 4
          %s200 = int_to_ptr.vmem [resolvable:$true] %s199
          %202 = dma.hbm_to_vmem [thread:$0]  %s198, 64, %s200, [#allocation3]
        $region16: #{tnet_forward.3} parent=11 // pred_fallthru
          _
        // Predicated region
        $region17: #{tnet_forward.3} parent=11 // pred_check
          %p203 = pneg %p82
        $region18: #{tnet_forward.3} parent=11 // pred_check_branch
          %205 = sbr.rel (%p203) target = $region20
        $region19: #{tnet_forward.3} parent=11 // pred_region
          _
        $region20: #{tnet_forward.3} parent=11 // pred_fallthru
          _
        // Predicated region
        $region21: #{tnet_forward.3} parent=11 // pred_check
          %p206 = pneg %p103
        $region22: #{tnet_forward.3} parent=11 // pred_check_branch
          %208 = sbr.rel (%p206) target = $region24
        $region23: #{tnet_forward.3} parent=11 // pred_region
          _
        $region24: #{tnet_forward.3} parent=11 // pred_fallthru
          _
        // Predicated region
        $region25: #{tnet_forward.3} parent=11 // pred_check
          %p209 = pneg %p124
        $region26: #{tnet_forward.3} parent=11 // pred_check_branch
          %211 = sbr.rel (%p209) target = $region28
        $region27: #{tnet_forward.3} parent=11 // pred_region
          _
        $region28: #{tnet_forward.3} parent=11 // pred_fallthru
          _
      $region12: #{tnet_forward.3} parent=5 // pred_fallthru
        _
      %p212 = scmp.lt.s32.totalorder %s14, 8
      // Predicated region
      $region29: #{tnet_forward.3} parent=5 // pred_check
        %p213 = pneg %p212
      $region30: #{tnet_forward.3} parent=5 // pred_check_branch
        %215 = sbr.rel (%p213) target = $region32
      $region31: #{tnet_forward.3} parent=5 // pred_region
        // Predicated region
        $region33: #{tnet_forward.3} parent=31 // pred_check
          %p216 = pneg %p34
        $region34: #{tnet_forward.3} parent=31 // pred_check_branch
          %218 = sbr.rel (%p216) target = $region36
        $region35: #{tnet_forward.3} parent=31 // pred_region
          %s219 = smul.u32 4, %s14
          %p220 = scmp.lt.s32.totalorder %s219, 31
          %s221 = scalar_select %p220, %s219, 31
          %s222 = smul.addr %s221, 8
          %s223 = scalar_lea.vmem %s0, %s222
          %s224 = smul.u32 4, %s14
        $region36: #{tnet_forward.3} parent=31 // pred_fallthru
          _
      $region32: #{tnet_forward.3} parent=5 // pred_fallthru
        _
      %p225 = scmp.le.s32.totalorder 1, %s14
      %p226 = scmp.lt.s32.totalorder %s14, 9
      %p227 = pnand %p225, %p226
      %p228 = pneg %p227
      // Predicated region
      $region37: #{tnet_forward.3} parent=5 // pred_check
        _
      $region38: #{tnet_forward.3} parent=5 // pred_check_branch
        %230 = sbr.rel (%p227) target = $region40
      $region39: #{tnet_forward.3} parent=5 // pred_region
        %s231 = ssub.s32 %s14, 1
        // Predicated region
        $region41: #{tnet_forward.3} parent=39 // pred_check
          %p232 = pneg %p61
        $region42: #{tnet_forward.3} parent=39 // pred_check_branch
          %234 = sbr.rel (%p232) target = $region44
        $region43: #{tnet_forward.3} parent=39 // pred_region
          %236 = dma.done [#allocation3], 64
        $region44: #{tnet_forward.3} parent=39 // pred_fallthru
          _
        %s237 = smul.u32 4, %s19
        %p238 = scmp.lt.s32.totalorder %s237, 31
        %s239 = scalar_select %p238, %s237, 31
        %s240 = smul.addr %s239, 8
        %s241 = scalar_lea.vmem %s0, %s240
        %p242 = pneg %p40
        %p243 = pneg %p37
        %p244 = pneg %p61
        %p245 = pneg %p58
        %p246 = pneg %p82
        %p247 = pneg %p79
        %p248 = pneg %p103
        %p249 = pneg %p100
        %p250 = pneg %p124
        %p251 = pneg %p121
        %p252 = pneg %p150
        %p253 = pneg %p147
        %s254 = smul.u32 4, %s19
        %p255 = scmp.lt.s32.totalorder %s254, 31
        %s256 = scalar_select %p255, %s254, 31
        %s257 = smul.addr %s256, 8
        %s258 = scalar_lea.vmem %s5, %s257
        %p259 = pneg %p176
        %p260 = pneg %p173
        %p261 = scmp.lt.s32.totalorder %s19, 7
        %s262 = scalar_select %p261, %s19, 7
        %s263 = smul.addr %s262, 8
        %s264 = scalar_lea.vmem %s6, %s263
        %s265 = smul.u32 4, %s19
        %p266 = scmp.lt.s32.totalorder %s265, 31
        %s267 = scalar_select %p266, %s265, 31
        %s268 = smul.addr %s267, 8
        %s269 = scalar_lea.vmem %s0, %s268
        %s270 = smul.u32 4, %s19
        %s271 = smul.u32 4, %s19
        %p272 = scmp.lt.s32.totalorder %s271, 31
        %s273 = scalar_select %p272, %s271, 31
        %s274 = smul.addr %s273, 8
        %s275 = scalar_lea.vmem %s5, %s274
        %s276 = smul.u32 4, %s19
        %p277 = scmp.lt.s32.totalorder %s19, 7
        %s278 = scalar_select %p277, %s19, 7
        %s279 = smul.addr %s278, 8
        %s280 = scalar_lea.vmem %s6, %s279
        %v282 = vld [vmem:[%s269] sm:$0xff]
        %v283 = vld [vmem:[%s269 + $0x8] sm:$0xff]
        %v284 = vld [vmem:[%s269 + $0x10] sm:$0xff]
        %v285 = vld [vmem:[%s269 + $0x18] sm:$0xff]
        %v286 = vld [vmem:[#allocation2] sm:$0x7]
        %288 = vset.pattern.permute.xlu0 0
        %289 = vperm.xlu0 %288, %v282
        %v290 = vpop.permute.xlu0 %289
        %293 = vset.pattern.permute.xlu0 0
        %294 = vperm.xlu0 %293, %v283
        %v295 = vpop.permute.xlu0 %294
        %298 = vset.pattern.permute.xlu0 0
        %299 = vperm.xlu0 %298, %v284
        %v300 = vpop.permute.xlu0 %299
        %303 = vset.pattern.permute.xlu0 0
        %304 = vperm.xlu0 %303, %v285
        %v305 = vpop.permute.xlu0 %304
        %v307 = vperm.slane %v286, 0
        %v308 = vmul.f32 %v290, %v307
        %v309 = vmul.f32 %v295, %v307
        %v310 = vmul.f32 %v300, %v307
        %v311 = vmul.f32 %v305, %v307
        %312 = vset.pattern.permute.xlu0 1
        %313 = vperm.xlu0 %312, %v282
        %v314 = vpop.permute.xlu0 %313
        %316 = vset.pattern.permute.xlu0 1
        %317 = vperm.xlu0 %316, %v283
        %v318 = vpop.permute.xlu0 %317
        %320 = vset.pattern.permute.xlu0 1
        %321 = vperm.xlu0 %320, %v284
        %v322 = vpop.permute.xlu0 %321
        %324 = vset.pattern.permute.xlu0 1
        %325 = vperm.xlu0 %324, %v285
        %v326 = vpop.permute.xlu0 %325
        %v328 = vperm.slane %v286, 1
        %v329 = vmul.f32 %v314, %v328
        %v330 = vmul.f32 %v318, %v328
        %v331 = vmul.f32 %v322, %v328
        %v332 = vmul.f32 %v326, %v328
        %v333 = vadd.f32 %v308, %v329
        %v334 = vadd.f32 %v309, %v330
        %v335 = vadd.f32 %v310, %v331
        %v336 = vadd.f32 %v311, %v332
        %337 = vset.pattern.permute.xlu0 2
        %338 = vperm.xlu0 %337, %v282
        %v339 = vpop.permute.xlu0 %338
        %341 = vset.pattern.permute.xlu0 2
        %342 = vperm.xlu0 %341, %v283
        %v343 = vpop.permute.xlu0 %342
        %345 = vset.pattern.permute.xlu0 2
        %346 = vperm.xlu0 %345, %v284
        %v347 = vpop.permute.xlu0 %346
        %349 = vset.pattern.permute.xlu0 2
        %350 = vperm.xlu0 %349, %v285
        %v351 = vpop.permute.xlu0 %350
        %v353 = vperm.slane %v286, 2
        %v354 = vmul.f32 %v339, %v353
        %v355 = vmul.f32 %v343, %v353
        %v356 = vmul.f32 %v347, %v353
        %v357 = vmul.f32 %v351, %v353
        %v358 = vadd.f32 %v333, %v354
        %v359 = vadd.f32 %v334, %v355
        %v360 = vadd.f32 %v335, %v356
        %v361 = vadd.f32 %v336, %v357
        %v362 = vld [vmem:[%s2] sm:$0x1]
        %v364 = vperm.slane %v362, 0
        %v366 = vmul.f32 %v358, %v364
        %v367 = vmul.f32 %v359, %v364
        %v368 = vmul.f32 %v360, %v364
        %v369 = vmul.f32 %v361, %v364
        %v370 = vld [vmem:[%s3] sm:$0x1]
        %v372 = vperm.slane %v370, 0
        %v374 = vadd.f32 %v366, %v372
        %v375 = vadd.f32 %v367, %v372
        %v376 = vadd.f32 %v368, %v372
        %v377 = vadd.f32 %v369, %v372
        %v378 = vmax.f32 %v374, 0.0
        %v379 = vmax.f32 %v375, 0.0
        %v380 = vmax.f32 %v376, 0.0
        %v381 = vmax.f32 %v377, 0.0
        %v382 = vpack.c.bf16 %v379, %v378
        %v383 = vpack.c.bf16 %v381, %v380
        %v384 = vld [vmem:[%s4] sm:$0xf]
        %v385 = vld [vmem:[%s4 + $0x4] sm:$0xf]
        %v386 = vld [vmem:[%s4 + $0x8] sm:$0xf]
        %v387 = vld [vmem:[%s4 + $0xc] sm:$0xf]
        %v388 = vld [vmem:[%s4 + $0x10] sm:$0xf]
        %v389 = vld [vmem:[%s4 + $0x14] sm:$0xf]
        %v390 = vld [vmem:[%s4 + $0x18] sm:$0xf]
        %v391 = vld [vmem:[%s4 + $0x1c] sm:$0xf]
        %v400 = vunpack.c.l.b16 %v384
        %v401 = vunpack.c.l.b16 %v385
        %v402 = vunpack.c.l.b16 %v386
        %v403 = vunpack.c.l.b16 %v387
        %v404 = vunpack.c.l.b16 %v388
        %v405 = vunpack.c.l.b16 %v389
        %v406 = vunpack.c.l.b16 %v390
        %v407 = vunpack.c.l.b16 %v391
        %v408 = vpack.c.b16 %v401, %v400
        %v409 = vpack.c.b16 %v403, %v402
        %v410 = vpack.c.b16 %v405, %v404
        %v411 = vpack.c.b16 %v407, %v406
        %vm416 = vcmask 523264
        %v418 = vsel %vm416, %v382, 0
        %v421 = vsel %vm416, %v383, 0
        %423 = vmatpush.bf16.msra.mxu0 0
        %424 = vmatpush.bf16.msra.mxu0 0
        %425 = vmatpush.bf16.msra.mxu0 0
        %426 = vmatpush.bf16.msra.mxu0 0
        %427 = vmatpush.bf16.msra.mxu0 %v411
        %428 = vmatpush.bf16.msra.mxu0 %v410
        %429 = vmatpush.bf16.msra.mxu0 %v409
        %430 = vmatpush.bf16.msra.mxu0 %v408
        %431 = vmatmul.bf16.gmra.mxu0 %v418
        %v432 = vpop.f32.mrf.mxu0
        %v433 = vadd.f32 0.0, %v432
        %v434 = vpop.f32.mrf.mxu0
        %v435 = vadd.f32 0.0, %v434
        %436 = vmatmul.bf16.gmra.mxu0 %v421
        %v437 = vpop.f32.mrf.mxu0
        %v438 = vadd.f32 0.0, %v437
        %v439 = vpop.f32.mrf.mxu0
        %v440 = vadd.f32 0.0, %v439
        %441 = vdwg.mxu0
        %442 = vst [vmem:[%s275] sm:$0xff] %v433
        %443 = vst [vmem:[%s275 + $0x8] sm:$0xff] %v435
        %444 = vst [vmem:[%s275 + $0x10] sm:$0xff] %v438
        %445 = vst [vmem:[%s275 + $0x18] sm:$0xff] %v440
        %v446 = vadd.f32 %v433, %v435
        %v447 = vadd.f32 %v446, %v438
        %v448 = vadd.f32 %v447, %v440
        %v449 = vrot.slane %v448, 4
        %v450 = vadd.f32 %v448, %v449
        %v451 = vrot.slane %v450, 2
        %v452 = vadd.f32 %v450, %v451
        %v453 = vrot.slane %v452, 1
        %v454 = vadd.f32 %v452, %v453
        %v455 = vmul.f32 %v433, %v433
        %v456 = vmul.f32 %v435, %v435
        %v457 = vmul.f32 %v438, %v438
        %v458 = vmul.f32 %v440, %v440
        %v459 = vadd.f32 %v455, %v456
        %v460 = vadd.f32 %v459, %v457
        %v461 = vadd.f32 %v460, %v458
        %v462 = vrot.slane %v461, 4
        %v463 = vadd.f32 %v461, %v462
        %v464 = vrot.slane %v463, 2
        %v465 = vadd.f32 %v463, %v464
        %v466 = vrot.slane %v465, 1
        %v467 = vadd.f32 %v465, %v466
        %vm468 = vcmask 1040384
        %v469 = vsel %vm468, %v454, %v467
        %vm470 = vcmask 1041408
        %v471 = vsel %vm470, %v469, 0.0
        %472 = vst [vmem:[%s280] sm:$0xff] %v471
        %s473 = smul.u32 4, %s19
        %p474 = scmp.lt.s32.totalorder %s473, 31
        %s475 = scalar_select %p474, %s473, 31
        %s476 = smul.addr %s475, 8
        %s477 = scalar_lea.vmem %s5, %s476
        %p478 = scmp.lt.s32.totalorder %s19, 7
        %s479 = scalar_select %p478, %s19, 7
        %s480 = smul.addr %s479, 8
        %s481 = scalar_lea.vmem %s6, %s480
        // Predicated region
        $region45: #{tnet_forward.3} parent=39 // pred_check
          %p482 = pneg %p147
        $region46: #{tnet_forward.3} parent=39 // pred_check_branch
          %484 = sbr.rel (%p482) target = $region48
        $region47: #{tnet_forward.3} parent=39 // pred_region
          %s485 = smul.u32 4, %s19
        $region48: #{tnet_forward.3} parent=39 // pred_fallthru
          _
        // Predicated region
        $region49: #{tnet_forward.3} parent=39 // pred_check
          %p486 = pneg %p173
        $region50: #{tnet_forward.3} parent=39 // pred_check_branch
          %488 = sbr.rel (%p486) target = $region52
        $region51: #{tnet_forward.3} parent=39 // pred_region
          _
        $region52: #{tnet_forward.3} parent=39 // pred_fallthru
          _
      $region40: #{tnet_forward.3} parent=5 // pred_fallthru
        _
      %p489 = scmp.le.s32.totalorder 2, %s14
      // Predicated region
      $region53: #{tnet_forward.3} parent=5 // pred_check
        %p490 = pneg %p489
      $region54: #{tnet_forward.3} parent=5 // pred_check_branch
        %492 = sbr.rel (%p490) target = $region56
      $region55: #{tnet_forward.3} parent=5 // pred_region
        %s493 = ssub.s32 %s14, 2
        // Predicated region
        $region57: #{tnet_forward.3} parent=55 // pred_check
          %p494 = pneg %p153
        $region58: #{tnet_forward.3} parent=55 // pred_check_branch
          %496 = sbr.rel (%p494) target = $region60
        $region59: #{tnet_forward.3} parent=55 // pred_region
          %s497 = smul.u32 4, %s20
          %p498 = scmp.lt.s32.totalorder %s497, 31
          %s499 = scalar_select %p498, %s497, 31
          %s500 = smul.addr %s499, 8
          %s501 = scalar_lea.vmem %s5, %s500
        $region60: #{tnet_forward.3} parent=55 // pred_fallthru
          _
        // Predicated region
        $region61: #{tnet_forward.3} parent=55 // pred_check
          %p502 = pneg %p179
        $region62: #{tnet_forward.3} parent=55 // pred_check_branch
          %504 = sbr.rel (%p502) target = $region64
        $region63: #{tnet_forward.3} parent=55 // pred_region
          %p505 = scmp.lt.s32.totalorder %s20, 7
          %s506 = scalar_select %p505, %s20, 7
          %s507 = smul.addr %s506, 8
          %s508 = scalar_lea.vmem %s6, %s507
        $region64: #{tnet_forward.3} parent=55 // pred_fallthru
          _
      $region56: #{tnet_forward.3} parent=5 // pred_fallthru
        _
    $region6: #{tnet_forward.3} parent=1 // loop_footer
      %s18 = sadd.s32 1, %s14
    $region7: #{tnet_forward.3} parent=1 // loop_footer_branch
      %13 = sbr.rel target = $region3
    $region8: #{tnet_forward.3} parent=1 // loop_exit
      _
    %509 = vsyncpa [#allocation3], 1
    %s510 = scalar_lea.sflag [#allocation3], 1
    %511 = vsyncpa %s510, 1

// kernel: tnet_forward.4
$region0: #{tnet_forward.4}
  #allocation0 [shape = 'u32[]', space=smem, size = 0x4, offset = 0x4, fixed_abs, tag = 'smem constant byte address 0x4 - core index']
  #allocation1 [shape = 'u32[72,128]{1,0:T(1,128)}', space=vmem, size = 0x9000, scoped, tag = 'internal scratch']
  %s0 = inlined_call_operand.vmem [shape: f32[256,128], index: 0, kind: input, shape index: {}]
  %s1 = inlined_call_operand.vmem [shape: f32[1,128], index: 1, kind: input, shape index: {}]
  %s2 = inlined_call_operand.vmem [shape: f32[1,128], index: 2, kind: input, shape index: {}]
  %s3 = inlined_call_operand.vmem [shape: bf16[128,1024], index: 3, kind: input, shape index: {}]
  %s4 = inlined_call_operand.vmem [shape: f32[64,1024], index: 4, kind: output, shape index: {}]
  %s5 = sld [smem:[#allocation0]]
  $region49: #{tnet_forward.4} parent=0
    _
  %s7 = ssub.s32 1, %s5
  %s8 = scalar_select 0, %s7, %s5
  loop: start=0, step=1, limit=10
  $region2: #{tnet_forward.4} parent=0 // loop_pre_header
    _
  $region3: #{tnet_forward.4} parent=0 // loop_header
    %s10 = sphi 0, %s14
    %p11 = scmp.ge.s32.totalorder %s10, 10
    %s20 = sphi 0, %s22
    %s23 = sphi 0, %s20
    %s24 = sphi 0, %s23
    %s40 = sphi 0, %s24
    %s44 = sphi 0, %s44
    %s46 = sphi 0, %s44
    %s47 = sphi 0, %s46
    %s61 = sphi 0, %s47
    %s65 = sphi 0, %s65
    %s67 = sphi 0, %s65
    %s68 = sphi 0, %s67
    %s82 = sphi 0, %s68
    %s86 = sphi 0, %s86
    %s88 = sphi 0, %s86
    %s89 = sphi 0, %s88
    %s103 = sphi 0, %s89
    %s109 = sphi 0, %s111
    %s112 = sphi 0, %s109
    %s113 = sphi 0, %s112
    %s129 = sphi 0, %s113
  $region4: #{tnet_forward.4} parent=0 // loop_header_branch
    %13 = sbr.rel (%p11) target = $region8
  $region5: #{tnet_forward.4} parent=0 // loop_body
    %s15 = ssub.s32 %s10, 1
    %s16 = ssub.s32 %s10, 2
    %s17 = sadd.s32 %s10, 1
    %s18 = ssub.s32 %s10, %s17
    %p19 = scmp.eq.s32.totalorder %s18, 0
    %s21 = sadd.s32 %s20, 1
    %s22 = scalar_select %p19, %s20, %s21
    %p25 = pneg %p19
    %p26 = scmp.eq.s32.totalorder %s10, 7
    %p27 = por %p25, %p26
    %p28 = scmp.ne.s32.totalorder %s20, %s23
    %p29 = scmp.eq.s32.totalorder %s10, 0
    %p30 = por %p28, %p29
    %p31 = scmp.ne.s32.totalorder %s20, %s23
    %p32 = scmp.eq.s32.totalorder %s15, 7
    %p33 = por %p31, %p32
    %p34 = scmp.ne.s32.totalorder %s23, %s24
    %p35 = scmp.eq.s32.totalorder %s15, 0
    %p36 = por %p34, %p35
    %p37 = scmp.ne.s32.totalorder %s23, %s24
    %p38 = scmp.eq.s32.totalorder %s16, 7
    %p39 = por %p37, %p38
    %p41 = scmp.ne.s32.totalorder %s24, %s40
    %p42 = scmp.eq.s32.totalorder %s16, 0
    %p43 = por %p41, %p42
    %s45 = sadd.s32 %s44, 1
    %p48 = scmp.eq.s32.totalorder %s10, 7
    %p49 = scmp.ne.s32.totalorder %s44, %s46
    %p50 = scmp.eq.s32.totalorder %s10, 0
    %p51 = por %p49, %p50
    %p52 = scmp.ne.s32.totalorder %s44, %s46
    %p53 = scmp.eq.s32.totalorder %s15, 7
    %p54 = por %p52, %p53
    %p55 = scmp.ne.s32.totalorder %s46, %s47
    %p56 = scmp.eq.s32.totalorder %s15, 0
    %p57 = por %p55, %p56
    %p58 = scmp.ne.s32.totalorder %s46, %s47
    %p59 = scmp.eq.s32.totalorder %s16, 7
    %p60 = por %p58, %p59
    %p62 = scmp.ne.s32.totalorder %s47, %s61
    %p63 = scmp.eq.s32.totalorder %s16, 0
    %p64 = por %p62, %p63
    %s66 = sadd.s32 %s65, 1
    %p69 = scmp.eq.s32.totalorder %s10, 7
    %p70 = scmp.ne.s32.totalorder %s65, %s67
    %p71 = scmp.eq.s32.totalorder %s10, 0
    %p72 = por %p70, %p71
    %p73 = scmp.ne.s32.totalorder %s65, %s67
    %p74 = scmp.eq.s32.totalorder %s15, 7
    %p75 = por %p73, %p74
    %p76 = scmp.ne.s32.totalorder %s67, %s68
    %p77 = scmp.eq.s32.totalorder %s15, 0
    %p78 = por %p76, %p77
    %p79 = scmp.ne.s32.totalorder %s67, %s68
    %p80 = scmp.eq.s32.totalorder %s16, 7
    %p81 = por %p79, %p80
    %p83 = scmp.ne.s32.totalorder %s68, %s82
    %p84 = scmp.eq.s32.totalorder %s16, 0
    %p85 = por %p83, %p84
    %s87 = sadd.s32 %s86, 1
    %p90 = scmp.eq.s32.totalorder %s10, 7
    %p91 = scmp.ne.s32.totalorder %s86, %s88
    %p92 = scmp.eq.s32.totalorder %s10, 0
    %p93 = por %p91, %p92
    %p94 = scmp.ne.s32.totalorder %s86, %s88
    %p95 = scmp.eq.s32.totalorder %s15, 7
    %p96 = por %p94, %p95
    %p97 = scmp.ne.s32.totalorder %s88, %s89
    %p98 = scmp.eq.s32.totalorder %s15, 0
    %p99 = por %p97, %p98
    %p100 = scmp.ne.s32.totalorder %s88, %s89
    %p101 = scmp.eq.s32.totalorder %s16, 7
    %p102 = por %p100, %p101
    %p104 = scmp.ne.s32.totalorder %s89, %s103
    %p105 = scmp.eq.s32.totalorder %s16, 0
    %p106 = por %p104, %p105
    %s107 = ssub.s32 %s10, %s17
    %p108 = scmp.eq.s32.totalorder %s107, 0
    %s110 = sadd.s32 %s109, 1
    %s111 = scalar_select %p108, %s109, %s110
    %p114 = pneg %p108
    %p115 = scmp.eq.s32.totalorder %s10, 7
    %p116 = por %p114, %p115
    %p117 = scmp.ne.s32.totalorder %s109, %s112
    %p118 = scmp.eq.s32.totalorder %s10, 0
    %p119 = por %p117, %p118
    %p120 = scmp.ne.s32.totalorder %s109, %s112
    %p121 = scmp.eq.s32.totalorder %s15, 7
    %p122 = por %p120, %p121
    %p123 = scmp.ne.s32.totalorder %s112, %s113
    %p124 = scmp.eq.s32.totalorder %s15, 0
    %p125 = por %p123, %p124
    %p126 = scmp.ne.s32.totalorder %s112, %s113
    %p127 = scmp.eq.s32.totalorder %s16, 7
    %p128 = por %p126, %p127
    %p130 = scmp.ne.s32.totalorder %s113, %s129
    %p131 = scmp.eq.s32.totalorder %s16, 0
    %p132 = por %p130, %p131
    %p133 = scmp.le.s32.totalorder 1, %s10
    %p134 = scmp.lt.s32.totalorder %s10, 9
    %p135 = pnand %p133, %p134
    %p136 = pneg %p135
    // Predicated region
    $region9: #{tnet_forward.4} parent=5 // pred_check
      _
    $region10: #{tnet_forward.4} parent=5 // pred_check_branch
      %138 = sbr.rel (%p135) target = $region12
    $region11: #{tnet_forward.4} parent=5 // pred_region
      %s139 = ssub.s32 %s10, 1
      // Predicated region
      $region13: #{tnet_forward.4} parent=11 // pred_check
        %p140 = pneg %p57
      $region14: #{tnet_forward.4} parent=11 // pred_check_branch
        %142 = sbr.rel (%p140) target = $region16
      $region15: #{tnet_forward.4} parent=11 // pred_region
        _
      $region16: #{tnet_forward.4} parent=11 // pred_fallthru
        _
      // Predicated region
      $region17: #{tnet_forward.4} parent=11 // pred_check
        %p143 = pneg %p78
      $region18: #{tnet_forward.4} parent=11 // pred_check_branch
        %145 = sbr.rel (%p143) target = $region20
      $region19: #{tnet_forward.4} parent=11 // pred_region
        _
      $region20: #{tnet_forward.4} parent=11 // pred_fallthru
        _
      // Predicated region
      $region21: #{tnet_forward.4} parent=11 // pred_check
        %p146 = pneg %p99
      $region22: #{tnet_forward.4} parent=11 // pred_check_branch
        %148 = sbr.rel (%p146) target = $region24
      $region23: #{tnet_forward.4} parent=11 // pred_region
        _
      $region24: #{tnet_forward.4} parent=11 // pred_fallthru
        _
    $region12: #{tnet_forward.4} parent=5 // pred_fallthru
      _
    %p149 = scmp.lt.s32.totalorder %s10, 8
    // Predicated region
    $region25: #{tnet_forward.4} parent=5 // pred_check
      %p150 = pneg %p149
    $region26: #{tnet_forward.4} parent=5 // pred_check_branch
      %152 = sbr.rel (%p150) target = $region28
    $region27: #{tnet_forward.4} parent=5 // pred_region
      // Predicated region
      $region29: #{tnet_forward.4} parent=27 // pred_check
        %p153 = pneg %p30
      $region30: #{tnet_forward.4} parent=27 // pred_check_branch
        %155 = sbr.rel (%p153) target = $region32
      $region31: #{tnet_forward.4} parent=27 // pred_region
        %s156 = smul.u32 4, %s10
        %p157 = scmp.lt.s32.totalorder %s156, 31
        %s158 = scalar_select %p157, %s156, 31
        %s159 = smul.addr %s158, 8
        %s160 = scalar_lea.vmem %s0, %s159
        %s161 = smul.u32 4, %s10
      $region32: #{tnet_forward.4} parent=27 // pred_fallthru
        _
    $region28: #{tnet_forward.4} parent=5 // pred_fallthru
      _
    %p162 = scmp.le.s32.totalorder 1, %s10
    %p163 = scmp.lt.s32.totalorder %s10, 9
    %p164 = pnand %p162, %p163
    %p165 = pneg %p164
    // Predicated region
    $region33: #{tnet_forward.4} parent=5 // pred_check
      _
    $region34: #{tnet_forward.4} parent=5 // pred_check_branch
      %167 = sbr.rel (%p164) target = $region36
    $region35: #{tnet_forward.4} parent=5 // pred_region
      %s168 = ssub.s32 %s10, 1
      %s169 = smul.u32 4, %s15
      %p170 = scmp.lt.s32.totalorder %s169, 31
      %s171 = scalar_select %p170, %s169, 31
      %s172 = smul.addr %s171, 8
      %s173 = scalar_lea.vmem %s0, %s172
      %p174 = pneg %p36
      %p175 = pneg %p33
      %p176 = pneg %p57
      %p177 = pneg %p54
      %p178 = pneg %p78
      %p179 = pneg %p75
      %p180 = pneg %p99
      %p181 = pneg %p96
      %p182 = pneg %p125
      %p183 = pneg %p122
      %p184 = scmp.lt.s32.totalorder %s15, 7
      %s185 = scalar_select %p184, %s15, 7
      %s186 = smul.addr %s185, 8
      %s187 = smul.addr %s186, 8
      %s188 = scalar_lea.vmem %s4, %s187
      %s189 = smul.u32 4, %s15
      %p190 = scmp.lt.s32.totalorder %s189, 31
      %s191 = scalar_select %p190, %s189, 31
      %s192 = smul.addr %s191, 8
      %s193 = scalar_lea.vmem %s0, %s192
      %s194 = smul.u32 4, %s15
      %p195 = scmp.lt.s32.totalorder %s15, 7
      %s196 = scalar_select %p195, %s15, 7
      %s197 = smul.addr %s196, 8
      %s198 = smul.addr %s197, 8
      %s199 = scalar_lea.vmem %s4, %s198
      %v200 = vld [vmem:[%s193] sm:$0xff]
      %v201 = vld [vmem:[%s193 + $0x8] sm:$0xff]
      %v202 = vld [vmem:[%s193 + $0x10] sm:$0xff]
      %v203 = vld [vmem:[%s193 + $0x18] sm:$0xff]
      %v204 = vld [vmem:[%s1] sm:$0x1]
      %v206 = vperm.slane %v204, 0
      %v208 = vmul.f32 %v200, %v206
      %v209 = vmul.f32 %v201, %v206
      %v210 = vmul.f32 %v202, %v206
      %v211 = vmul.f32 %v203, %v206
      %v212 = vld [vmem:[%s2] sm:$0x1]
      %v214 = vperm.slane %v212, 0
      %v216 = vadd.f32 %v208, %v214
      %v217 = vadd.f32 %v209, %v214
      %v218 = vadd.f32 %v210, %v214
      %v219 = vadd.f32 %v211, %v214
      %v220 = vmax.f32 %v216, 0.0
      %v221 = vmax.f32 %v217, 0.0
      %v222 = vmax.f32 %v218, 0.0
      %v223 = vmax.f32 %v219, 0.0
      %v224 = vpack.c.bf16 %v221, %v220
      %v225 = vpack.c.bf16 %v223, %v222
      %v226 = vld [vmem:[%s3] sm:$0xff]
      %v227 = vld [vmem:[%s3 + $0x8] sm:$0xff]
      %v228 = vld [vmem:[%s3 + $0x10] sm:$0xff]
      %v229 = vld [vmem:[%s3 + $0x18] sm:$0xff]
      %v230 = vld [vmem:[%s3 + $0x20] sm:$0xff]
      %v231 = vld [vmem:[%s3 + $0x28] sm:$0xff]
      %v232 = vld [vmem:[%s3 + $0x30] sm:$0xff]
      %v233 = vld [vmem:[%s3 + $0x38] sm:$0xff]
      %v234 = vld [vmem:[%s3 + $0x40] sm:$0xff]
      %v235 = vld [vmem:[%s3 + $0x48] sm:$0xff]
      %v236 = vld [vmem:[%s3 + $0x50] sm:$0xff]
      %v237 = vld [vmem:[%s3 + $0x58] sm:$0xff]
      %v238 = vld [vmem:[%s3 + $0x60] sm:$0xff]
      %v239 = vld [vmem:[%s3 + $0x68] sm:$0xff]
      %v240 = vld [vmem:[%s3 + $0x70] sm:$0xff]
      %v241 = vld [vmem:[%s3 + $0x78] sm:$0xff]
      %v242 = vld [vmem:[%s3 + $0x80] sm:$0xff]
      %v243 = vld [vmem:[%s3 + $0x88] sm:$0xff]
      %v244 = vld [vmem:[%s3 + $0x90] sm:$0xff]
      %v245 = vld [vmem:[%s3 + $0x98] sm:$0xff]
      %v246 = vld [vmem:[%s3 + $0xa0] sm:$0xff]
      %v247 = vld [vmem:[%s3 + $0xa8] sm:$0xff]
      %v248 = vld [vmem:[%s3 + $0xb0] sm:$0xff]
      %v249 = vld [vmem:[%s3 + $0xb8] sm:$0xff]
      %v250 = vld [vmem:[%s3 + $0xc0] sm:$0xff]
      %v251 = vld [vmem:[%s3 + $0xc8] sm:$0xff]
      %v252 = vld [vmem:[%s3 + $0xd0] sm:$0xff]
      %v253 = vld [vmem:[%s3 + $0xd8] sm:$0xff]
      %v254 = vld [vmem:[%s3 + $0xe0] sm:$0xff]
      %v255 = vld [vmem:[%s3 + $0xe8] sm:$0xff]
      %v256 = vld [vmem:[%s3 + $0xf0] sm:$0xff]
      %v257 = vld [vmem:[%s3 + $0xf8] sm:$0xff]
      %v258 = vld [vmem:[%s3 + $0x100] sm:$0xff]
      %v259 = vld [vmem:[%s3 + $0x108] sm:$0xff]
      %v260 = vld [vmem:[%s3 + $0x110] sm:$0xff]
      %v261 = vld [vmem:[%s3 + $0x118] sm:$0xff]
      %v262 = vld [vmem:[%s3 + $0x120] sm:$0xff]
      %v263 = vld [vmem:[%s3 + $0x128] sm:$0xff]
      %v264 = vld [vmem:[%s3 + $0x130] sm:$0xff]
      %v265 = vld [vmem:[%s3 + $0x138] sm:$0xff]
      %v266 = vld [vmem:[%s3 + $0x140] sm:$0xff]
      %v267 = vld [vmem:[%s3 + $0x148] sm:$0xff]
      %v268 = vld [vmem:[%s3 + $0x150] sm:$0xff]
      %v269 = vld [vmem:[%s3 + $0x158] sm:$0xff]
      %v270 = vld [vmem:[%s3 + $0x160] sm:$0xff]
      %v271 = vld [vmem:[%s3 + $0x168] sm:$0xff]
      %v272 = vld [vmem:[%s3 + $0x170] sm:$0xff]
      %v273 = vld [vmem:[%s3 + $0x178] sm:$0xff]
      %v274 = vld [vmem:[%s3 + $0x180] sm:$0xff]
      %v275 = vld [vmem:[%s3 + $0x188] sm:$0xff]
      %v276 = vld [vmem:[%s3 + $0x190] sm:$0xff]
      %v277 = vld [vmem:[%s3 + $0x198] sm:$0xff]
      %v278 = vld [vmem:[%s3 + $0x1a0] sm:$0xff]
      %v279 = vld [vmem:[%s3 + $0x1a8] sm:$0xff]
      %v280 = vld [vmem:[%s3 + $0x1b0] sm:$0xff]
      %v281 = vld [vmem:[%s3 + $0x1b8] sm:$0xff]
      %v282 = vld [vmem:[%s3 + $0x1c0] sm:$0xff]
      %v283 = vld [vmem:[%s3 + $0x1c8] sm:$0xff]
      %v284 = vld [vmem:[%s3 + $0x1d0] sm:$0xff]
      %v285 = vld [vmem:[%s3 + $0x1d8] sm:$0xff]
      %v286 = vld [vmem:[%s3 + $0x1e0] sm:$0xff]
      %v287 = vld [vmem:[%s3 + $0x1e8] sm:$0xff]
      %v288 = vld [vmem:[%s3 + $0x1f0] sm:$0xff]
      %v289 = vld [vmem:[%s3 + $0x1f8] sm:$0xff]
      %v354 = vunpack.c.l.b16 %v226
      %v355 = vunpack.c.h.b16 %v226
      %v356 = vunpack.c.l.b16 %v227
      %v357 = vunpack.c.h.b16 %v227
      %v358 = vunpack.c.l.b16 %v228
      %v359 = vunpack.c.h.b16 %v228
      %v360 = vunpack.c.l.b16 %v229
      %v361 = vunpack.c.h.b16 %v229
      %v362 = vunpack.c.l.b16 %v230
      %v363 = vunpack.c.h.b16 %v230
      %v364 = vunpack.c.l.b16 %v231
      %v365 = vunpack.c.h.b16 %v231
      %v366 = vunpack.c.l.b16 %v232
      %v367 = vunpack.c.h.b16 %v232
      %v368 = vunpack.c.l.b16 %v233
      %v369 = vunpack.c.h.b16 %v233
      %v370 = vunpack.c.l.b16 %v234
      %v371 = vunpack.c.h.b16 %v234
      %v372 = vunpack.c.l.b16 %v235
      %v373 = vunpack.c.h.b16 %v235
      %v374 = vunpack.c.l.b16 %v236
      %v375 = vunpack.c.h.b16 %v236
      %v376 = vunpack.c.l.b16 %v237
      %v377 = vunpack.c.h.b16 %v237
      %v378 = vunpack.c.l.b16 %v238
      %v379 = vunpack.c.h.b16 %v238
      %v380 = vunpack.c.l.b16 %v239
      %v381 = vunpack.c.h.b16 %v239
      %v382 = vunpack.c.l.b16 %v240
      %v383 = vunpack.c.h.b16 %v240
      %v384 = vunpack.c.l.b16 %v241
      %v385 = vunpack.c.h.b16 %v241
      %v386 = vunpack.c.l.b16 %v242
      %v387 = vunpack.c.h.b16 %v242
      %v388 = vunpack.c.l.b16 %v243
      %v389 = vunpack.c.h.b16 %v243
      %v390 = vunpack.c.l.b16 %v244
      %v391 = vunpack.c.h.b16 %v244
      %v392 = vunpack.c.l.b16 %v245
      %v393 = vunpack.c.h.b16 %v245
      %v394 = vunpack.c.l.b16 %v246
      %v395 = vunpack.c.h.b16 %v246
      %v396 = vunpack.c.l.b16 %v247
      %v397 = vunpack.c.h.b16 %v247
      %v398 = vunpack.c.l.b16 %v248
      %v399 = vunpack.c.h.b16 %v248
      %v400 = vunpack.c.l.b16 %v249
      %v401 = vunpack.c.h.b16 %v249
      %v402 = vunpack.c.l.b16 %v250
      %v403 = vunpack.c.h.b16 %v250
      %v404 = vunpack.c.l.b16 %v251
      %v405 = vunpack.c.h.b16 %v251
      %v406 = vunpack.c.l.b16 %v252
      %v407 = vunpack.c.h.b16 %v252
      %v408 = vunpack.c.l.b16 %v253
      %v409 = vunpack.c.h.b16 %v253
      %v410 = vunpack.c.l.b16 %v254
      %v411 = vunpack.c.h.b16 %v254
      %v412 = vunpack.c.l.b16 %v255
      %v413 = vunpack.c.h.b16 %v255
      %v414 = vunpack.c.l.b16 %v256
      %v415 = vunpack.c.h.b16 %v256
      %v416 = vunpack.c.l.b16 %v257
      %v417 = vunpack.c.h.b16 %v257
      %v418 = vunpack.c.l.b16 %v258
      %v419 = vunpack.c.h.b16 %v258
      %v420 = vunpack.c.l.b16 %v259
      %v421 = vunpack.c.h.b16 %v259
      %v422 = vunpack.c.l.b16 %v260
      %v423 = vunpack.c.h.b16 %v260
      %v424 = vunpack.c.l.b16 %v261
      %v425 = vunpack.c.h.b16 %v261
      %v426 = vunpack.c.l.b16 %v262
      %v427 = vunpack.c.h.b16 %v262
      %v428 = vunpack.c.l.b16 %v263
      %v429 = vunpack.c.h.b16 %v263
      %v430 = vunpack.c.l.b16 %v264
      %v431 = vunpack.c.h.b16 %v264
      %v432 = vunpack.c.l.b16 %v265
      %v433 = vunpack.c.h.b16 %v265
      %v434 = vunpack.c.l.b16 %v266
      %v435 = vunpack.c.h.b16 %v266
      %v436 = vunpack.c.l.b16 %v267
      %v437 = vunpack.c.h.b16 %v267
      %v438 = vunpack.c.l.b16 %v268
      %v439 = vunpack.c.h.b16 %v268
      %v440 = vunpack.c.l.b16 %v269
      %v441 = vunpack.c.h.b16 %v269
      %v442 = vunpack.c.l.b16 %v270
      %v443 = vunpack.c.h.b16 %v270
      %v444 = vunpack.c.l.b16 %v271
      %v445 = vunpack.c.h.b16 %v271
      %v446 = vunpack.c.l.b16 %v272
      %v447 = vunpack.c.h.b16 %v272
      %v448 = vunpack.c.l.b16 %v273
      %v449 = vunpack.c.h.b16 %v273
      %v450 = vunpack.c.l.b16 %v274
      %v451 = vunpack.c.h.b16 %v274
      %v452 = vunpack.c.l.b16 %v275
      %v453 = vunpack.c.h.b16 %v275
      %v454 = vunpack.c.l.b16 %v276
      %v455 = vunpack.c.h.b16 %v276
      %v456 = vunpack.c.l.b16 %v277
      %v457 = vunpack.c.h.b16 %v277
      %v458 = vunpack.c.l.b16 %v278
      %v459 = vunpack.c.h.b16 %v278
      %v460 = vunpack.c.l.b16 %v279
      %v461 = vunpack.c.h.b16 %v279
      %v462 = vunpack.c.l.b16 %v280
      %v463 = vunpack.c.h.b16 %v280
      %v464 = vunpack.c.l.b16 %v281
      %v465 = vunpack.c.h.b16 %v281
      %v466 = vunpack.c.l.b16 %v282
      %v467 = vunpack.c.h.b16 %v282
      %v468 = vunpack.c.l.b16 %v283
      %v469 = vunpack.c.h.b16 %v283
      %v470 = vunpack.c.l.b16 %v284
      %v471 = vunpack.c.h.b16 %v284
      %v472 = vunpack.c.l.b16 %v285
      %v473 = vunpack.c.h.b16 %v285
      %v474 = vunpack.c.l.b16 %v286
      %v475 = vunpack.c.h.b16 %v286
      %v476 = vunpack.c.l.b16 %v287
      %v477 = vunpack.c.h.b16 %v287
      %v478 = vunpack.c.l.b16 %v288
      %v479 = vunpack.c.h.b16 %v288
      %v480 = vunpack.c.l.b16 %v289
      %v481 = vunpack.c.h.b16 %v289
      %v482 = vpack.c.b16 %v362, %v354
      %v483 = vpack.c.b16 %v363, %v355
      %v484 = vpack.c.b16 %v364, %v356
      %v485 = vpack.c.b16 %v365, %v357
      %v486 = vpack.c.b16 %v366, %v358
      %v487 = vpack.c.b16 %v367, %v359
      %v488 = vpack.c.b16 %v368, %v360
      %v489 = vpack.c.b16 %v369, %v361
      %v490 = vpack.c.b16 %v378, %v370
      %v491 = vpack.c.b16 %v379, %v371
      %v492 = vpack.c.b16 %v380, %v372
      %v493 = vpack.c.b16 %v381, %v373
      %v494 = vpack.c.b16 %v382, %v374
      %v495 = vpack.c.b16 %v383, %v375
      %v496 = vpack.c.b16 %v384, %v376
      %v497 = vpack.c.b16 %v385, %v377
      %v498 = vpack.c.b16 %v394, %v386
      %v499 = vpack.c.b16 %v395, %v387
      %v500 = vpack.c.b16 %v396, %v388
      %v501 = vpack.c.b16 %v397, %v389
      %v502 = vpack.c.b16 %v398, %v390
      %v503 = vpack.c.b16 %v399, %v391
      %v504 = vpack.c.b16 %v400, %v392
      %v505 = vpack.c.b16 %v401, %v393
      %v506 = vpack.c.b16 %v410, %v402
      %v507 = vpack.c.b16 %v411, %v403
      %v508 = vpack.c.b16 %v412, %v404
      %v509 = vpack.c.b16 %v413, %v405
      %v510 = vpack.c.b16 %v414, %v406
      %v511 = vpack.c.b16 %v415, %v407
      %v512 = vpack.c.b16 %v416, %v408
      %v513 = vpack.c.b16 %v417, %v409
      %v514 = vpack.c.b16 %v426, %v418
      %v515 = vpack.c.b16 %v427, %v419
      %v516 = vpack.c.b16 %v428, %v420
      %v517 = vpack.c.b16 %v429, %v421
      %v518 = vpack.c.b16 %v430, %v422
      %v519 = vpack.c.b16 %v431, %v423
      %v520 = vpack.c.b16 %v432, %v424
      %v521 = vpack.c.b16 %v433, %v425
      %v522 = vpack.c.b16 %v442, %v434
      %v523 = vpack.c.b16 %v443, %v435
      %v524 = vpack.c.b16 %v444, %v436
      %v525 = vpack.c.b16 %v445, %v437
      %v526 = vpack.c.b16 %v446, %v438
      %v527 = vpack.c.b16 %v447, %v439
      %v528 = vpack.c.b16 %v448, %v440
      %v529 = vpack.c.b16 %v449, %v441
      %v530 = vpack.c.b16 %v458, %v450
      %v531 = vpack.c.b16 %v459, %v451
      %v532 = vpack.c.b16 %v460, %v452
      %v533 = vpack.c.b16 %v461, %v453
      %v534 = vpack.c.b16 %v462, %v454
      %v535 = vpack.c.b16 %v463, %v455
      %v536 = vpack.c.b16 %v464, %v456
      %v537 = vpack.c.b16 %v465, %v457
      %v538 = vpack.c.b16 %v474, %v466
      %v539 = vpack.c.b16 %v475, %v467
      %v540 = vpack.c.b16 %v476, %v468
      %v541 = vpack.c.b16 %v477, %v469
      %v542 = vpack.c.b16 %v478, %v470
      %v543 = vpack.c.b16 %v479, %v471
      %v544 = vpack.c.b16 %v480, %v472
      %v545 = vpack.c.b16 %v481, %v473
      %610 = vmatpush.bf16.msra.mxu0 %v538
      %611 = vmatpush.bf16.msra.mxu0 %v530
      %612 = vmatpush.bf16.msra.mxu0 %v522
      %613 = vmatpush.bf16.msra.mxu0 %v514
      %614 = vmatpush.bf16.msra.mxu0 %v506
      %615 = vmatpush.bf16.msra.mxu0 %v498
      %616 = vmatpush.bf16.msra.mxu0 %v490
      %617 = vmatpush.bf16.msra.mxu0 %v482
      %618 = vmatmul.bf16.gmra.mxu0 %v224
      %v619 = vpop.f32.mrf.mxu0
      %v620 = vadd.f32 0.0, %v619
      %v621 = vpop.f32.mrf.mxu0
      %v622 = vadd.f32 0.0, %v621
      %623 = vmatmul.bf16.gmra.mxu0 %v225
      %v624 = vpop.f32.mrf.mxu0
      %v625 = vadd.f32 0.0, %v624
      %v626 = vpop.f32.mrf.mxu0
      %v627 = vadd.f32 0.0, %v626
      %628 = vdwg.mxu0
      %629 = vmatpush.bf16.msra.mxu0 %v539
      %630 = vmatpush.bf16.msra.mxu0 %v531
      %631 = vmatpush.bf16.msra.mxu0 %v523
      %632 = vmatpush.bf16.msra.mxu0 %v515
      %633 = vmatpush.bf16.msra.mxu0 %v507
      %634 = vmatpush.bf16.msra.mxu0 %v499
      %635 = vmatpush.bf16.msra.mxu0 %v491
      %636 = vmatpush.bf16.msra.mxu0 %v483
      %637 = vmatmul.bf16.gmra.mxu0 %v224
      %v638 = vpop.f32.mrf.mxu0
      %v639 = vadd.f32 0.0, %v638
      %v640 = vpop.f32.mrf.mxu0
      %v641 = vadd.f32 0.0, %v640
      %642 = vmatmul.bf16.gmra.mxu0 %v225
      %v643 = vpop.f32.mrf.mxu0
      %v644 = vadd.f32 0.0, %v643
      %v645 = vpop.f32.mrf.mxu0
      %v646 = vadd.f32 0.0, %v645
      %647 = vdwg.mxu0
      %648 = vmatpush.bf16.msra.mxu0 %v540
      %649 = vmatpush.bf16.msra.mxu0 %v532
      %650 = vmatpush.bf16.msra.mxu0 %v524
      %651 = vmatpush.bf16.msra.mxu0 %v516
      %652 = vmatpush.bf16.msra.mxu0 %v508
      %653 = vmatpush.bf16.msra.mxu0 %v500
      %654 = vmatpush.bf16.msra.mxu0 %v492
      %655 = vmatpush.bf16.msra.mxu0 %v484
      %656 = vmatmul.bf16.gmra.mxu0 %v224
      %v657 = vpop.f32.mrf.mxu0
      %v658 = vadd.f32 0.0, %v657
      %v659 = vpop.f32.mrf.mxu0
      %v660 = vadd.f32 0.0, %v659
      %661 = vmatmul.bf16.gmra.mxu0 %v225
      %v662 = vpop.f32.mrf.mxu0
      %v663 = vadd.f32 0.0, %v662
      %v664 = vpop.f32.mrf.mxu0
      %v665 = vadd.f32 0.0, %v664
      %666 = vdwg.mxu0
      %667 = vmatpush.bf16.msra.mxu0 %v541
      %668 = vmatpush.bf16.msra.mxu0 %v533
      %669 = vmatpush.bf16.msra.mxu0 %v525
      %670 = vmatpush.bf16.msra.mxu0 %v517
      %671 = vmatpush.bf16.msra.mxu0 %v509
      %672 = vmatpush.bf16.msra.mxu0 %v501
      %673 = vmatpush.bf16.msra.mxu0 %v493
      %674 = vmatpush.bf16.msra.mxu0 %v485
      %675 = vmatmul.bf16.gmra.mxu0 %v224
      %v676 = vpop.f32.mrf.mxu0
      %v677 = vadd.f32 0.0, %v676
      %v678 = vpop.f32.mrf.mxu0
      %v679 = vadd.f32 0.0, %v678
      %680 = vmatmul.bf16.gmra.mxu0 %v225
      %v681 = vpop.f32.mrf.mxu0
      %v682 = vadd.f32 0.0, %v681
      %v683 = vpop.f32.mrf.mxu0
      %v684 = vadd.f32 0.0, %v683
      %685 = vdwg.mxu0
      %686 = vmatpush.bf16.msra.mxu0 %v542
      %687 = vmatpush.bf16.msra.mxu0 %v534
      %688 = vmatpush.bf16.msra.mxu0 %v526
      %689 = vmatpush.bf16.msra.mxu0 %v518
      %690 = vmatpush.bf16.msra.mxu0 %v510
      %691 = vmatpush.bf16.msra.mxu0 %v502
      %692 = vmatpush.bf16.msra.mxu0 %v494
      %693 = vmatpush.bf16.msra.mxu0 %v486
      %694 = vmatmul.bf16.gmra.mxu0 %v224
      %v695 = vpop.f32.mrf.mxu0
      %v696 = vadd.f32 0.0, %v695
      %v697 = vpop.f32.mrf.mxu0
      %v698 = vadd.f32 0.0, %v697
      %699 = vmatmul.bf16.gmra.mxu0 %v225
      %v700 = vpop.f32.mrf.mxu0
      %v701 = vadd.f32 0.0, %v700
      %v702 = vpop.f32.mrf.mxu0
      %v703 = vadd.f32 0.0, %v702
      %704 = vdwg.mxu0
      %705 = vmatpush.bf16.msra.mxu0 %v543
      %706 = vmatpush.bf16.msra.mxu0 %v535
      %707 = vmatpush.bf16.msra.mxu0 %v527
      %708 = vmatpush.bf16.msra.mxu0 %v519
      %709 = vmatpush.bf16.msra.mxu0 %v511
      %710 = vmatpush.bf16.msra.mxu0 %v503
      %711 = vmatpush.bf16.msra.mxu0 %v495
      %712 = vmatpush.bf16.msra.mxu0 %v487
      %713 = vmatmul.bf16.gmra.mxu0 %v224
      %v714 = vpop.f32.mrf.mxu0
      %v715 = vadd.f32 0.0, %v714
      %v716 = vpop.f32.mrf.mxu0
      %v717 = vadd.f32 0.0, %v716
      %718 = vmatmul.bf16.gmra.mxu0 %v225
      %v719 = vpop.f32.mrf.mxu0
      %v720 = vadd.f32 0.0, %v719
      %v721 = vpop.f32.mrf.mxu0
      %v722 = vadd.f32 0.0, %v721
      %723 = vdwg.mxu0
      %724 = vmatpush.bf16.msra.mxu0 %v544
      %725 = vmatpush.bf16.msra.mxu0 %v536
      %726 = vmatpush.bf16.msra.mxu0 %v528
      %727 = vmatpush.bf16.msra.mxu0 %v520
      %728 = vmatpush.bf16.msra.mxu0 %v512
      %729 = vmatpush.bf16.msra.mxu0 %v504
      %730 = vmatpush.bf16.msra.mxu0 %v496
      %731 = vmatpush.bf16.msra.mxu0 %v488
      %732 = vmatmul.bf16.gmra.mxu0 %v224
      %v733 = vpop.f32.mrf.mxu0
      %v734 = vadd.f32 0.0, %v733
      %v735 = vpop.f32.mrf.mxu0
      %v736 = vadd.f32 0.0, %v735
      %737 = vmatmul.bf16.gmra.mxu0 %v225
      %v738 = vpop.f32.mrf.mxu0
      %v739 = vadd.f32 0.0, %v738
      %v740 = vpop.f32.mrf.mxu0
      %v741 = vadd.f32 0.0, %v740
      %742 = vdwg.mxu0
      %743 = vmatpush.bf16.msra.mxu0 %v545
      %744 = vmatpush.bf16.msra.mxu0 %v537
      %745 = vmatpush.bf16.msra.mxu0 %v529
      %746 = vmatpush.bf16.msra.mxu0 %v521
      %747 = vmatpush.bf16.msra.mxu0 %v513
      %748 = vmatpush.bf16.msra.mxu0 %v505
      %749 = vmatpush.bf16.msra.mxu0 %v497
      %750 = vmatpush.bf16.msra.mxu0 %v489
      %751 = vmatmul.bf16.gmra.mxu0 %v224
      %v752 = vpop.f32.mrf.mxu0
      %v753 = vadd.f32 0.0, %v752
      %v754 = vpop.f32.mrf.mxu0
      %v755 = vadd.f32 0.0, %v754
      %756 = vmatmul.bf16.gmra.mxu0 %v225
      %v757 = vpop.f32.mrf.mxu0
      %v758 = vadd.f32 0.0, %v757
      %v759 = vpop.f32.mrf.mxu0
      %v760 = vadd.f32 0.0, %v759
      %761 = vdwg.mxu0
      %v762 = vadd.f32 %v620, %v622
      %v763 = vadd.f32 %v762, %v625
      %v764 = vadd.f32 %v763, %v627
      %v765 = vrot.slane %v764, 4
      %v766 = vadd.f32 %v764, %v765
      %v767 = vrot.slane %v766, 2
      %v768 = vadd.f32 %v766, %v767
      %v769 = vrot.slane %v768, 1
      %v770 = vadd.f32 %v768, %v769
      %v771 = vadd.f32 %v639, %v641
      %v772 = vadd.f32 %v771, %v644
      %v773 = vadd.f32 %v772, %v646
      %v774 = vrot.slane %v773, 4
      %v775 = vadd.f32 %v773, %v774
      %v776 = vrot.slane %v775, 2
      %v777 = vadd.f32 %v775, %v776
      %v778 = vrot.slane %v777, 1
      %v779 = vadd.f32 %v777, %v778
      %v780 = vadd.f32 %v658, %v660
      %v781 = vadd.f32 %v780, %v663
      %v782 = vadd.f32 %v781, %v665
      %v783 = vrot.slane %v782, 4
      %v784 = vadd.f32 %v782, %v783
      %v785 = vrot.slane %v784, 2
      %v786 = vadd.f32 %v784, %v785
      %v787 = vrot.slane %v786, 1
      %v788 = vadd.f32 %v786, %v787
      %v789 = vadd.f32 %v677, %v679
      %v790 = vadd.f32 %v789, %v682
      %v791 = vadd.f32 %v790, %v684
      %v792 = vrot.slane %v791, 4
      %v793 = vadd.f32 %v791, %v792
      %v794 = vrot.slane %v793, 2
      %v795 = vadd.f32 %v793, %v794
      %v796 = vrot.slane %v795, 1
      %v797 = vadd.f32 %v795, %v796
      %v798 = vadd.f32 %v696, %v698
      %v799 = vadd.f32 %v798, %v701
      %v800 = vadd.f32 %v799, %v703
      %v801 = vrot.slane %v800, 4
      %v802 = vadd.f32 %v800, %v801
      %v803 = vrot.slane %v802, 2
      %v804 = vadd.f32 %v802, %v803
      %v805 = vrot.slane %v804, 1
      %v806 = vadd.f32 %v804, %v805
      %v807 = vadd.f32 %v715, %v717
      %v808 = vadd.f32 %v807, %v720
      %v809 = vadd.f32 %v808, %v722
      %v810 = vrot.slane %v809, 4
      %v811 = vadd.f32 %v809, %v810
      %v812 = vrot.slane %v811, 2
      %v813 = vadd.f32 %v811, %v812
      %v814 = vrot.slane %v813, 1
      %v815 = vadd.f32 %v813, %v814
      %v816 = vadd.f32 %v734, %v736
      %v817 = vadd.f32 %v816, %v739
      %v818 = vadd.f32 %v817, %v741
      %v819 = vrot.slane %v818, 4
      %v820 = vadd.f32 %v818, %v819
      %v821 = vrot.slane %v820, 2
      %v822 = vadd.f32 %v820, %v821
      %v823 = vrot.slane %v822, 1
      %v824 = vadd.f32 %v822, %v823
      %v825 = vadd.f32 %v753, %v755
      %v826 = vadd.f32 %v825, %v758
      %v827 = vadd.f32 %v826, %v760
      %v828 = vrot.slane %v827, 4
      %v829 = vadd.f32 %v827, %v828
      %v830 = vrot.slane %v829, 2
      %v831 = vadd.f32 %v829, %v830
      %v832 = vrot.slane %v831, 1
      %v833 = vadd.f32 %v831, %v832
      %v834 = vmul.f32 %v620, %v620
      %v835 = vmul.f32 %v639, %v639
      %v836 = vmul.f32 %v658, %v658
      %v837 = vmul.f32 %v677, %v677
      %v838 = vmul.f32 %v696, %v696
      %v839 = vmul.f32 %v715, %v715
      %v840 = vmul.f32 %v734, %v734
      %v841 = vmul.f32 %v753, %v753
      %v842 = vmul.f32 %v622, %v622
      %v843 = vmul.f32 %v641, %v641
      %v844 = vmul.f32 %v660, %v660
      %v845 = vmul.f32 %v679, %v679
      %v846 = vmul.f32 %v698, %v698
      %v847 = vmul.f32 %v717, %v717
      %v848 = vmul.f32 %v736, %v736
      %v849 = vmul.f32 %v755, %v755
      %v850 = vmul.f32 %v625, %v625
      %v851 = vmul.f32 %v644, %v644
      %v852 = vmul.f32 %v663, %v663
      %v853 = vmul.f32 %v682, %v682
      %v854 = vmul.f32 %v701, %v701
      %v855 = vmul.f32 %v720, %v720
      %v856 = vmul.f32 %v739, %v739
      %v857 = vmul.f32 %v758, %v758
      %v858 = vmul.f32 %v627, %v627
      %v859 = vmul.f32 %v646, %v646
      %v860 = vmul.f32 %v665, %v665
      %v861 = vmul.f32 %v684, %v684
      %v862 = vmul.f32 %v703, %v703
      %v863 = vmul.f32 %v722, %v722
      %v864 = vmul.f32 %v741, %v741
      %v865 = vmul.f32 %v760, %v760
      %v866 = vadd.f32 %v834, %v842
      %v867 = vadd.f32 %v866, %v850
      %v868 = vadd.f32 %v867, %v858
      %v869 = vrot.slane %v868, 4
      %v870 = vadd.f32 %v868, %v869
      %v871 = vrot.slane %v870, 2
      %v872 = vadd.f32 %v870, %v871
      %v873 = vrot.slane %v872, 1
      %v874 = vadd.f32 %v872, %v873
      %v875 = vadd.f32 %v835, %v843
      %v876 = vadd.f32 %v875, %v851
      %v877 = vadd.f32 %v876, %v859
      %v878 = vrot.slane %v877, 4
      %v879 = vadd.f32 %v877, %v878
      %v880 = vrot.slane %v879, 2
      %v881 = vadd.f32 %v879, %v880
      %v882 = vrot.slane %v881, 1
      %v883 = vadd.f32 %v881, %v882
      %v884 = vadd.f32 %v836, %v844
      %v885 = vadd.f32 %v884, %v852
      %v886 = vadd.f32 %v885, %v860
      %v887 = vrot.slane %v886, 4
      %v888 = vadd.f32 %v886, %v887
      %v889 = vrot.slane %v888, 2
      %v890 = vadd.f32 %v888, %v889
      %v891 = vrot.slane %v890, 1
      %v892 = vadd.f32 %v890, %v891
      %v893 = vadd.f32 %v837, %v845
      %v894 = vadd.f32 %v893, %v853
      %v895 = vadd.f32 %v894, %v861
      %v896 = vrot.slane %v895, 4
      %v897 = vadd.f32 %v895, %v896
      %v898 = vrot.slane %v897, 2
      %v899 = vadd.f32 %v897, %v898
      %v900 = vrot.slane %v899, 1
      %v901 = vadd.f32 %v899, %v900
      %v902 = vadd.f32 %v838, %v846
      %v903 = vadd.f32 %v902, %v854
      %v904 = vadd.f32 %v903, %v862
      %v905 = vrot.slane %v904, 4
      %v906 = vadd.f32 %v904, %v905
      %v907 = vrot.slane %v906, 2
      %v908 = vadd.f32 %v906, %v907
      %v909 = vrot.slane %v908, 1
      %v910 = vadd.f32 %v908, %v909
      %v911 = vadd.f32 %v839, %v847
      %v912 = vadd.f32 %v911, %v855
      %v913 = vadd.f32 %v912, %v863
      %v914 = vrot.slane %v913, 4
      %v915 = vadd.f32 %v913, %v914
      %v916 = vrot.slane %v915, 2
      %v917 = vadd.f32 %v915, %v916
      %v918 = vrot.slane %v917, 1
      %v919 = vadd.f32 %v917, %v918
      %v920 = vadd.f32 %v840, %v848
      %v921 = vadd.f32 %v920, %v856
      %v922 = vadd.f32 %v921, %v864
      %v923 = vrot.slane %v922, 4
      %v924 = vadd.f32 %v922, %v923
      %v925 = vrot.slane %v924, 2
      %v926 = vadd.f32 %v924, %v925
      %v927 = vrot.slane %v926, 1
      %v928 = vadd.f32 %v926, %v927
      %v929 = vadd.f32 %v841, %v849
      %v930 = vadd.f32 %v929, %v857
      %v931 = vadd.f32 %v930, %v865
      %v932 = vrot.slane %v931, 4
      %v933 = vadd.f32 %v931, %v932
      %v934 = vrot.slane %v933, 2
      %v935 = vadd.f32 %v933, %v934
      %v936 = vrot.slane %v935, 1
      %v937 = vadd.f32 %v935, %v936
      %v938 = vmax.f32 %v620, %v622
      %v939 = vmax.f32 %v938, %v625
      %v940 = vmax.f32 %v939, %v627
      %v941 = vrot.slane %v940, 4
      %v942 = vmax.f32 %v940, %v941
      %v943 = vrot.slane %v942, 2
      %v944 = vmax.f32 %v942, %v943
      %v945 = vrot.slane %v944, 1
      %v946 = vmax.f32 %v944, %v945
      %v947 = vmax.f32 %v639, %v641
      %v948 = vmax.f32 %v947, %v644
      %v949 = vmax.f32 %v948, %v646
      %v950 = vrot.slane %v949, 4
      %v951 = vmax.f32 %v949, %v950
      %v952 = vrot.slane %v951, 2
      %v953 = vmax.f32 %v951, %v952
      %v954 = vrot.slane %v953, 1
      %v955 = vmax.f32 %v953, %v954
      %v956 = vmax.f32 %v658, %v660
      %v957 = vmax.f32 %v956, %v663
      %v958 = vmax.f32 %v957, %v665
      %v959 = vrot.slane %v958, 4
      %v960 = vmax.f32 %v958, %v959
      %v961 = vrot.slane %v960, 2
      %v962 = vmax.f32 %v960, %v961
      %v963 = vrot.slane %v962, 1
      %v964 = vmax.f32 %v962, %v963
      %v965 = vmax.f32 %v677, %v679
      %v966 = vmax.f32 %v965, %v682
      %v967 = vmax.f32 %v966, %v684
      %v968 = vrot.slane %v967, 4
      %v969 = vmax.f32 %v967, %v968
      %v970 = vrot.slane %v969, 2
      %v971 = vmax.f32 %v969, %v970
      %v972 = vrot.slane %v971, 1
      %v973 = vmax.f32 %v971, %v972
      %v974 = vmax.f32 %v696, %v698
      %v975 = vmax.f32 %v974, %v701
      %v976 = vmax.f32 %v975, %v703
      %v977 = vrot.slane %v976, 4
      %v978 = vmax.f32 %v976, %v977
      %v979 = vrot.slane %v978, 2
      %v980 = vmax.f32 %v978, %v979
      %v981 = vrot.slane %v980, 1
      %v982 = vmax.f32 %v980, %v981
      %v983 = vmax.f32 %v715, %v717
      %v984 = vmax.f32 %v983, %v720
      %v985 = vmax.f32 %v984, %v722
      %v986 = vrot.slane %v985, 4
      %v987 = vmax.f32 %v985, %v986
      %v988 = vrot.slane %v987, 2
      %v989 = vmax.f32 %v987, %v988
      %v990 = vrot.slane %v989, 1
      %v991 = vmax.f32 %v989, %v990
      %v992 = vmax.f32 %v734, %v736
      %v993 = vmax.f32 %v992, %v739
      %v994 = vmax.f32 %v993, %v741
      %v995 = vrot.slane %v994, 4
      %v996 = vmax.f32 %v994, %v995
      %v997 = vrot.slane %v996, 2
      %v998 = vmax.f32 %v996, %v997
      %v999 = vrot.slane %v998, 1
      %v1000 = vmax.f32 %v998, %v999
      %v1001 = vmax.f32 %v753, %v755
      %v1002 = vmax.f32 %v1001, %v758
      %v1003 = vmax.f32 %v1002, %v760
      %v1004 = vrot.slane %v1003, 4
      %v1005 = vmax.f32 %v1003, %v1004
      %v1006 = vrot.slane %v1005, 2
      %v1007 = vmax.f32 %v1005, %v1006
      %v1008 = vrot.slane %v1007, 1
      %v1009 = vmax.f32 %v1007, %v1008
      %v1010 = vmin.f32 %v620, %v622
      %v1011 = vmin.f32 %v1010, %v625
      %v1012 = vmin.f32 %v1011, %v627
      %v1013 = vrot.slane %v1012, 4
      %v1014 = vmin.f32 %v1012, %v1013
      %v1015 = vrot.slane %v1014, 2
      %v1016 = vmin.f32 %v1014, %v1015
      %v1017 = vrot.slane %v1016, 1
      %v1018 = vmin.f32 %v1016, %v1017
      %v1019 = vmin.f32 %v639, %v641
      %v1020 = vmin.f32 %v1019, %v644
      %v1021 = vmin.f32 %v1020, %v646
      %v1022 = vrot.slane %v1021, 4
      %v1023 = vmin.f32 %v1021, %v1022
      %v1024 = vrot.slane %v1023, 2
      %v1025 = vmin.f32 %v1023, %v1024
      %v1026 = vrot.slane %v1025, 1
      %v1027 = vmin.f32 %v1025, %v1026
      %v1028 = vmin.f32 %v658, %v660
      %v1029 = vmin.f32 %v1028, %v663
      %v1030 = vmin.f32 %v1029, %v665
      %v1031 = vrot.slane %v1030, 4
      %v1032 = vmin.f32 %v1030, %v1031
      %v1033 = vrot.slane %v1032, 2
      %v1034 = vmin.f32 %v1032, %v1033
      %v1035 = vrot.slane %v1034, 1
      %v1036 = vmin.f32 %v1034, %v1035
      %v1037 = vmin.f32 %v677, %v679
      %v1038 = vmin.f32 %v1037, %v682
      %v1039 = vmin.f32 %v1038, %v684
      %v1040 = vrot.slane %v1039, 4
      %v1041 = vmin.f32 %v1039, %v1040
      %v1042 = vrot.slane %v1041, 2
      %v1043 = vmin.f32 %v1041, %v1042
      %v1044 = vrot.slane %v1043, 1
      %v1045 = vmin.f32 %v1043, %v1044
      %v1046 = vmin.f32 %v696, %v698
      %v1047 = vmin.f32 %v1046, %v701
      %v1048 = vmin.f32 %v1047, %v703
      %v1049 = vrot.slane %v1048, 4
      %v1050 = vmin.f32 %v1048, %v1049
      %v1051 = vrot.slane %v1050, 2
      %v1052 = vmin.f32 %v1050, %v1051
      %v1053 = vrot.slane %v1052, 1
      %v1054 = vmin.f32 %v1052, %v1053
      %v1055 = vmin.f32 %v715, %v717
      %v1056 = vmin.f32 %v1055, %v720
      %v1057 = vmin.f32 %v1056, %v722
      %v1058 = vrot.slane %v1057, 4
      %v1059 = vmin.f32 %v1057, %v1058
      %v1060 = vrot.slane %v1059, 2
      %v1061 = vmin.f32 %v1059, %v1060
      %v1062 = vrot.slane %v1061, 1
      %v1063 = vmin.f32 %v1061, %v1062
      %v1064 = vmin.f32 %v734, %v736
      %v1065 = vmin.f32 %v1064, %v739
      %v1066 = vmin.f32 %v1065, %v741
      %v1067 = vrot.slane %v1066, 4
      %v1068 = vmin.f32 %v1066, %v1067
      %v1069 = vrot.slane %v1068, 2
      %v1070 = vmin.f32 %v1068, %v1069
      %v1071 = vrot.slane %v1070, 1
      %v1072 = vmin.f32 %v1070, %v1071
      %v1073 = vmin.f32 %v753, %v755
      %v1074 = vmin.f32 %v1073, %v758
      %v1075 = vmin.f32 %v1074, %v760
      %v1076 = vrot.slane %v1075, 4
      %v1077 = vmin.f32 %v1075, %v1076
      %v1078 = vrot.slane %v1077, 2
      %v1079 = vmin.f32 %v1077, %v1078
      %v1080 = vrot.slane %v1079, 1
      %v1081 = vmin.f32 %v1079, %v1080
      %vm1082 = vcmask 1040384
      %v1083 = vsel %vm1082, %v770, %v874
      %v1084 = vsel %vm1082, %v779, %v883
      %v1085 = vsel %vm1082, %v788, %v892
      %v1086 = vsel %vm1082, %v797, %v901
      %v1087 = vsel %vm1082, %v806, %v910
      %v1088 = vsel %vm1082, %v815, %v919
      %v1089 = vsel %vm1082, %v824, %v928
      %v1090 = vsel %vm1082, %v833, %v937
      %vm1091 = vcmask 1041408
      %v1092 = vsel %vm1091, %v1083, %v946
      %v1093 = vsel %vm1091, %v1084, %v955
      %v1094 = vsel %vm1091, %v1085, %v964
      %v1095 = vsel %vm1091, %v1086, %v973
      %v1096 = vsel %vm1091, %v1087, %v982
      %v1097 = vsel %vm1091, %v1088, %v991
      %v1098 = vsel %vm1091, %v1089, %v1000
      %v1099 = vsel %vm1091, %v1090, %v1009
      %vm1100 = vcmask 1042432
      %v1101 = vsel %vm1100, %v1092, %v1018
      %v1102 = vsel %vm1100, %v1093, %v1027
      %v1103 = vsel %vm1100, %v1094, %v1036
      %v1104 = vsel %vm1100, %v1095, %v1045
      %v1105 = vsel %vm1100, %v1096, %v1054
      %v1106 = vsel %vm1100, %v1097, %v1063
      %v1107 = vsel %vm1100, %v1098, %v1072
      %v1108 = vsel %vm1100, %v1099, %v1081
      %vm1109 = vcmask 1043456
      %v1110 = vsel %vm1109, %v1101, 0.0
      %v1111 = vsel %vm1109, %v1102, 0.0
      %v1112 = vsel %vm1109, %v1103, 0.0
      %v1113 = vsel %vm1109, %v1104, 0.0
      %v1114 = vsel %vm1109, %v1105, 0.0
      %v1115 = vsel %vm1109, %v1106, 0.0
      %v1116 = vsel %vm1109, %v1107, 0.0
      %v1117 = vsel %vm1109, %v1108, 0.0
      %1118 = vst [vmem:[%s199] sm:$0xff] %v1110
      %1119 = vst [vmem:[%s199 + $0x8] sm:$0xff] %v1111
      %1120 = vst [vmem:[%s199 + $0x10] sm:$0xff] %v1112
      %1121 = vst [vmem:[%s199 + $0x18] sm:$0xff] %v1113
      %1122 = vst [vmem:[%s199 + $0x20] sm:$0xff] %v1114
      %1123 = vst [vmem:[%s199 + $0x28] sm:$0xff] %v1115
      %1124 = vst [vmem:[%s199 + $0x30] sm:$0xff] %v1116
      %1125 = vst [vmem:[%s199 + $0x38] sm:$0xff] %v1117
      %p1126 = scmp.lt.s32.totalorder %s15, 7
      %s1127 = scalar_select %p1126, %s15, 7
      %s1128 = smul.addr %s1127, 8
      %s1129 = smul.addr %s1128, 8
      %s1130 = scalar_lea.vmem %s4, %s1129
      // Predicated region
      $region37: #{tnet_forward.4} parent=35 // pred_check
        %p1131 = pneg %p122
      $region38: #{tnet_forward.4} parent=35 // pred_check_branch
        %1133 = sbr.rel (%p1131) target = $region40
      $region39: #{tnet_forward.4} parent=35 // pred_region
        _
      $region40: #{tnet_forward.4} parent=35 // pred_fallthru
        _
    $region36: #{tnet_forward.4} parent=5 // pred_fallthru
      _
    %p1134 = scmp.le.s32.totalorder 2, %s10
    // Predicated region
    $region41: #{tnet_forward.4} parent=5 // pred_check
      %p1135 = pneg %p1134
    $region42: #{tnet_forward.4} parent=5 // pred_check_branch
      %1137 = sbr.rel (%p1135) target = $region44
    $region43: #{tnet_forward.4} parent=5 // pred_region
      %s1138 = ssub.s32 %s10, 2
      // Predicated region
      $region45: #{tnet_forward.4} parent=43 // pred_check
        %p1139 = pneg %p128
      $region46: #{tnet_forward.4} parent=43 // pred_check_branch
        %1141 = sbr.rel (%p1139) target = $region48
      $region47: #{tnet_forward.4} parent=43 // pred_region
        %p1142 = scmp.lt.s32.totalorder %s16, 7
        %s1143 = scalar_select %p1142, %s16, 7
        %s1144 = smul.addr %s1143, 8
        %s1145 = smul.addr %s1144, 8
        %s1146 = scalar_lea.vmem %s4, %s1145
      $region48: #{tnet_forward.4} parent=43 // pred_fallthru
        _
    $region44: #{tnet_forward.4} parent=5 // pred_fallthru
      _
  $region6: #{tnet_forward.4} parent=0 // loop_footer
    %s14 = sadd.s32 1, %s10
  $region7: #{tnet_forward.4} parent=0 // loop_footer_branch
    %9 = sbr.rel target = $region3
  $region8: #{tnet_forward.4} parent=0 // loop_exit
    _

// kernel: tnet_forward.5
$region0: #{tnet_forward.5}
  #allocation0 [shape = 'u32[]', space=smem, size = 0x4, offset = 0x4, fixed_abs, tag = 'smem constant byte address 0x4 - core index']
  #allocation1 [shape = 'u32[72,128]{1,0:T(1,128)}', space=vmem, size = 0x9000, scoped, tag = 'internal scratch']
  %s0 = inlined_call_operand.vmem [shape: f32[4,1024], index: 0, kind: input, shape index: {}]
  %s1 = inlined_call_operand.vmem [shape: bf16[1024,512], index: 1, kind: input, shape index: {}]
  %s2 = inlined_call_operand.vmem [shape: f32[1,512], index: 2, kind: input, shape index: {}]
  %s3 = inlined_call_operand.vmem [shape: f32[1,512], index: 3, kind: input, shape index: {}]
  %s4 = inlined_call_operand.vmem [shape: bf16[512,256], index: 4, kind: input, shape index: {}]
  %s5 = inlined_call_operand.vmem [shape: f32[1,256], index: 5, kind: input, shape index: {}]
  %s6 = inlined_call_operand.vmem [shape: f32[1,256], index: 6, kind: input, shape index: {}]
  %s7 = inlined_call_operand.vmem [shape: bf16[256,128], index: 7, kind: input, shape index: {}]
  %s8 = inlined_call_operand.vmem [shape: f32[4,128], index: 8, kind: output, shape index: {}]
  %s9 = sld [smem:[#allocation0]]
  $region42: #{tnet_forward.5} parent=0
    _
  %s11 = ssub.s32 1, %s9
  %s12 = scalar_select 0, %s11, %s9
  // Predicated region
  $region2: #{tnet_forward.5} parent=0 // pred_check
    _
  $region3: #{tnet_forward.5} parent=0 // pred_check_branch
    %14 = sbr.rel (0) target = $region5
  $region4: #{tnet_forward.5} parent=0 // pred_region
    _
  $region5: #{tnet_forward.5} parent=0 // pred_fallthru
    _
  // Predicated region
  $region6: #{tnet_forward.5} parent=0 // pred_check
    _
  $region7: #{tnet_forward.5} parent=0 // pred_check_branch
    %16 = sbr.rel (0) target = $region9
  $region8: #{tnet_forward.5} parent=0 // pred_region
    _
  $region9: #{tnet_forward.5} parent=0 // pred_fallthru
    _
  // Predicated region
  $region10: #{tnet_forward.5} parent=0 // pred_check
    _
  $region11: #{tnet_forward.5} parent=0 // pred_check_branch
    %18 = sbr.rel (0) target = $region13
  $region12: #{tnet_forward.5} parent=0 // pred_region
    _
  $region13: #{tnet_forward.5} parent=0 // pred_fallthru
    _
  // Predicated region
  $region14: #{tnet_forward.5} parent=0 // pred_check
    _
  $region15: #{tnet_forward.5} parent=0 // pred_check_branch
    %20 = sbr.rel (0) target = $region17
  $region16: #{tnet_forward.5} parent=0 // pred_region
    _
  $region17: #{tnet_forward.5} parent=0 // pred_fallthru
    _
  // Predicated region
  $region18: #{tnet_forward.5} parent=0 // pred_check
    _
  $region19: #{tnet_forward.5} parent=0 // pred_check_branch
    %22 = sbr.rel (0) target = $region21
  $region20: #{tnet_forward.5} parent=0 // pred_region
    _
  $region21: #{tnet_forward.5} parent=0 // pred_fallthru
    _
  // Predicated region
  $region22: #{tnet_forward.5} parent=0 // pred_check
    _
  $region23: #{tnet_forward.5} parent=0 // pred_check_branch
    %24 = sbr.rel (0) target = $region25
  $region24: #{tnet_forward.5} parent=0 // pred_region
    _
  $region25: #{tnet_forward.5} parent=0 // pred_fallthru
    _
  // Predicated region
  $region26: #{tnet_forward.5} parent=0 // pred_check
    _
  $region27: #{tnet_forward.5} parent=0 // pred_check_branch
    %26 = sbr.rel (0) target = $region29
  $region28: #{tnet_forward.5} parent=0 // pred_region
    _
  $region29: #{tnet_forward.5} parent=0 // pred_fallthru
    _
  // Predicated region
  $region30: #{tnet_forward.5} parent=0 // pred_check
    _
  $region31: #{tnet_forward.5} parent=0 // pred_check_branch
    %28 = sbr.rel (0) target = $region33
  $region32: #{tnet_forward.5} parent=0 // pred_region
    _
  $region33: #{tnet_forward.5} parent=0 // pred_fallthru
    _
  %v29 = vld [vmem:[%s0] sm:$0xff]
  %v30 = vld [vmem:[%s0 + $0x8] sm:$0xff]
  %v31 = vld [vmem:[%s0 + $0x10] sm:$0xff]
  %v32 = vld [vmem:[%s0 + $0x18] sm:$0xff]
  %37 = vst [vmem:[#allocation1] ss:$2 sm:$0xff] %v29
  %s38 = scalar_lea.vmem [#allocation1], 16
  %39 = vst [vmem:[%s38] ss:$2 sm:$0xff] %v30
  %s40 = scalar_lea.vmem [#allocation1], 32
  %41 = vst [vmem:[%s40] ss:$2 sm:$0xff] %v31
  %s42 = scalar_lea.vmem [#allocation1], 48
  %43 = vst [vmem:[%s42] ss:$2 sm:$0xff] %v32
  %v44 = vld.sshfl [vmem:[#allocation1] sm:$0xff pattern:$0x75316420]
  %v45 = vld.sshfl [vmem:[#allocation1 + $0x8] sm:$0xff pattern:$0x75316420]
  %v46 = vld.sshfl [vmem:[#allocation1 + $0x10] sm:$0xff pattern:$0x75316420]
  %v47 = vld.sshfl [vmem:[#allocation1 + $0x18] sm:$0xff pattern:$0x75316420]
  %v48 = vld.sshfl [vmem:[#allocation1 + $0x20] sm:$0xff pattern:$0x75316420]
  %v49 = vld.sshfl [vmem:[#allocation1 + $0x28] sm:$0xff pattern:$0x75316420]
  %v50 = vld.sshfl [vmem:[#allocation1 + $0x30] sm:$0xff pattern:$0x75316420]
  %v51 = vld.sshfl [vmem:[#allocation1 + $0x38] sm:$0xff pattern:$0x75316420]
  %v60 = vpack.c.bf16 %v44, %v44
  %v61 = vpack.c.bf16 %v45, %v45
  %v62 = vpack.c.bf16 %v46, %v46
  %v63 = vpack.c.bf16 %v47, %v47
  %v64 = vpack.c.bf16 %v48, %v48
  %v65 = vpack.c.bf16 %v49, %v49
  %v66 = vpack.c.bf16 %v50, %v50
  %v67 = vpack.c.bf16 %v51, %v51
  %v68 = vld [vmem:[%s1] sm:$0xff]
  %v69 = vld [vmem:[%s1 + $0x8] sm:$0xff]
  %v70 = vld [vmem:[%s1 + $0x10] sm:$0xff]
  %v71 = vld [vmem:[%s1 + $0x18] sm:$0xff]
  %v72 = vld [vmem:[%s1 + $0x20] sm:$0xff]
  %v73 = vld [vmem:[%s1 + $0x28] sm:$0xff]
  %v74 = vld [vmem:[%s1 + $0x30] sm:$0xff]
  %v75 = vld [vmem:[%s1 + $0x38] sm:$0xff]
  %v76 = vld [vmem:[%s1 + $0x40] sm:$0xff]
  %v77 = vld [vmem:[%s1 + $0x48] sm:$0xff]
  %v78 = vld [vmem:[%s1 + $0x50] sm:$0xff]
  %v79 = vld [vmem:[%s1 + $0x58] sm:$0xff]
  %v80 = vld [vmem:[%s1 + $0x60] sm:$0xff]
  %v81 = vld [vmem:[%s1 + $0x68] sm:$0xff]
  %v82 = vld [vmem:[%s1 + $0x70] sm:$0xff]
  %v83 = vld [vmem:[%s1 + $0x78] sm:$0xff]
  %v84 = vld [vmem:[%s1 + $0x80] sm:$0xff]
  %v85 = vld [vmem:[%s1 + $0x88] sm:$0xff]
  %v86 = vld [vmem:[%s1 + $0x90] sm:$0xff]
  %v87 = vld [vmem:[%s1 + $0x98] sm:$0xff]
  %v88 = vld [vmem:[%s1 + $0xa0] sm:$0xff]
  %v89 = vld [vmem:[%s1 + $0xa8] sm:$0xff]
  %v90 = vld [vmem:[%s1 + $0xb0] sm:$0xff]
  %v91 = vld [vmem:[%s1 + $0xb8] sm:$0xff]
  %v92 = vld [vmem:[%s1 + $0xc0] sm:$0xff]
  %v93 = vld [vmem:[%s1 + $0xc8] sm:$0xff]
  %v94 = vld [vmem:[%s1 + $0xd0] sm:$0xff]
  %v95 = vld [vmem:[%s1 + $0xd8] sm:$0xff]
  %v96 = vld [vmem:[%s1 + $0xe0] sm:$0xff]
  %v97 = vld [vmem:[%s1 + $0xe8] sm:$0xff]
  %v98 = vld [vmem:[%s1 + $0xf0] sm:$0xff]
  %v99 = vld [vmem:[%s1 + $0xf8] sm:$0xff]
  %v100 = vld [vmem:[%s1 + $0x100] sm:$0xff]
  %v101 = vld [vmem:[%s1 + $0x108] sm:$0xff]
  %v102 = vld [vmem:[%s1 + $0x110] sm:$0xff]
  %v103 = vld [vmem:[%s1 + $0x118] sm:$0xff]
  %v104 = vld [vmem:[%s1 + $0x120] sm:$0xff]
  %v105 = vld [vmem:[%s1 + $0x128] sm:$0xff]
  %v106 = vld [vmem:[%s1 + $0x130] sm:$0xff]
  %v107 = vld [vmem:[%s1 + $0x138] sm:$0xff]
  %v108 = vld [vmem:[%s1 + $0x140] sm:$0xff]
  %v109 = vld [vmem:[%s1 + $0x148] sm:$0xff]
  %v110 = vld [vmem:[%s1 + $0x150] sm:$0xff]
  %v111 = vld [vmem:[%s1 + $0x158] sm:$0xff]
  %v112 = vld [vmem:[%s1 + $0x160] sm:$0xff]
  %v113 = vld [vmem:[%s1 + $0x168] sm:$0xff]
  %v114 = vld [vmem:[%s1 + $0x170] sm:$0xff]
  %v115 = vld [vmem:[%s1 + $0x178] sm:$0xff]
  %v116 = vld [vmem:[%s1 + $0x180] sm:$0xff]
  %v117 = vld [vmem:[%s1 + $0x188] sm:$0xff]
  %v118 = vld [vmem:[%s1 + $0x190] sm:$0xff]
  %v119 = vld [vmem:[%s1 + $0x198] sm:$0xff]
  %v120 = vld [vmem:[%s1 + $0x1a0] sm:$0xff]
  %v121 = vld [vmem:[%s1 + $0x1a8] sm:$0xff]
  %v122 = vld [vmem:[%s1 + $0x1b0] sm:$0xff]
  %v123 = vld [vmem:[%s1 + $0x1b8] sm:$0xff]
  %v124 = vld [vmem:[%s1 + $0x1c0] sm:$0xff]
  %v125 = vld [vmem:[%s1 + $0x1c8] sm:$0xff]
  %v126 = vld [vmem:[%s1 + $0x1d0] sm:$0xff]
  %v127 = vld [vmem:[%s1 + $0x1d8] sm:$0xff]
  %v128 = vld [vmem:[%s1 + $0x1e0] sm:$0xff]
  %v129 = vld [vmem:[%s1 + $0x1e8] sm:$0xff]
  %v130 = vld [vmem:[%s1 + $0x1f0] sm:$0xff]
  %v131 = vld [vmem:[%s1 + $0x1f8] sm:$0xff]
  %v132 = vld [vmem:[%s1 + $0x200] sm:$0xff]
  %v133 = vld [vmem:[%s1 + $0x208] sm:$0xff]
  %v134 = vld [vmem:[%s1 + $0x210] sm:$0xff]
  %v135 = vld [vmem:[%s1 + $0x218] sm:$0xff]
  %v136 = vld [vmem:[%s1 + $0x220] sm:$0xff]
  %v137 = vld [vmem:[%s1 + $0x228] sm:$0xff]
  %v138 = vld [vmem:[%s1 + $0x230] sm:$0xff]
  %v139 = vld [vmem:[%s1 + $0x238] sm:$0xff]
  %v140 = vld [vmem:[%s1 + $0x240] sm:$0xff]
  %v141 = vld [vmem:[%s1 + $0x248] sm:$0xff]
  %v142 = vld [vmem:[%s1 + $0x250] sm:$0xff]
  %v143 = vld [vmem:[%s1 + $0x258] sm:$0xff]
  %v144 = vld [vmem:[%s1 + $0x260] sm:$0xff]
  %v145 = vld [vmem:[%s1 + $0x268] sm:$0xff]
  %v146 = vld [vmem:[%s1 + $0x270] sm:$0xff]
  %v147 = vld [vmem:[%s1 + $0x278] sm:$0xff]
  %v148 = vld [vmem:[%s1 + $0x280] sm:$0xff]
  %v149 = vld [vmem:[%s1 + $0x288] sm:$0xff]
  %v150 = vld [vmem:[%s1 + $0x290] sm:$0xff]
  %v151 = vld [vmem:[%s1 + $0x298] sm:$0xff]
  %v152 = vld [vmem:[%s1 + $0x2a0] sm:$0xff]
  %v153 = vld [vmem:[%s1 + $0x2a8] sm:$0xff]
  %v154 = vld [vmem:[%s1 + $0x2b0] sm:$0xff]
  %v155 = vld [vmem:[%s1 + $0x2b8] sm:$0xff]
  %v156 = vld [vmem:[%s1 + $0x2c0] sm:$0xff]
  %v157 = vld [vmem:[%s1 + $0x2c8] sm:$0xff]
  %v158 = vld [vmem:[%s1 + $0x2d0] sm:$0xff]
  %v159 = vld [vmem:[%s1 + $0x2d8] sm:$0xff]
  %v160 = vld [vmem:[%s1 + $0x2e0] sm:$0xff]
  %v161 = vld [vmem:[%s1 + $0x2e8] sm:$0xff]
  %v162 = vld [vmem:[%s1 + $0x2f0] sm:$0xff]
  %v163 = vld [vmem:[%s1 + $0x2f8] sm:$0xff]
  %v164 = vld [vmem:[%s1 + $0x300] sm:$0xff]
  %v165 = vld [vmem:[%s1 + $0x308] sm:$0xff]
  %v166 = vld [vmem:[%s1 + $0x310] sm:$0xff]
  %v167 = vld [vmem:[%s1 + $0x318] sm:$0xff]
  %v168 = vld [vmem:[%s1 + $0x320] sm:$0xff]
  %v169 = vld [vmem:[%s1 + $0x328] sm:$0xff]
  %v170 = vld [vmem:[%s1 + $0x330] sm:$0xff]
  %v171 = vld [vmem:[%s1 + $0x338] sm:$0xff]
  %v172 = vld [vmem:[%s1 + $0x340] sm:$0xff]
  %v173 = vld [vmem:[%s1 + $0x348] sm:$0xff]
  %v174 = vld [vmem:[%s1 + $0x350] sm:$0xff]
  %v175 = vld [vmem:[%s1 + $0x358] sm:$0xff]
  %v176 = vld [vmem:[%s1 + $0x360] sm:$0xff]
  %v177 = vld [vmem:[%s1 + $0x368] sm:$0xff]
  %v178 = vld [vmem:[%s1 + $0x370] sm:$0xff]
  %v179 = vld [vmem:[%s1 + $0x378] sm:$0xff]
  %v180 = vld [vmem:[%s1 + $0x380] sm:$0xff]
  %v181 = vld [vmem:[%s1 + $0x388] sm:$0xff]
  %v182 = vld [vmem:[%s1 + $0x390] sm:$0xff]
  %v183 = vld [vmem:[%s1 + $0x398] sm:$0xff]
  %v184 = vld [vmem:[%s1 + $0x3a0] sm:$0xff]
  %v185 = vld [vmem:[%s1 + $0x3a8] sm:$0xff]
  %v186 = vld [vmem:[%s1 + $0x3b0] sm:$0xff]
  %v187 = vld [vmem:[%s1 + $0x3b8] sm:$0xff]
  %v188 = vld [vmem:[%s1 + $0x3c0] sm:$0xff]
  %v189 = vld [vmem:[%s1 + $0x3c8] sm:$0xff]
  %v190 = vld [vmem:[%s1 + $0x3d0] sm:$0xff]
  %v191 = vld [vmem:[%s1 + $0x3d8] sm:$0xff]
  %v192 = vld [vmem:[%s1 + $0x3e0] sm:$0xff]
  %v193 = vld [vmem:[%s1 + $0x3e8] sm:$0xff]
  %v194 = vld [vmem:[%s1 + $0x3f0] sm:$0xff]
  %v195 = vld [vmem:[%s1 + $0x3f8] sm:$0xff]
  %v196 = vld [vmem:[%s1 + $0x400] sm:$0xff]
  %v197 = vld [vmem:[%s1 + $0x408] sm:$0xff]
  %v198 = vld [vmem:[%s1 + $0x410] sm:$0xff]
  %v199 = vld [vmem:[%s1 + $0x418] sm:$0xff]
  %v200 = vld [vmem:[%s1 + $0x420] sm:$0xff]
  %v201 = vld [vmem:[%s1 + $0x428] sm:$0xff]
  %v202 = vld [vmem:[%s1 + $0x430] sm:$0xff]
  %v203 = vld [vmem:[%s1 + $0x438] sm:$0xff]
  %v204 = vld [vmem:[%s1 + $0x440] sm:$0xff]
  %v205 = vld [vmem:[%s1 + $0x448] sm:$0xff]
  %v206 = vld [vmem:[%s1 + $0x450] sm:$0xff]
  %v207 = vld [vmem:[%s1 + $0x458] sm:$0xff]
  %v208 = vld [vmem:[%s1 + $0x460] sm:$0xff]
  %v209 = vld [vmem:[%s1 + $0x468] sm:$0xff]
  %v210 = vld [vmem:[%s1 + $0x470] sm:$0xff]
  %v211 = vld [vmem:[%s1 + $0x478] sm:$0xff]
  %v212 = vld [vmem:[%s1 + $0x480] sm:$0xff]
  %v213 = vld [vmem:[%s1 + $0x488] sm:$0xff]
  %v214 = vld [vmem:[%s1 + $0x490] sm:$0xff]
  %v215 = vld [vmem:[%s1 + $0x498] sm:$0xff]
  %v216 = vld [vmem:[%s1 + $0x4a0] sm:$0xff]
  %v217 = vld [vmem:[%s1 + $0x4a8] sm:$0xff]
  %v218 = vld [vmem:[%s1 + $0x4b0] sm:$0xff]
  %v219 = vld [vmem:[%s1 + $0x4b8] sm:$0xff]
  %v220 = vld [vmem:[%s1 + $0x4c0] sm:$0xff]
  %v221 = vld [vmem:[%s1 + $0x4c8] sm:$0xff]
  %v222 = vld [vmem:[%s1 + $0x4d0] sm:$0xff]
  %v223 = vld [vmem:[%s1 + $0x4d8] sm:$0xff]
  %v224 = vld [vmem:[%s1 + $0x4e0] sm:$0xff]
  %v225 = vld [vmem:[%s1 + $0x4e8] sm:$0xff]
  %v226 = vld [vmem:[%s1 + $0x4f0] sm:$0xff]
  %v227 = vld [vmem:[%s1 + $0x4f8] sm:$0xff]
  %v228 = vld [vmem:[%s1 + $0x500] sm:$0xff]
  %v229 = vld [vmem:[%s1 + $0x508] sm:$0xff]
  %v230 = vld [vmem:[%s1 + $0x510] sm:$0xff]
  %v231 = vld [vmem:[%s1 + $0x518] sm:$0xff]
  %v232 = vld [vmem:[%s1 + $0x520] sm:$0xff]
  %v233 = vld [vmem:[%s1 + $0x528] sm:$0xff]
  %v234 = vld [vmem:[%s1 + $0x530] sm:$0xff]
  %v235 = vld [vmem:[%s1 + $0x538] sm:$0xff]
  %v236 = vld [vmem:[%s1 + $0x540] sm:$0xff]
  %v237 = vld [vmem:[%s1 + $0x548] sm:$0xff]
  %v238 = vld [vmem:[%s1 + $0x550] sm:$0xff]
  %v239 = vld [vmem:[%s1 + $0x558] sm:$0xff]
  %v240 = vld [vmem:[%s1 + $0x560] sm:$0xff]
  %v241 = vld [vmem:[%s1 + $0x568] sm:$0xff]
  %v242 = vld [vmem:[%s1 + $0x570] sm:$0xff]
  %v243 = vld [vmem:[%s1 + $0x578] sm:$0xff]
  %v244 = vld [vmem:[%s1 + $0x580] sm:$0xff]
  %v245 = vld [vmem:[%s1 + $0x588] sm:$0xff]
  %v246 = vld [vmem:[%s1 + $0x590] sm:$0xff]
  %v247 = vld [vmem:[%s1 + $0x598] sm:$0xff]
  %v248 = vld [vmem:[%s1 + $0x5a0] sm:$0xff]
  %v249 = vld [vmem:[%s1 + $0x5a8] sm:$0xff]
  %v250 = vld [vmem:[%s1 + $0x5b0] sm:$0xff]
  %v251 = vld [vmem:[%s1 + $0x5b8] sm:$0xff]
  %v252 = vld [vmem:[%s1 + $0x5c0] sm:$0xff]
  %v253 = vld [vmem:[%s1 + $0x5c8] sm:$0xff]
  %v254 = vld [vmem:[%s1 + $0x5d0] sm:$0xff]
  %v255 = vld [vmem:[%s1 + $0x5d8] sm:$0xff]
  %v256 = vld [vmem:[%s1 + $0x5e0] sm:$0xff]
  %v257 = vld [vmem:[%s1 + $0x5e8] sm:$0xff]
  %v258 = vld [vmem:[%s1 + $0x5f0] sm:$0xff]
  %v259 = vld [vmem:[%s1 + $0x5f8] sm:$0xff]
  %v260 = vld [vmem:[%s1 + $0x600] sm:$0xff]
  %v261 = vld [vmem:[%s1 + $0x608] sm:$0xff]
  %v262 = vld [vmem:[%s1 + $0x610] sm:$0xff]
  %v263 = vld [vmem:[%s1 + $0x618] sm:$0xff]
  %v264 = vld [vmem:[%s1 + $0x620] sm:$0xff]
  %v265 = vld [vmem:[%s1 + $0x628] sm:$0xff]
  %v266 = vld [vmem:[%s1 + $0x630] sm:$0xff]
  %v267 = vld [vmem:[%s1 + $0x638] sm:$0xff]
  %v268 = vld [vmem:[%s1 + $0x640] sm:$0xff]
  %v269 = vld [vmem:[%s1 + $0x648] sm:$0xff]
  %v270 = vld [vmem:[%s1 + $0x650] sm:$0xff]
  %v271 = vld [vmem:[%s1 + $0x658] sm:$0xff]
  %v272 = vld [vmem:[%s1 + $0x660] sm:$0xff]
  %v273 = vld [vmem:[%s1 + $0x668] sm:$0xff]
  %v274 = vld [vmem:[%s1 + $0x670] sm:$0xff]
  %v275 = vld [vmem:[%s1 + $0x678] sm:$0xff]
  %v276 = vld [vmem:[%s1 + $0x680] sm:$0xff]
  %v277 = vld [vmem:[%s1 + $0x688] sm:$0xff]
  %v278 = vld [vmem:[%s1 + $0x690] sm:$0xff]
  %v279 = vld [vmem:[%s1 + $0x698] sm:$0xff]
  %v280 = vld [vmem:[%s1 + $0x6a0] sm:$0xff]
  %v281 = vld [vmem:[%s1 + $0x6a8] sm:$0xff]
  %v282 = vld [vmem:[%s1 + $0x6b0] sm:$0xff]
  %v283 = vld [vmem:[%s1 + $0x6b8] sm:$0xff]
  %v284 = vld [vmem:[%s1 + $0x6c0] sm:$0xff]
  %v285 = vld [vmem:[%s1 + $0x6c8] sm:$0xff]
  %v286 = vld [vmem:[%s1 + $0x6d0] sm:$0xff]
  %v287 = vld [vmem:[%s1 + $0x6d8] sm:$0xff]
  %v288 = vld [vmem:[%s1 + $0x6e0] sm:$0xff]
  %v289 = vld [vmem:[%s1 + $0x6e8] sm:$0xff]
  %v290 = vld [vmem:[%s1 + $0x6f0] sm:$0xff]
  %v291 = vld [vmem:[%s1 + $0x6f8] sm:$0xff]
  %v292 = vld [vmem:[%s1 + $0x700] sm:$0xff]
  %v293 = vld [vmem:[%s1 + $0x708] sm:$0xff]
  %v294 = vld [vmem:[%s1 + $0x710] sm:$0xff]
  %v295 = vld [vmem:[%s1 + $0x718] sm:$0xff]
  %v296 = vld [vmem:[%s1 + $0x720] sm:$0xff]
  %v297 = vld [vmem:[%s1 + $0x728] sm:$0xff]
  %v298 = vld [vmem:[%s1 + $0x730] sm:$0xff]
  %v299 = vld [vmem:[%s1 + $0x738] sm:$0xff]
  %v300 = vld [vmem:[%s1 + $0x740] sm:$0xff]
  %v301 = vld [vmem:[%s1 + $0x748] sm:$0xff]
  %v302 = vld [vmem:[%s1 + $0x750] sm:$0xff]
  %v303 = vld [vmem:[%s1 + $0x758] sm:$0xff]
  %v304 = vld [vmem:[%s1 + $0x760] sm:$0xff]
  %v305 = vld [vmem:[%s1 + $0x768] sm:$0xff]
  %v306 = vld [vmem:[%s1 + $0x770] sm:$0xff]
  %v307 = vld [vmem:[%s1 + $0x778] sm:$0xff]
  %v308 = vld [vmem:[%s1 + $0x780] sm:$0xff]
  %v309 = vld [vmem:[%s1 + $0x788] sm:$0xff]
  %v310 = vld [vmem:[%s1 + $0x790] sm:$0xff]
  %v311 = vld [vmem:[%s1 + $0x798] sm:$0xff]
  %v312 = vld [vmem:[%s1 + $0x7a0] sm:$0xff]
  %v313 = vld [vmem:[%s1 + $0x7a8] sm:$0xff]
  %v314 = vld [vmem:[%s1 + $0x7b0] sm:$0xff]
  %v315 = vld [vmem:[%s1 + $0x7b8] sm:$0xff]
  %v316 = vld [vmem:[%s1 + $0x7c0] sm:$0xff]
  %v317 = vld [vmem:[%s1 + $0x7c8] sm:$0xff]
  %v318 = vld [vmem:[%s1 + $0x7d0] sm:$0xff]
  %v319 = vld [vmem:[%s1 + $0x7d8] sm:$0xff]
  %v320 = vld [vmem:[%s1 + $0x7e0] sm:$0xff]
  %v321 = vld [vmem:[%s1 + $0x7e8] sm:$0xff]
  %v322 = vld [vmem:[%s1 + $0x7f0] sm:$0xff]
  %v323 = vld [vmem:[%s1 + $0x7f8] sm:$0xff]
  %v580 = vunpack.c.l.b16 %v68
  %v581 = vunpack.c.h.b16 %v68
  %v582 = vunpack.c.l.b16 %v69
  %v583 = vunpack.c.h.b16 %v69
  %v584 = vunpack.c.l.b16 %v70
  %v585 = vunpack.c.h.b16 %v70
  %v586 = vunpack.c.l.b16 %v71
  %v587 = vunpack.c.h.b16 %v71
  %v588 = vunpack.c.l.b16 %v72
  %v589 = vunpack.c.h.b16 %v72
  %v590 = vunpack.c.l.b16 %v73
  %v591 = vunpack.c.h.b16 %v73
  %v592 = vunpack.c.l.b16 %v74
  %v593 = vunpack.c.h.b16 %v74
  %v594 = vunpack.c.l.b16 %v75
  %v595 = vunpack.c.h.b16 %v75
  %v596 = vunpack.c.l.b16 %v76
  %v597 = vunpack.c.h.b16 %v76
  %v598 = vunpack.c.l.b16 %v77
  %v599 = vunpack.c.h.b16 %v77
  %v600 = vunpack.c.l.b16 %v78
  %v601 = vunpack.c.h.b16 %v78
  %v602 = vunpack.c.l.b16 %v79
  %v603 = vunpack.c.h.b16 %v79
  %v604 = vunpack.c.l.b16 %v80
  %v605 = vunpack.c.h.b16 %v80
  %v606 = vunpack.c.l.b16 %v81
  %v607 = vunpack.c.h.b16 %v81
  %v608 = vunpack.c.l.b16 %v82
  %v609 = vunpack.c.h.b16 %v82
  %v610 = vunpack.c.l.b16 %v83
  %v611 = vunpack.c.h.b16 %v83
  %v612 = vunpack.c.l.b16 %v84
  %v613 = vunpack.c.h.b16 %v84
  %v614 = vunpack.c.l.b16 %v85
  %v615 = vunpack.c.h.b16 %v85
  %v616 = vunpack.c.l.b16 %v86
  %v617 = vunpack.c.h.b16 %v86
  %v618 = vunpack.c.l.b16 %v87
  %v619 = vunpack.c.h.b16 %v87
  %v620 = vunpack.c.l.b16 %v88
  %v621 = vunpack.c.h.b16 %v88
  %v622 = vunpack.c.l.b16 %v89
  %v623 = vunpack.c.h.b16 %v89
  %v624 = vunpack.c.l.b16 %v90
  %v625 = vunpack.c.h.b16 %v90
  %v626 = vunpack.c.l.b16 %v91
  %v627 = vunpack.c.h.b16 %v91
  %v628 = vunpack.c.l.b16 %v92
  %v629 = vunpack.c.h.b16 %v92
  %v630 = vunpack.c.l.b16 %v93
  %v631 = vunpack.c.h.b16 %v93
  %v632 = vunpack.c.l.b16 %v94
  %v633 = vunpack.c.h.b16 %v94
  %v634 = vunpack.c.l.b16 %v95
  %v635 = vunpack.c.h.b16 %v95
  %v636 = vunpack.c.l.b16 %v96
  %v637 = vunpack.c.h.b16 %v96
  %v638 = vunpack.c.l.b16 %v97
  %v639 = vunpack.c.h.b16 %v97
  %v640 = vunpack.c.l.b16 %v98
  %v641 = vunpack.c.h.b16 %v98
  %v642 = vunpack.c.l.b16 %v99
  %v643 = vunpack.c.h.b16 %v99
  %v644 = vunpack.c.l.b16 %v100
  %v645 = vunpack.c.h.b16 %v100
  %v646 = vunpack.c.l.b16 %v101
  %v647 = vunpack.c.h.b16 %v101
  %v648 = vunpack.c.l.b16 %v102
  %v649 = vunpack.c.h.b16 %v102
  %v650 = vunpack.c.l.b16 %v103
  %v651 = vunpack.c.h.b16 %v103
  %v652 = vunpack.c.l.b16 %v104
  %v653 = vunpack.c.h.b16 %v104
  %v654 = vunpack.c.l.b16 %v105
  %v655 = vunpack.c.h.b16 %v105
  %v656 = vunpack.c.l.b16 %v106
  %v657 = vunpack.c.h.b16 %v106
  %v658 = vunpack.c.l.b16 %v107
  %v659 = vunpack.c.h.b16 %v107
  %v660 = vunpack.c.l.b16 %v108
  %v661 = vunpack.c.h.b16 %v108
  %v662 = vunpack.c.l.b16 %v109
  %v663 = vunpack.c.h.b16 %v109
  %v664 = vunpack.c.l.b16 %v110
  %v665 = vunpack.c.h.b16 %v110
  %v666 = vunpack.c.l.b16 %v111
  %v667 = vunpack.c.h.b16 %v111
  %v668 = vunpack.c.l.b16 %v112
  %v669 = vunpack.c.h.b16 %v112
  %v670 = vunpack.c.l.b16 %v113
  %v671 = vunpack.c.h.b16 %v113
  %v672 = vunpack.c.l.b16 %v114
  %v673 = vunpack.c.h.b16 %v114
  %v674 = vunpack.c.l.b16 %v115
  %v675 = vunpack.c.h.b16 %v115
  %v676 = vunpack.c.l.b16 %v116
  %v677 = vunpack.c.h.b16 %v116
  %v678 = vunpack.c.l.b16 %v117
  %v679 = vunpack.c.h.b16 %v117
  %v680 = vunpack.c.l.b16 %v118
  %v681 = vunpack.c.h.b16 %v118
  %v682 = vunpack.c.l.b16 %v119
  %v683 = vunpack.c.h.b16 %v119
  %v684 = vunpack.c.l.b16 %v120
  %v685 = vunpack.c.h.b16 %v120
  %v686 = vunpack.c.l.b16 %v121
  %v687 = vunpack.c.h.b16 %v121
  %v688 = vunpack.c.l.b16 %v122
  %v689 = vunpack.c.h.b16 %v122
  %v690 = vunpack.c.l.b16 %v123
  %v691 = vunpack.c.h.b16 %v123
  %v692 = vunpack.c.l.b16 %v124
  %v693 = vunpack.c.h.b16 %v124
  %v694 = vunpack.c.l.b16 %v125
  %v695 = vunpack.c.h.b16 %v125
  %v696 = vunpack.c.l.b16 %v126
  %v697 = vunpack.c.h.b16 %v126
  %v698 = vunpack.c.l.b16 %v127
  %v699 = vunpack.c.h.b16 %v127
  %v700 = vunpack.c.l.b16 %v128
  %v701 = vunpack.c.h.b16 %v128
  %v702 = vunpack.c.l.b16 %v129
  %v703 = vunpack.c.h.b16 %v129
  %v704 = vunpack.c.l.b16 %v130
  %v705 = vunpack.c.h.b16 %v130
  %v706 = vunpack.c.l.b16 %v131
  %v707 = vunpack.c.h.b16 %v131
  %v708 = vunpack.c.l.b16 %v132
  %v709 = vunpack.c.h.b16 %v132
  %v710 = vunpack.c.l.b16 %v133
  %v711 = vunpack.c.h.b16 %v133
  %v712 = vunpack.c.l.b16 %v134
  %v713 = vunpack.c.h.b16 %v134
  %v714 = vunpack.c.l.b16 %v135
  %v715 = vunpack.c.h.b16 %v135
  %v716 = vunpack.c.l.b16 %v136
  %v717 = vunpack.c.h.b16 %v136
  %v718 = vunpack.c.l.b16 %v137
  %v719 = vunpack.c.h.b16 %v137
  %v720 = vunpack.c.l.b16 %v138
  %v721 = vunpack.c.h.b16 %v138
  %v722 = vunpack.c.l.b16 %v139
  %v723 = vunpack.c.h.b16 %v139
  %v724 = vunpack.c.l.b16 %v140
  %v725 = vunpack.c.h.b16 %v140
  %v726 = vunpack.c.l.b16 %v141
  %v727 = vunpack.c.h.b16 %v141
  %v728 = vunpack.c.l.b16 %v142
  %v729 = vunpack.c.h.b16 %v142
  %v730 = vunpack.c.l.b16 %v143
  %v731 = vunpack.c.h.b16 %v143
  %v732 = vunpack.c.l.b16 %v144
  %v733 = vunpack.c.h.b16 %v144
  %v734 = vunpack.c.l.b16 %v145
  %v735 = vunpack.c.h.b16 %v145
  %v736 = vunpack.c.l.b16 %v146
  %v737 = vunpack.c.h.b16 %v146
  %v738 = vunpack.c.l.b16 %v147
  %v739 = vunpack.c.h.b16 %v147
  %v740 = vunpack.c.l.b16 %v148
  %v741 = vunpack.c.h.b16 %v148
  %v742 = vunpack.c.l.b16 %v149
  %v743 = vunpack.c.h.b16 %v149
  %v744 = vunpack.c.l.b16 %v150
  %v745 = vunpack.c.h.b16 %v150
  %v746 = vunpack.c.l.b16 %v151
  %v747 = vunpack.c.h.b16 %v151
  %v748 = vunpack.c.l.b16 %v152
  %v749 = vunpack.c.h.b16 %v152
  %v750 = vunpack.c.l.b16 %v153
  %v751 = vunpack.c.h.b16 %v153
  %v752 = vunpack.c.l.b16 %v154
  %v753 = vunpack.c.h.b16 %v154
  %v754 = vunpack.c.l.b16 %v155
  %v755 = vunpack.c.h.b16 %v155
  %v756 = vunpack.c.l.b16 %v156
  %v757 = vunpack.c.h.b16 %v156
  %v758 = vunpack.c.l.b16 %v157
  %v759 = vunpack.c.h.b16 %v157
  %v760 = vunpack.c.l.b16 %v158
  %v761 = vunpack.c.h.b16 %v158
  %v762 = vunpack.c.l.b16 %v159
  %v763 = vunpack.c.h.b16 %v159
  %v764 = vunpack.c.l.b16 %v160
  %v765 = vunpack.c.h.b16 %v160
  %v766 = vunpack.c.l.b16 %v161
  %v767 = vunpack.c.h.b16 %v161
  %v768 = vunpack.c.l.b16 %v162
  %v769 = vunpack.c.h.b16 %v162
  %v770 = vunpack.c.l.b16 %v163
  %v771 = vunpack.c.h.b16 %v163
  %v772 = vunpack.c.l.b16 %v164
  %v773 = vunpack.c.h.b16 %v164
  %v774 = vunpack.c.l.b16 %v165
  %v775 = vunpack.c.h.b16 %v165
  %v776 = vunpack.c.l.b16 %v166
  %v777 = vunpack.c.h.b16 %v166
  %v778 = vunpack.c.l.b16 %v167
  %v779 = vunpack.c.h.b16 %v167
  %v780 = vunpack.c.l.b16 %v168
  %v781 = vunpack.c.h.b16 %v168
  %v782 = vunpack.c.l.b16 %v169
  %v783 = vunpack.c.h.b16 %v169
  %v784 = vunpack.c.l.b16 %v170
  %v785 = vunpack.c.h.b16 %v170
  %v786 = vunpack.c.l.b16 %v171
  %v787 = vunpack.c.h.b16 %v171
  %v788 = vunpack.c.l.b16 %v172
  %v789 = vunpack.c.h.b16 %v172
  %v790 = vunpack.c.l.b16 %v173
  %v791 = vunpack.c.h.b16 %v173
  %v792 = vunpack.c.l.b16 %v174
  %v793 = vunpack.c.h.b16 %v174
  %v794 = vunpack.c.l.b16 %v175
  %v795 = vunpack.c.h.b16 %v175
  %v796 = vunpack.c.l.b16 %v176
  %v797 = vunpack.c.h.b16 %v176
  %v798 = vunpack.c.l.b16 %v177
  %v799 = vunpack.c.h.b16 %v177
  %v800 = vunpack.c.l.b16 %v178
  %v801 = vunpack.c.h.b16 %v178
  %v802 = vunpack.c.l.b16 %v179
  %v803 = vunpack.c.h.b16 %v179
  %v804 = vunpack.c.l.b16 %v180
  %v805 = vunpack.c.h.b16 %v180
  %v806 = vunpack.c.l.b16 %v181
  %v807 = vunpack.c.h.b16 %v181
  %v808 = vunpack.c.l.b16 %v182
  %v809 = vunpack.c.h.b16 %v182
  %v810 = vunpack.c.l.b16 %v183
  %v811 = vunpack.c.h.b16 %v183
  %v812 = vunpack.c.l.b16 %v184
  %v813 = vunpack.c.h.b16 %v184
  %v814 = vunpack.c.l.b16 %v185
  %v815 = vunpack.c.h.b16 %v185
  %v816 = vunpack.c.l.b16 %v186
  %v817 = vunpack.c.h.b16 %v186
  %v818 = vunpack.c.l.b16 %v187
  %v819 = vunpack.c.h.b16 %v187
  %v820 = vunpack.c.l.b16 %v188
  %v821 = vunpack.c.h.b16 %v188
  %v822 = vunpack.c.l.b16 %v189
  %v823 = vunpack.c.h.b16 %v189
  %v824 = vunpack.c.l.b16 %v190
  %v825 = vunpack.c.h.b16 %v190
  %v826 = vunpack.c.l.b16 %v191
  %v827 = vunpack.c.h.b16 %v191
  %v828 = vunpack.c.l.b16 %v192
  %v829 = vunpack.c.h.b16 %v192
  %v830 = vunpack.c.l.b16 %v193
  %v831 = vunpack.c.h.b16 %v193
  %v832 = vunpack.c.l.b16 %v194
  %v833 = vunpack.c.h.b16 %v194
  %v834 = vunpack.c.l.b16 %v195
  %v835 = vunpack.c.h.b16 %v195
  %v836 = vunpack.c.l.b16 %v196
  %v837 = vunpack.c.h.b16 %v196
  %v838 = vunpack.c.l.b16 %v197
  %v839 = vunpack.c.h.b16 %v197
  %v840 = vunpack.c.l.b16 %v198
  %v841 = vunpack.c.h.b16 %v198
  %v842 = vunpack.c.l.b16 %v199
  %v843 = vunpack.c.h.b16 %v199
  %v844 = vunpack.c.l.b16 %v200
  %v845 = vunpack.c.h.b16 %v200
  %v846 = vunpack.c.l.b16 %v201
  %v847 = vunpack.c.h.b16 %v201
  %v848 = vunpack.c.l.b16 %v202
  %v849 = vunpack.c.h.b16 %v202
  %v850 = vunpack.c.l.b16 %v203
  %v851 = vunpack.c.h.b16 %v203
  %v852 = vunpack.c.l.b16 %v204
  %v853 = vunpack.c.h.b16 %v204
  %v854 = vunpack.c.l.b16 %v205
  %v855 = vunpack.c.h.b16 %v205
  %v856 = vunpack.c.l.b16 %v206
  %v857 = vunpack.c.h.b16 %v206
  %v858 = vunpack.c.l.b16 %v207
  %v859 = vunpack.c.h.b16 %v207
  %v860 = vunpack.c.l.b16 %v208
  %v861 = vunpack.c.h.b16 %v208
  %v862 = vunpack.c.l.b16 %v209
  %v863 = vunpack.c.h.b16 %v209
  %v864 = vunpack.c.l.b16 %v210
  %v865 = vunpack.c.h.b16 %v210
  %v866 = vunpack.c.l.b16 %v211
  %v867 = vunpack.c.h.b16 %v211
  %v868 = vunpack.c.l.b16 %v212
  %v869 = vunpack.c.h.b16 %v212
  %v870 = vunpack.c.l.b16 %v213
  %v871 = vunpack.c.h.b16 %v213
  %v872 = vunpack.c.l.b16 %v214
  %v873 = vunpack.c.h.b16 %v214
  %v874 = vunpack.c.l.b16 %v215
  %v875 = vunpack.c.h.b16 %v215
  %v876 = vunpack.c.l.b16 %v216
  %v877 = vunpack.c.h.b16 %v216
  %v878 = vunpack.c.l.b16 %v217
  %v879 = vunpack.c.h.b16 %v217
  %v880 = vunpack.c.l.b16 %v218
  %v881 = vunpack.c.h.b16 %v218
  %v882 = vunpack.c.l.b16 %v219
  %v883 = vunpack.c.h.b16 %v219
  %v884 = vunpack.c.l.b16 %v220
  %v885 = vunpack.c.h.b16 %v220
  %v886 = vunpack.c.l.b16 %v221
  %v887 = vunpack.c.h.b16 %v221
  %v888 = vunpack.c.l.b16 %v222
  %v889 = vunpack.c.h.b16 %v222
  %v890 = vunpack.c.l.b16 %v223
  %v891 = vunpack.c.h.b16 %v223
  %v892 = vunpack.c.l.b16 %v224
  %v893 = vunpack.c.h.b16 %v224
  %v894 = vunpack.c.l.b16 %v225
  %v895 = vunpack.c.h.b16 %v225
  %v896 = vunpack.c.l.b16 %v226
  %v897 = vunpack.c.h.b16 %v226
  %v898 = vunpack.c.l.b16 %v227
  %v899 = vunpack.c.h.b16 %v227
  %v900 = vunpack.c.l.b16 %v228
  %v901 = vunpack.c.h.b16 %v228
  %v902 = vunpack.c.l.b16 %v229
  %v903 = vunpack.c.h.b16 %v229
  %v904 = vunpack.c.l.b16 %v230
  %v905 = vunpack.c.h.b16 %v230
  %v906 = vunpack.c.l.b16 %v231
  %v907 = vunpack.c.h.b16 %v231
  %v908 = vunpack.c.l.b16 %v232
  %v909 = vunpack.c.h.b16 %v232
  %v910 = vunpack.c.l.b16 %v233
  %v911 = vunpack.c.h.b16 %v233
  %v912 = vunpack.c.l.b16 %v234
  %v913 = vunpack.c.h.b16 %v234
  %v914 = vunpack.c.l.b16 %v235
  %v915 = vunpack.c.h.b16 %v235
  %v916 = vunpack.c.l.b16 %v236
  %v917 = vunpack.c.h.b16 %v236
  %v918 = vunpack.c.l.b16 %v237
  %v919 = vunpack.c.h.b16 %v237
  %v920 = vunpack.c.l.b16 %v238
  %v921 = vunpack.c.h.b16 %v238
  %v922 = vunpack.c.l.b16 %v239
  %v923 = vunpack.c.h.b16 %v239
  %v924 = vunpack.c.l.b16 %v240
  %v925 = vunpack.c.h.b16 %v240
  %v926 = vunpack.c.l.b16 %v241
  %v927 = vunpack.c.h.b16 %v241
  %v928 = vunpack.c.l.b16 %v242
  %v929 = vunpack.c.h.b16 %v242
  %v930 = vunpack.c.l.b16 %v243
  %v931 = vunpack.c.h.b16 %v243
  %v932 = vunpack.c.l.b16 %v244
  %v933 = vunpack.c.h.b16 %v244
  %v934 = vunpack.c.l.b16 %v245
  %v935 = vunpack.c.h.b16 %v245
  %v936 = vunpack.c.l.b16 %v246
  %v937 = vunpack.c.h.b16 %v246
  %v938 = vunpack.c.l.b16 %v247
  %v939 = vunpack.c.h.b16 %v247
  %v940 = vunpack.c.l.b16 %v248
  %v941 = vunpack.c.h.b16 %v248
  %v942 = vunpack.c.l.b16 %v249
  %v943 = vunpack.c.h.b16 %v249
  %v944 = vunpack.c.l.b16 %v250
  %v945 = vunpack.c.h.b16 %v250
  %v946 = vunpack.c.l.b16 %v251
  %v947 = vunpack.c.h.b16 %v251
  %v948 = vunpack.c.l.b16 %v252
  %v949 = vunpack.c.h.b16 %v252
  %v950 = vunpack.c.l.b16 %v253
  %v951 = vunpack.c.h.b16 %v253
  %v952 = vunpack.c.l.b16 %v254
  %v953 = vunpack.c.h.b16 %v254
  %v954 = vunpack.c.l.b16 %v255
  %v955 = vunpack.c.h.b16 %v255
  %v956 = vunpack.c.l.b16 %v256
  %v957 = vunpack.c.h.b16 %v256
  %v958 = vunpack.c.l.b16 %v257
  %v959 = vunpack.c.h.b16 %v257
  %v960 = vunpack.c.l.b16 %v258
  %v961 = vunpack.c.h.b16 %v258
  %v962 = vunpack.c.l.b16 %v259
  %v963 = vunpack.c.h.b16 %v259
  %v964 = vunpack.c.l.b16 %v260
  %v965 = vunpack.c.h.b16 %v260
  %v966 = vunpack.c.l.b16 %v261
  %v967 = vunpack.c.h.b16 %v261
  %v968 = vunpack.c.l.b16 %v262
  %v969 = vunpack.c.h.b16 %v262
  %v970 = vunpack.c.l.b16 %v263
  %v971 = vunpack.c.h.b16 %v263
  %v972 = vunpack.c.l.b16 %v264
  %v973 = vunpack.c.h.b16 %v264
  %v974 = vunpack.c.l.b16 %v265
  %v975 = vunpack.c.h.b16 %v265
  %v976 = vunpack.c.l.b16 %v266
  %v977 = vunpack.c.h.b16 %v266
  %v978 = vunpack.c.l.b16 %v267
  %v979 = vunpack.c.h.b16 %v267
  %v980 = vunpack.c.l.b16 %v268
  %v981 = vunpack.c.h.b16 %v268
  %v982 = vunpack.c.l.b16 %v269
  %v983 = vunpack.c.h.b16 %v269
  %v984 = vunpack.c.l.b16 %v270
  %v985 = vunpack.c.h.b16 %v270
  %v986 = vunpack.c.l.b16 %v271
  %v987 = vunpack.c.h.b16 %v271
  %v988 = vunpack.c.l.b16 %v272
  %v989 = vunpack.c.h.b16 %v272
  %v990 = vunpack.c.l.b16 %v273
  %v991 = vunpack.c.h.b16 %v273
  %v992 = vunpack.c.l.b16 %v274
  %v993 = vunpack.c.h.b16 %v274
  %v994 = vunpack.c.l.b16 %v275
  %v995 = vunpack.c.h.b16 %v275
  %v996 = vunpack.c.l.b16 %v276
  %v997 = vunpack.c.h.b16 %v276
  %v998 = vunpack.c.l.b16 %v277
  %v999 = vunpack.c.h.b16 %v277
  %v1000 = vunpack.c.l.b16 %v278
  %v1001 = vunpack.c.h.b16 %v278
  %v1002 = vunpack.c.l.b16 %v279
  %v1003 = vunpack.c.h.b16 %v279
  %v1004 = vunpack.c.l.b16 %v280
  %v1005 = vunpack.c.h.b16 %v280
  %v1006 = vunpack.c.l.b16 %v281
  %v1007 = vunpack.c.h.b16 %v281
  %v1008 = vunpack.c.l.b16 %v282
  %v1009 = vunpack.c.h.b16 %v282
  %v1010 = vunpack.c.l.b16 %v283
  %v1011 = vunpack.c.h.b16 %v283
  %v1012 = vunpack.c.l.b16 %v284
  %v1013 = vunpack.c.h.b16 %v284
  %v1014 = vunpack.c.l.b16 %v285
  %v1015 = vunpack.c.h.b16 %v285
  %v1016 = vunpack.c.l.b16 %v286
  %v1017 = vunpack.c.h.b16 %v286
  %v1018 = vunpack.c.l.b16 %v287
  %v1019 = vunpack.c.h.b16 %v287
  %v1020 = vunpack.c.l.b16 %v288
  %v1021 = vunpack.c.h.b16 %v288
  %v1022 = vunpack.c.l.b16 %v289
  %v1023 = vunpack.c.h.b16 %v289
  %v1024 = vunpack.c.l.b16 %v290
  %v1025 = vunpack.c.h.b16 %v290
  %v1026 = vunpack.c.l.b16 %v291
  %v1027 = vunpack.c.h.b16 %v291
  %v1028 = vunpack.c.l.b16 %v292
  %v1029 = vunpack.c.h.b16 %v292
  %v1030 = vunpack.c.l.b16 %v293
  %v1031 = vunpack.c.h.b16 %v293
  %v1032 = vunpack.c.l.b16 %v294
  %v1033 = vunpack.c.h.b16 %v294
  %v1034 = vunpack.c.l.b16 %v295
  %v1035 = vunpack.c.h.b16 %v295
  %v1036 = vunpack.c.l.b16 %v296
  %v1037 = vunpack.c.h.b16 %v296
  %v1038 = vunpack.c.l.b16 %v297
  %v1039 = vunpack.c.h.b16 %v297
  %v1040 = vunpack.c.l.b16 %v298
  %v1041 = vunpack.c.h.b16 %v298
  %v1042 = vunpack.c.l.b16 %v299
  %v1043 = vunpack.c.h.b16 %v299
  %v1044 = vunpack.c.l.b16 %v300
  %v1045 = vunpack.c.h.b16 %v300
  %v1046 = vunpack.c.l.b16 %v301
  %v1047 = vunpack.c.h.b16 %v301
  %v1048 = vunpack.c.l.b16 %v302
  %v1049 = vunpack.c.h.b16 %v302
  %v1050 = vunpack.c.l.b16 %v303
  %v1051 = vunpack.c.h.b16 %v303
  %v1052 = vunpack.c.l.b16 %v304
  %v1053 = vunpack.c.h.b16 %v304
  %v1054 = vunpack.c.l.b16 %v305
  %v1055 = vunpack.c.h.b16 %v305
  %v1056 = vunpack.c.l.b16 %v306
  %v1057 = vunpack.c.h.b16 %v306
  %v1058 = vunpack.c.l.b16 %v307
  %v1059 = vunpack.c.h.b16 %v307
  %v1060 = vunpack.c.l.b16 %v308
  %v1061 = vunpack.c.h.b16 %v308
  %v1062 = vunpack.c.l.b16 %v309
  %v1063 = vunpack.c.h.b16 %v309
  %v1064 = vunpack.c.l.b16 %v310
  %v1065 = vunpack.c.h.b16 %v310
  %v1066 = vunpack.c.l.b16 %v311
  %v1067 = vunpack.c.h.b16 %v311
  %v1068 = vunpack.c.l.b16 %v312
  %v1069 = vunpack.c.h.b16 %v312
  %v1070 = vunpack.c.l.b16 %v313
  %v1071 = vunpack.c.h.b16 %v313
  %v1072 = vunpack.c.l.b16 %v314
  %v1073 = vunpack.c.h.b16 %v314
  %v1074 = vunpack.c.l.b16 %v315
  %v1075 = vunpack.c.h.b16 %v315
  %v1076 = vunpack.c.l.b16 %v316
  %v1077 = vunpack.c.h.b16 %v316
  %v1078 = vunpack.c.l.b16 %v317
  %v1079 = vunpack.c.h.b16 %v317
  %v1080 = vunpack.c.l.b16 %v318
  %v1081 = vunpack.c.h.b16 %v318
  %v1082 = vunpack.c.l.b16 %v319
  %v1083 = vunpack.c.h.b16 %v319
  %v1084 = vunpack.c.l.b16 %v320
  %v1085 = vunpack.c.h.b16 %v320
  %v1086 = vunpack.c.l.b16 %v321
  %v1087 = vunpack.c.h.b16 %v321
  %v1088 = vunpack.c.l.b16 %v322
  %v1089 = vunpack.c.h.b16 %v322
  %v1090 = vunpack.c.l.b16 %v323
  %v1091 = vunpack.c.h.b16 %v323
  %v1092 = vpack.c.b16 %v584, %v580
  %v1093 = vpack.c.b16 %v585, %v581
  %v1094 = vpack.c.b16 %v586, %v582
  %v1095 = vpack.c.b16 %v587, %v583
  %v1096 = vpack.c.b16 %v592, %v588
  %v1097 = vpack.c.b16 %v593, %v589
  %v1098 = vpack.c.b16 %v594, %v590
  %v1099 = vpack.c.b16 %v595, %v591
  %v1100 = vpack.c.b16 %v600, %v596
  %v1101 = vpack.c.b16 %v601, %v597
  %v1102 = vpack.c.b16 %v602, %v598
  %v1103 = vpack.c.b16 %v603, %v599
  %v1104 = vpack.c.b16 %v608, %v604
  %v1105 = vpack.c.b16 %v609, %v605
  %v1106 = vpack.c.b16 %v610, %v606
  %v1107 = vpack.c.b16 %v611, %v607
  %v1108 = vpack.c.b16 %v616, %v612
  %v1109 = vpack.c.b16 %v617, %v613
  %v1110 = vpack.c.b16 %v618, %v614
  %v1111 = vpack.c.b16 %v619, %v615
  %v1112 = vpack.c.b16 %v624, %v620
  %v1113 = vpack.c.b16 %v625, %v621
  %v1114 = vpack.c.b16 %v626, %v622
  %v1115 = vpack.c.b16 %v627, %v623
  %v1116 = vpack.c.b16 %v632, %v628
  %v1117 = vpack.c.b16 %v633, %v629
  %v1118 = vpack.c.b16 %v634, %v630
  %v1119 = vpack.c.b16 %v635, %v631
  %v1120 = vpack.c.b16 %v640, %v636
  %v1121 = vpack.c.b16 %v641, %v637
  %v1122 = vpack.c.b16 %v642, %v638
  %v1123 = vpack.c.b16 %v643, %v639
  %v1124 = vpack.c.b16 %v648, %v644
  %v1125 = vpack.c.b16 %v649, %v645
  %v1126 = vpack.c.b16 %v650, %v646
  %v1127 = vpack.c.b16 %v651, %v647
  %v1128 = vpack.c.b16 %v656, %v652
  %v1129 = vpack.c.b16 %v657, %v653
  %v1130 = vpack.c.b16 %v658, %v654
  %v1131 = vpack.c.b16 %v659, %v655
  %v1132 = vpack.c.b16 %v664, %v660
  %v1133 = vpack.c.b16 %v665, %v661
  %v1134 = vpack.c.b16 %v666, %v662
  %v1135 = vpack.c.b16 %v667, %v663
  %v1136 = vpack.c.b16 %v672, %v668
  %v1137 = vpack.c.b16 %v673, %v669
  %v1138 = vpack.c.b16 %v674, %v670
  %v1139 = vpack.c.b16 %v675, %v671
  %v1140 = vpack.c.b16 %v680, %v676
  %v1141 = vpack.c.b16 %v681, %v677
  %v1142 = vpack.c.b16 %v682, %v678
  %v1143 = vpack.c.b16 %v683, %v679
  %v1144 = vpack.c.b16 %v688, %v684
  %v1145 = vpack.c.b16 %v689, %v685
  %v1146 = vpack.c.b16 %v690, %v686
  %v1147 = vpack.c.b16 %v691, %v687
  %v1148 = vpack.c.b16 %v696, %v692
  %v1149 = vpack.c.b16 %v697, %v693
  %v1150 = vpack.c.b16 %v698, %v694
  %v1151 = vpack.c.b16 %v699, %v695
  %v1152 = vpack.c.b16 %v704, %v700
  %v1153 = vpack.c.b16 %v705, %v701
  %v1154 = vpack.c.b16 %v706, %v702
  %v1155 = vpack.c.b16 %v707, %v703
  %v1156 = vpack.c.b16 %v712, %v708
  %v1157 = vpack.c.b16 %v713, %v709
  %v1158 = vpack.c.b16 %v714, %v710
  %v1159 = vpack.c.b16 %v715, %v711
  %v1160 = vpack.c.b16 %v720, %v716
  %v1161 = vpack.c.b16 %v721, %v717
  %v1162 = vpack.c.b16 %v722, %v718
  %v1163 = vpack.c.b16 %v723, %v719
  %v1164 = vpack.c.b16 %v728, %v724
  %v1165 = vpack.c.b16 %v729, %v725
  %v1166 = vpack.c.b16 %v730, %v726
  %v1167 = vpack.c.b16 %v731, %v727
  %v1168 = vpack.c.b16 %v736, %v732
  %v1169 = vpack.c.b16 %v737, %v733
  %v1170 = vpack.c.b16 %v738, %v734
  %v1171 = vpack.c.b16 %v739, %v735
  %v1172 = vpack.c.b16 %v744, %v740
  %v1173 = vpack.c.b16 %v745, %v741
  %v1174 = vpack.c.b16 %v746, %v742
  %v1175 = vpack.c.b16 %v747, %v743
  %v1176 = vpack.c.b16 %v752, %v748
  %v1177 = vpack.c.b16 %v753, %v749
  %v1178 = vpack.c.b16 %v754, %v750
  %v1179 = vpack.c.b16 %v755, %v751
  %v1180 = vpack.c.b16 %v760, %v756
  %v1181 = vpack.c.b16 %v761, %v757
  %v1182 = vpack.c.b16 %v762, %v758
  %v1183 = vpack.c.b16 %v763, %v759
  %v1184 = vpack.c.b16 %v768, %v764
  %v1185 = vpack.c.b16 %v769, %v765
  %v1186 = vpack.c.b16 %v770, %v766
  %v1187 = vpack.c.b16 %v771, %v767
  %v1188 = vpack.c.b16 %v776, %v772
  %v1189 = vpack.c.b16 %v777, %v773
  %v1190 = vpack.c.b16 %v778, %v774
  %v1191 = vpack.c.b16 %v779, %v775
  %v1192 = vpack.c.b16 %v784, %v780
  %v1193 = vpack.c.b16 %v785, %v781
  %v1194 = vpack.c.b16 %v786, %v782
  %v1195 = vpack.c.b16 %v787, %v783
  %v1196 = vpack.c.b16 %v792, %v788
  %v1197 = vpack.c.b16 %v793, %v789
  %v1198 = vpack.c.b16 %v794, %v790
  %v1199 = vpack.c.b16 %v795, %v791
  %v1200 = vpack.c.b16 %v800, %v796
  %v1201 = vpack.c.b16 %v801, %v797
  %v1202 = vpack.c.b16 %v802, %v798
  %v1203 = vpack.c.b16 %v803, %v799
  %v1204 = vpack.c.b16 %v808, %v804
  %v1205 = vpack.c.b16 %v809, %v805
  %v1206 = vpack.c.b16 %v810, %v806
  %v1207 = vpack.c.b16 %v811, %v807
  %v1208 = vpack.c.b16 %v816, %v812
  %v1209 = vpack.c.b16 %v817, %v813
  %v1210 = vpack.c.b16 %v818, %v814
  %v1211 = vpack.c.b16 %v819, %v815
  %v1212 = vpack.c.b16 %v824, %v820
  %v1213 = vpack.c.b16 %v825, %v821
  %v1214 = vpack.c.b16 %v826, %v822
  %v1215 = vpack.c.b16 %v827, %v823
  %v1216 = vpack.c.b16 %v832, %v828
  %v1217 = vpack.c.b16 %v833, %v829
  %v1218 = vpack.c.b16 %v834, %v830
  %v1219 = vpack.c.b16 %v835, %v831
  %v1220 = vpack.c.b16 %v840, %v836
  %v1221 = vpack.c.b16 %v841, %v837
  %v1222 = vpack.c.b16 %v842, %v838
  %v1223 = vpack.c.b16 %v843, %v839
  %v1224 = vpack.c.b16 %v848, %v844
  %v1225 = vpack.c.b16 %v849, %v845
  %v1226 = vpack.c.b16 %v850, %v846
  %v1227 = vpack.c.b16 %v851, %v847
  %v1228 = vpack.c.b16 %v856, %v852
  %v1229 = vpack.c.b16 %v857, %v853
  %v1230 = vpack.c.b16 %v858, %v854
  %v1231 = vpack.c.b16 %v859, %v855
  %v1232 = vpack.c.b16 %v864, %v860
  %v1233 = vpack.c.b16 %v865, %v861
  %v1234 = vpack.c.b16 %v866, %v862
  %v1235 = vpack.c.b16 %v867, %v863
  %v1236 = vpack.c.b16 %v872, %v868
  %v1237 = vpack.c.b16 %v873, %v869
  %v1238 = vpack.c.b16 %v874, %v870
  %v1239 = vpack.c.b16 %v875, %v871
  %v1240 = vpack.c.b16 %v880, %v876
  %v1241 = vpack.c.b16 %v881, %v877
  %v1242 = vpack.c.b16 %v882, %v878
  %v1243 = vpack.c.b16 %v883, %v879
  %v1244 = vpack.c.b16 %v888, %v884
  %v1245 = vpack.c.b16 %v889, %v885
  %v1246 = vpack.c.b16 %v890, %v886
  %v1247 = vpack.c.b16 %v891, %v887
  %v1248 = vpack.c.b16 %v896, %v892
  %v1249 = vpack.c.b16 %v897, %v893
  %v1250 = vpack.c.b16 %v898, %v894
  %v1251 = vpack.c.b16 %v899, %v895
  %v1252 = vpack.c.b16 %v904, %v900
  %v1253 = vpack.c.b16 %v905, %v901
  %v1254 = vpack.c.b16 %v906, %v902
  %v1255 = vpack.c.b16 %v907, %v903
  %v1256 = vpack.c.b16 %v912, %v908
  %v1257 = vpack.c.b16 %v913, %v909
  %v1258 = vpack.c.b16 %v914, %v910
  %v1259 = vpack.c.b16 %v915, %v911
  %v1260 = vpack.c.b16 %v920, %v916
  %v1261 = vpack.c.b16 %v921, %v917
  %v1262 = vpack.c.b16 %v922, %v918
  %v1263 = vpack.c.b16 %v923, %v919
  %v1264 = vpack.c.b16 %v928, %v924
  %v1265 = vpack.c.b16 %v929, %v925
  %v1266 = vpack.c.b16 %v930, %v926
  %v1267 = vpack.c.b16 %v931, %v927
  %v1268 = vpack.c.b16 %v936, %v932
  %v1269 = vpack.c.b16 %v937, %v933
  %v1270 = vpack.c.b16 %v938, %v934
  %v1271 = vpack.c.b16 %v939, %v935
  %v1272 = vpack.c.b16 %v944, %v940
  %v1273 = vpack.c.b16 %v945, %v941
  %v1274 = vpack.c.b16 %v946, %v942
  %v1275 = vpack.c.b16 %v947, %v943
  %v1276 = vpack.c.b16 %v952, %v948
  %v1277 = vpack.c.b16 %v953, %v949
  %v1278 = vpack.c.b16 %v954, %v950
  %v1279 = vpack.c.b16 %v955, %v951
  %v1280 = vpack.c.b16 %v960, %v956
  %v1281 = vpack.c.b16 %v961, %v957
  %v1282 = vpack.c.b16 %v962, %v958
  %v1283 = vpack.c.b16 %v963, %v959
  %v1284 = vpack.c.b16 %v968, %v964
  %v1285 = vpack.c.b16 %v969, %v965
  %v1286 = vpack.c.b16 %v970, %v966
  %v1287 = vpack.c.b16 %v971, %v967
  %v1288 = vpack.c.b16 %v976, %v972
  %v1289 = vpack.c.b16 %v977, %v973
  %v1290 = vpack.c.b16 %v978, %v974
  %v1291 = vpack.c.b16 %v979, %v975
  %v1292 = vpack.c.b16 %v984, %v980
  %v1293 = vpack.c.b16 %v985, %v981
  %v1294 = vpack.c.b16 %v986, %v982
  %v1295 = vpack.c.b16 %v987, %v983
  %v1296 = vpack.c.b16 %v992, %v988
  %v1297 = vpack.c.b16 %v993, %v989
  %v1298 = vpack.c.b16 %v994, %v990
  %v1299 = vpack.c.b16 %v995, %v991
  %v1300 = vpack.c.b16 %v1000, %v996
  %v1301 = vpack.c.b16 %v1001, %v997
  %v1302 = vpack.c.b16 %v1002, %v998
  %v1303 = vpack.c.b16 %v1003, %v999
  %v1304 = vpack.c.b16 %v1008, %v1004
  %v1305 = vpack.c.b16 %v1009, %v1005
  %v1306 = vpack.c.b16 %v1010, %v1006
  %v1307 = vpack.c.b16 %v1011, %v1007
  %v1308 = vpack.c.b16 %v1016, %v1012
  %v1309 = vpack.c.b16 %v1017, %v1013
  %v1310 = vpack.c.b16 %v1018, %v1014
  %v1311 = vpack.c.b16 %v1019, %v1015
  %v1312 = vpack.c.b16 %v1024, %v1020
  %v1313 = vpack.c.b16 %v1025, %v1021
  %v1314 = vpack.c.b16 %v1026, %v1022
  %v1315 = vpack.c.b16 %v1027, %v1023
  %v1316 = vpack.c.b16 %v1032, %v1028
  %v1317 = vpack.c.b16 %v1033, %v1029
  %v1318 = vpack.c.b16 %v1034, %v1030
  %v1319 = vpack.c.b16 %v1035, %v1031
  %v1320 = vpack.c.b16 %v1040, %v1036
  %v1321 = vpack.c.b16 %v1041, %v1037
  %v1322 = vpack.c.b16 %v1042, %v1038
  %v1323 = vpack.c.b16 %v1043, %v1039
  %v1324 = vpack.c.b16 %v1048, %v1044
  %v1325 = vpack.c.b16 %v1049, %v1045
  %v1326 = vpack.c.b16 %v1050, %v1046
  %v1327 = vpack.c.b16 %v1051, %v1047
  %v1328 = vpack.c.b16 %v1056, %v1052
  %v1329 = vpack.c.b16 %v1057, %v1053
  %v1330 = vpack.c.b16 %v1058, %v1054
  %v1331 = vpack.c.b16 %v1059, %v1055
  %v1332 = vpack.c.b16 %v1064, %v1060
  %v1333 = vpack.c.b16 %v1065, %v1061
  %v1334 = vpack.c.b16 %v1066, %v1062
  %v1335 = vpack.c.b16 %v1067, %v1063
  %v1336 = vpack.c.b16 %v1072, %v1068
  %v1337 = vpack.c.b16 %v1073, %v1069
  %v1338 = vpack.c.b16 %v1074, %v1070
  %v1339 = vpack.c.b16 %v1075, %v1071
  %v1340 = vpack.c.b16 %v1080, %v1076
  %v1341 = vpack.c.b16 %v1081, %v1077
  %v1342 = vpack.c.b16 %v1082, %v1078
  %v1343 = vpack.c.b16 %v1083, %v1079
  %v1344 = vpack.c.b16 %v1088, %v1084
  %v1345 = vpack.c.b16 %v1089, %v1085
  %v1346 = vpack.c.b16 %v1090, %v1086
  %v1347 = vpack.c.b16 %v1091, %v1087
  %1604 = vmatpush.bf16.msra.mxu0 %v1120
  %1605 = vmatpush.bf16.msra.mxu0 %v1116
  %1606 = vmatpush.bf16.msra.mxu0 %v1112
  %1607 = vmatpush.bf16.msra.mxu0 %v1108
  %1608 = vmatpush.bf16.msra.mxu0 %v1104
  %1609 = vmatpush.bf16.msra.mxu0 %v1100
  %1610 = vmatpush.bf16.msra.mxu0 %v1096
  %1611 = vmatpush.bf16.msra.mxu0 %v1092
  %1612 = vmatmul.bf16.gmra.mxu0 %v60
  %v1613 = vpop.f32.mrf.mxu0
  %v1614 = vadd.f32 0.0, %v1613
  %v1615 = vpop.f32.mrf.mxu0
  %1616 = vdwg.mxu0
  %1617 = vmatpush.bf16.msra.mxu0 %v1152
  %1618 = vmatpush.bf16.msra.mxu0 %v1148
  %1619 = vmatpush.bf16.msra.mxu0 %v1144
  %1620 = vmatpush.bf16.msra.mxu0 %v1140
  %1621 = vmatpush.bf16.msra.mxu0 %v1136
  %1622 = vmatpush.bf16.msra.mxu0 %v1132
  %1623 = vmatpush.bf16.msra.mxu0 %v1128
  %1624 = vmatpush.bf16.msra.mxu0 %v1124
  %1625 = vmatmul.bf16.gmra.mxu0 %v61
  %v1626 = vpop.f32.mrf.mxu0
  %v1627 = vadd.f32 %v1614, %v1626
  %v1628 = vpop.f32.mrf.mxu0
  %1629 = vdwg.mxu0
  %1630 = vmatpush.bf16.msra.mxu0 %v1184
  %1631 = vmatpush.bf16.msra.mxu0 %v1180
  %1632 = vmatpush.bf16.msra.mxu0 %v1176
  %1633 = vmatpush.bf16.msra.mxu0 %v1172
  %1634 = vmatpush.bf16.msra.mxu0 %v1168
  %1635 = vmatpush.bf16.msra.mxu0 %v1164
  %1636 = vmatpush.bf16.msra.mxu0 %v1160
  %1637 = vmatpush.bf16.msra.mxu0 %v1156
  %1638 = vmatmul.bf16.gmra.mxu0 %v62
  %v1639 = vpop.f32.mrf.mxu0
  %v1640 = vadd.f32 %v1627, %v1639
  %v1641 = vpop.f32.mrf.mxu0
  %1642 = vdwg.mxu0
  %1643 = vmatpush.bf16.msra.mxu0 %v1216
  %1644 = vmatpush.bf16.msra.mxu0 %v1212
  %1645 = vmatpush.bf16.msra.mxu0 %v1208
  %1646 = vmatpush.bf16.msra.mxu0 %v1204
  %1647 = vmatpush.bf16.msra.mxu0 %v1200
  %1648 = vmatpush.bf16.msra.mxu0 %v1196
  %1649 = vmatpush.bf16.msra.mxu0 %v1192
  %1650 = vmatpush.bf16.msra.mxu0 %v1188
  %1651 = vmatmul.bf16.gmra.mxu0 %v63
  %v1652 = vpop.f32.mrf.mxu0
  %v1653 = vadd.f32 %v1640, %v1652
  %v1654 = vpop.f32.mrf.mxu0
  %1655 = vdwg.mxu0
  %1656 = vmatpush.bf16.msra.mxu0 %v1248
  %1657 = vmatpush.bf16.msra.mxu0 %v1244
  %1658 = vmatpush.bf16.msra.mxu0 %v1240
  %1659 = vmatpush.bf16.msra.mxu0 %v1236
  %1660 = vmatpush.bf16.msra.mxu0 %v1232
  %1661 = vmatpush.bf16.msra.mxu0 %v1228
  %1662 = vmatpush.bf16.msra.mxu0 %v1224
  %1663 = vmatpush.bf16.msra.mxu0 %v1220
  %1664 = vmatmul.bf16.gmra.mxu0 %v64
  %v1665 = vpop.f32.mrf.mxu0
  %v1666 = vadd.f32 %v1653, %v1665
  %v1667 = vpop.f32.mrf.mxu0
  %1668 = vdwg.mxu0
  %1669 = vmatpush.bf16.msra.mxu0 %v1280
  %1670 = vmatpush.bf16.msra.mxu0 %v1276
  %1671 = vmatpush.bf16.msra.mxu0 %v1272
  %1672 = vmatpush.bf16.msra.mxu0 %v1268
  %1673 = vmatpush.bf16.msra.mxu0 %v1264
  %1674 = vmatpush.bf16.msra.mxu0 %v1260
  %1675 = vmatpush.bf16.msra.mxu0 %v1256
  %1676 = vmatpush.bf16.msra.mxu0 %v1252
  %1677 = vmatmul.bf16.gmra.mxu0 %v65
  %v1678 = vpop.f32.mrf.mxu0
  %v1679 = vadd.f32 %v1666, %v1678
  %v1680 = vpop.f32.mrf.mxu0
  %1681 = vdwg.mxu0
  %1682 = vmatpush.bf16.msra.mxu0 %v1312
  %1683 = vmatpush.bf16.msra.mxu0 %v1308
  %1684 = vmatpush.bf16.msra.mxu0 %v1304
  %1685 = vmatpush.bf16.msra.mxu0 %v1300
  %1686 = vmatpush.bf16.msra.mxu0 %v1296
  %1687 = vmatpush.bf16.msra.mxu0 %v1292
  %1688 = vmatpush.bf16.msra.mxu0 %v1288
  %1689 = vmatpush.bf16.msra.mxu0 %v1284
  %1690 = vmatmul.bf16.gmra.mxu0 %v66
  %v1691 = vpop.f32.mrf.mxu0
  %v1692 = vadd.f32 %v1679, %v1691
  %v1693 = vpop.f32.mrf.mxu0
  %1694 = vdwg.mxu0
  %1695 = vmatpush.bf16.msra.mxu0 %v1344
  %1696 = vmatpush.bf16.msra.mxu0 %v1340
  %1697 = vmatpush.bf16.msra.mxu0 %v1336
  %1698 = vmatpush.bf16.msra.mxu0 %v1332
  %1699 = vmatpush.bf16.msra.mxu0 %v1328
  %1700 = vmatpush.bf16.msra.mxu0 %v1324
  %1701 = vmatpush.bf16.msra.mxu0 %v1320
  %1702 = vmatpush.bf16.msra.mxu0 %v1316
  %1703 = vmatmul.bf16.gmra.mxu0 %v67
  %v1704 = vpop.f32.mrf.mxu0
  %v1705 = vadd.f32 %v1692, %v1704
  %v1706 = vpop.f32.mrf.mxu0
  %1707 = vdwg.mxu0
  %1708 = vmatpush.bf16.msra.mxu0 %v1121
  %1709 = vmatpush.bf16.msra.mxu0 %v1117
  %1710 = vmatpush.bf16.msra.mxu0 %v1113
  %1711 = vmatpush.bf16.msra.mxu0 %v1109
  %1712 = vmatpush.bf16.msra.mxu0 %v1105
  %1713 = vmatpush.bf16.msra.mxu0 %v1101
  %1714 = vmatpush.bf16.msra.mxu0 %v1097
  %1715 = vmatpush.bf16.msra.mxu0 %v1093
  %1716 = vmatmul.bf16.gmra.mxu0 %v60
  %v1717 = vpop.f32.mrf.mxu0
  %v1718 = vadd.f32 0.0, %v1717
  %v1719 = vpop.f32.mrf.mxu0
  %1720 = vdwg.mxu0
  %1721 = vmatpush.bf16.msra.mxu0 %v1153
  %1722 = vmatpush.bf16.msra.mxu0 %v1149
  %1723 = vmatpush.bf16.msra.mxu0 %v1145
  %1724 = vmatpush.bf16.msra.mxu0 %v1141
  %1725 = vmatpush.bf16.msra.mxu0 %v1137
  %1726 = vmatpush.bf16.msra.mxu0 %v1133
  %1727 = vmatpush.bf16.msra.mxu0 %v1129
  %1728 = vmatpush.bf16.msra.mxu0 %v1125
  %1729 = vmatmul.bf16.gmra.mxu0 %v61
  %v1730 = vpop.f32.mrf.mxu0
  %v1731 = vadd.f32 %v1718, %v1730
  %v1732 = vpop.f32.mrf.mxu0
  %1733 = vdwg.mxu0
  %1734 = vmatpush.bf16.msra.mxu0 %v1185
  %1735 = vmatpush.bf16.msra.mxu0 %v1181
  %1736 = vmatpush.bf16.msra.mxu0 %v1177
  %1737 = vmatpush.bf16.msra.mxu0 %v1173
  %1738 = vmatpush.bf16.msra.mxu0 %v1169
  %1739 = vmatpush.bf16.msra.mxu0 %v1165
  %1740 = vmatpush.bf16.msra.mxu0 %v1161
  %1741 = vmatpush.bf16.msra.mxu0 %v1157
  %1742 = vmatmul.bf16.gmra.mxu0 %v62
  %v1743 = vpop.f32.mrf.mxu0
  %v1744 = vadd.f32 %v1731, %v1743
  %v1745 = vpop.f32.mrf.mxu0
  %1746 = vdwg.mxu0
  %1747 = vmatpush.bf16.msra.mxu0 %v1217
  %1748 = vmatpush.bf16.msra.mxu0 %v1213
  %1749 = vmatpush.bf16.msra.mxu0 %v1209
  %1750 = vmatpush.bf16.msra.mxu0 %v1205
  %1751 = vmatpush.bf16.msra.mxu0 %v1201
  %1752 = vmatpush.bf16.msra.mxu0 %v1197
  %1753 = vmatpush.bf16.msra.mxu0 %v1193
  %1754 = vmatpush.bf16.msra.mxu0 %v1189
  %1755 = vmatmul.bf16.gmra.mxu0 %v63
  %v1756 = vpop.f32.mrf.mxu0
  %v1757 = vadd.f32 %v1744, %v1756
  %v1758 = vpop.f32.mrf.mxu0
  %1759 = vdwg.mxu0
  %1760 = vmatpush.bf16.msra.mxu0 %v1249
  %1761 = vmatpush.bf16.msra.mxu0 %v1245
  %1762 = vmatpush.bf16.msra.mxu0 %v1241
  %1763 = vmatpush.bf16.msra.mxu0 %v1237
  %1764 = vmatpush.bf16.msra.mxu0 %v1233
  %1765 = vmatpush.bf16.msra.mxu0 %v1229
  %1766 = vmatpush.bf16.msra.mxu0 %v1225
  %1767 = vmatpush.bf16.msra.mxu0 %v1221
  %1768 = vmatmul.bf16.gmra.mxu0 %v64
  %v1769 = vpop.f32.mrf.mxu0
  %v1770 = vadd.f32 %v1757, %v1769
  %v1771 = vpop.f32.mrf.mxu0
  %1772 = vdwg.mxu0
  %1773 = vmatpush.bf16.msra.mxu0 %v1281
  %1774 = vmatpush.bf16.msra.mxu0 %v1277
  %1775 = vmatpush.bf16.msra.mxu0 %v1273
  %1776 = vmatpush.bf16.msra.mxu0 %v1269
  %1777 = vmatpush.bf16.msra.mxu0 %v1265
  %1778 = vmatpush.bf16.msra.mxu0 %v1261
  %1779 = vmatpush.bf16.msra.mxu0 %v1257
  %1780 = vmatpush.bf16.msra.mxu0 %v1253
  %1781 = vmatmul.bf16.gmra.mxu0 %v65
  %v1782 = vpop.f32.mrf.mxu0
  %v1783 = vadd.f32 %v1770, %v1782
  %v1784 = vpop.f32.mrf.mxu0
  %1785 = vdwg.mxu0
  %1786 = vmatpush.bf16.msra.mxu0 %v1313
  %1787 = vmatpush.bf16.msra.mxu0 %v1309
  %1788 = vmatpush.bf16.msra.mxu0 %v1305
  %1789 = vmatpush.bf16.msra.mxu0 %v1301
  %1790 = vmatpush.bf16.msra.mxu0 %v1297
  %1791 = vmatpush.bf16.msra.mxu0 %v1293
  %1792 = vmatpush.bf16.msra.mxu0 %v1289
  %1793 = vmatpush.bf16.msra.mxu0 %v1285
  %1794 = vmatmul.bf16.gmra.mxu0 %v66
  %v1795 = vpop.f32.mrf.mxu0
  %v1796 = vadd.f32 %v1783, %v1795
  %v1797 = vpop.f32.mrf.mxu0
  %1798 = vdwg.mxu0
  %1799 = vmatpush.bf16.msra.mxu0 %v1345
  %1800 = vmatpush.bf16.msra.mxu0 %v1341
  %1801 = vmatpush.bf16.msra.mxu0 %v1337
  %1802 = vmatpush.bf16.msra.mxu0 %v1333
  %1803 = vmatpush.bf16.msra.mxu0 %v1329
  %1804 = vmatpush.bf16.msra.mxu0 %v1325
  %1805 = vmatpush.bf16.msra.mxu0 %v1321
  %1806 = vmatpush.bf16.msra.mxu0 %v1317
  %1807 = vmatmul.bf16.gmra.mxu0 %v67
  %v1808 = vpop.f32.mrf.mxu0
  %v1809 = vadd.f32 %v1796, %v1808
  %v1810 = vpop.f32.mrf.mxu0
  %1811 = vdwg.mxu0
  %1812 = vmatpush.bf16.msra.mxu0 %v1122
  %1813 = vmatpush.bf16.msra.mxu0 %v1118
  %1814 = vmatpush.bf16.msra.mxu0 %v1114
  %1815 = vmatpush.bf16.msra.mxu0 %v1110
  %1816 = vmatpush.bf16.msra.mxu0 %v1106
  %1817 = vmatpush.bf16.msra.mxu0 %v1102
  %1818 = vmatpush.bf16.msra.mxu0 %v1098
  %1819 = vmatpush.bf16.msra.mxu0 %v1094
  %1820 = vmatmul.bf16.gmra.mxu0 %v60
  %v1821 = vpop.f32.mrf.mxu0
  %v1822 = vadd.f32 0.0, %v1821
  %v1823 = vpop.f32.mrf.mxu0
  %1824 = vdwg.mxu0
  %1825 = vmatpush.bf16.msra.mxu0 %v1154
  %1826 = vmatpush.bf16.msra.mxu0 %v1150
  %1827 = vmatpush.bf16.msra.mxu0 %v1146
  %1828 = vmatpush.bf16.msra.mxu0 %v1142
  %1829 = vmatpush.bf16.msra.mxu0 %v1138
  %1830 = vmatpush.bf16.msra.mxu0 %v1134
  %1831 = vmatpush.bf16.msra.mxu0 %v1130
  %1832 = vmatpush.bf16.msra.mxu0 %v1126
  %1833 = vmatmul.bf16.gmra.mxu0 %v61
  %v1834 = vpop.f32.mrf.mxu0
  %v1835 = vadd.f32 %v1822, %v1834
  %v1836 = vpop.f32.mrf.mxu0
  %1837 = vdwg.mxu0
  %1838 = vmatpush.bf16.msra.mxu0 %v1186
  %1839 = vmatpush.bf16.msra.mxu0 %v1182
  %1840 = vmatpush.bf16.msra.mxu0 %v1178
  %1841 = vmatpush.bf16.msra.mxu0 %v1174
  %1842 = vmatpush.bf16.msra.mxu0 %v1170
  %1843 = vmatpush.bf16.msra.mxu0 %v1166
  %1844 = vmatpush.bf16.msra.mxu0 %v1162
  %1845 = vmatpush.bf16.msra.mxu0 %v1158
  %1846 = vmatmul.bf16.gmra.mxu0 %v62
  %v1847 = vpop.f32.mrf.mxu0
  %v1848 = vadd.f32 %v1835, %v1847
  %v1849 = vpop.f32.mrf.mxu0
  %1850 = vdwg.mxu0
  %1851 = vmatpush.bf16.msra.mxu0 %v1218
  %1852 = vmatpush.bf16.msra.mxu0 %v1214
  %1853 = vmatpush.bf16.msra.mxu0 %v1210
  %1854 = vmatpush.bf16.msra.mxu0 %v1206
  %1855 = vmatpush.bf16.msra.mxu0 %v1202
  %1856 = vmatpush.bf16.msra.mxu0 %v1198
  %1857 = vmatpush.bf16.msra.mxu0 %v1194
  %1858 = vmatpush.bf16.msra.mxu0 %v1190
  %1859 = vmatmul.bf16.gmra.mxu0 %v63
  %v1860 = vpop.f32.mrf.mxu0
  %v1861 = vadd.f32 %v1848, %v1860
  %v1862 = vpop.f32.mrf.mxu0
  %1863 = vdwg.mxu0
  %1864 = vmatpush.bf16.msra.mxu0 %v1250
  %1865 = vmatpush.bf16.msra.mxu0 %v1246
  %1866 = vmatpush.bf16.msra.mxu0 %v1242
  %1867 = vmatpush.bf16.msra.mxu0 %v1238
  %1868 = vmatpush.bf16.msra.mxu0 %v1234
  %1869 = vmatpush.bf16.msra.mxu0 %v1230
  %1870 = vmatpush.bf16.msra.mxu0 %v1226
  %1871 = vmatpush.bf16.msra.mxu0 %v1222
  %1872 = vmatmul.bf16.gmra.mxu0 %v64
  %v1873 = vpop.f32.mrf.mxu0
  %v1874 = vadd.f32 %v1861, %v1873
  %v1875 = vpop.f32.mrf.mxu0
  %1876 = vdwg.mxu0
  %1877 = vmatpush.bf16.msra.mxu0 %v1282
  %1878 = vmatpush.bf16.msra.mxu0 %v1278
  %1879 = vmatpush.bf16.msra.mxu0 %v1274
  %1880 = vmatpush.bf16.msra.mxu0 %v1270
  %1881 = vmatpush.bf16.msra.mxu0 %v1266
  %1882 = vmatpush.bf16.msra.mxu0 %v1262
  %1883 = vmatpush.bf16.msra.mxu0 %v1258
  %1884 = vmatpush.bf16.msra.mxu0 %v1254
  %1885 = vmatmul.bf16.gmra.mxu0 %v65
  %v1886 = vpop.f32.mrf.mxu0
  %v1887 = vadd.f32 %v1874, %v1886
  %v1888 = vpop.f32.mrf.mxu0
  %1889 = vdwg.mxu0
  %1890 = vmatpush.bf16.msra.mxu0 %v1314
  %1891 = vmatpush.bf16.msra.mxu0 %v1310
  %1892 = vmatpush.bf16.msra.mxu0 %v1306
  %1893 = vmatpush.bf16.msra.mxu0 %v1302
  %1894 = vmatpush.bf16.msra.mxu0 %v1298
  %1895 = vmatpush.bf16.msra.mxu0 %v1294
  %1896 = vmatpush.bf16.msra.mxu0 %v1290
  %1897 = vmatpush.bf16.msra.mxu0 %v1286
  %1898 = vmatmul.bf16.gmra.mxu0 %v66
  %v1899 = vpop.f32.mrf.mxu0
  %v1900 = vadd.f32 %v1887, %v1899
  %v1901 = vpop.f32.mrf.mxu0
  %1902 = vdwg.mxu0
  %1903 = vmatpush.bf16.msra.mxu0 %v1346
  %1904 = vmatpush.bf16.msra.mxu0 %v1342
  %1905 = vmatpush.bf16.msra.mxu0 %v1338
  %1906 = vmatpush.bf16.msra.mxu0 %v1334
  %1907 = vmatpush.bf16.msra.mxu0 %v1330
  %1908 = vmatpush.bf16.msra.mxu0 %v1326
  %1909 = vmatpush.bf16.msra.mxu0 %v1322
  %1910 = vmatpush.bf16.msra.mxu0 %v1318
  %1911 = vmatmul.bf16.gmra.mxu0 %v67
  %v1912 = vpop.f32.mrf.mxu0
  %v1913 = vadd.f32 %v1900, %v1912
  %v1914 = vpop.f32.mrf.mxu0
  %1915 = vdwg.mxu0
  %1916 = vmatpush.bf16.msra.mxu0 %v1123
  %1917 = vmatpush.bf16.msra.mxu0 %v1119
  %1918 = vmatpush.bf16.msra.mxu0 %v1115
  %1919 = vmatpush.bf16.msra.mxu0 %v1111
  %1920 = vmatpush.bf16.msra.mxu0 %v1107
  %1921 = vmatpush.bf16.msra.mxu0 %v1103
  %1922 = vmatpush.bf16.msra.mxu0 %v1099
  %1923 = vmatpush.bf16.msra.mxu0 %v1095
  %1924 = vmatmul.bf16.gmra.mxu0 %v60
  %v1925 = vpop.f32.mrf.mxu0
  %v1926 = vadd.f32 0.0, %v1925
  %v1927 = vpop.f32.mrf.mxu0
  %1928 = vdwg.mxu0
  %1929 = vmatpush.bf16.msra.mxu0 %v1155
  %1930 = vmatpush.bf16.msra.mxu0 %v1151
  %1931 = vmatpush.bf16.msra.mxu0 %v1147
  %1932 = vmatpush.bf16.msra.mxu0 %v1143
  %1933 = vmatpush.bf16.msra.mxu0 %v1139
  %1934 = vmatpush.bf16.msra.mxu0 %v1135
  %1935 = vmatpush.bf16.msra.mxu0 %v1131
  %1936 = vmatpush.bf16.msra.mxu0 %v1127
  %1937 = vmatmul.bf16.gmra.mxu0 %v61
  %v1938 = vpop.f32.mrf.mxu0
  %v1939 = vadd.f32 %v1926, %v1938
  %v1940 = vpop.f32.mrf.mxu0
  %1941 = vdwg.mxu0
  %1942 = vmatpush.bf16.msra.mxu0 %v1187
  %1943 = vmatpush.bf16.msra.mxu0 %v1183
  %1944 = vmatpush.bf16.msra.mxu0 %v1179
  %1945 = vmatpush.bf16.msra.mxu0 %v1175
  %1946 = vmatpush.bf16.msra.mxu0 %v1171
  %1947 = vmatpush.bf16.msra.mxu0 %v1167
  %1948 = vmatpush.bf16.msra.mxu0 %v1163
  %1949 = vmatpush.bf16.msra.mxu0 %v1159
  %1950 = vmatmul.bf16.gmra.mxu0 %v62
  %v1951 = vpop.f32.mrf.mxu0
  %v1952 = vadd.f32 %v1939, %v1951
  %v1953 = vpop.f32.mrf.mxu0
  %1954 = vdwg.mxu0
  %1955 = vmatpush.bf16.msra.mxu0 %v1219
  %1956 = vmatpush.bf16.msra.mxu0 %v1215
  %1957 = vmatpush.bf16.msra.mxu0 %v1211
  %1958 = vmatpush.bf16.msra.mxu0 %v1207
  %1959 = vmatpush.bf16.msra.mxu0 %v1203
  %1960 = vmatpush.bf16.msra.mxu0 %v1199
  %1961 = vmatpush.bf16.msra.mxu0 %v1195
  %1962 = vmatpush.bf16.msra.mxu0 %v1191
  %1963 = vmatmul.bf16.gmra.mxu0 %v63
  %v1964 = vpop.f32.mrf.mxu0
  %v1965 = vadd.f32 %v1952, %v1964
  %v1966 = vpop.f32.mrf.mxu0
  %1967 = vdwg.mxu0
  %1968 = vmatpush.bf16.msra.mxu0 %v1251
  %1969 = vmatpush.bf16.msra.mxu0 %v1247
  %1970 = vmatpush.bf16.msra.mxu0 %v1243
  %1971 = vmatpush.bf16.msra.mxu0 %v1239
  %1972 = vmatpush.bf16.msra.mxu0 %v1235
  %1973 = vmatpush.bf16.msra.mxu0 %v1231
  %1974 = vmatpush.bf16.msra.mxu0 %v1227
  %1975 = vmatpush.bf16.msra.mxu0 %v1223
  %1976 = vmatmul.bf16.gmra.mxu0 %v64
  %v1977 = vpop.f32.mrf.mxu0
  %v1978 = vadd.f32 %v1965, %v1977
  %v1979 = vpop.f32.mrf.mxu0
  %1980 = vdwg.mxu0
  %1981 = vmatpush.bf16.msra.mxu0 %v1283
  %1982 = vmatpush.bf16.msra.mxu0 %v1279
  %1983 = vmatpush.bf16.msra.mxu0 %v1275
  %1984 = vmatpush.bf16.msra.mxu0 %v1271
  %1985 = vmatpush.bf16.msra.mxu0 %v1267
  %1986 = vmatpush.bf16.msra.mxu0 %v1263
  %1987 = vmatpush.bf16.msra.mxu0 %v1259
  %1988 = vmatpush.bf16.msra.mxu0 %v1255
  %1989 = vmatmul.bf16.gmra.mxu0 %v65
  %v1990 = vpop.f32.mrf.mxu0
  %v1991 = vadd.f32 %v1978, %v1990
  %v1992 = vpop.f32.mrf.mxu0
  %1993 = vdwg.mxu0
  %1994 = vmatpush.bf16.msra.mxu0 %v1315
  %1995 = vmatpush.bf16.msra.mxu0 %v1311
  %1996 = vmatpush.bf16.msra.mxu0 %v1307
  %1997 = vmatpush.bf16.msra.mxu0 %v1303
  %1998 = vmatpush.bf16.msra.mxu0 %v1299
  %1999 = vmatpush.bf16.msra.mxu0 %v1295
  %2000 = vmatpush.bf16.msra.mxu0 %v1291
  %2001 = vmatpush.bf16.msra.mxu0 %v1287
  %2002 = vmatmul.bf16.gmra.mxu0 %v66
  %v2003 = vpop.f32.mrf.mxu0
  %v2004 = vadd.f32 %v1991, %v2003
  %v2005 = vpop.f32.mrf.mxu0
  %2006 = vdwg.mxu0
  %2007 = vmatpush.bf16.msra.mxu0 %v1347
  %2008 = vmatpush.bf16.msra.mxu0 %v1343
  %2009 = vmatpush.bf16.msra.mxu0 %v1339
  %2010 = vmatpush.bf16.msra.mxu0 %v1335
  %2011 = vmatpush.bf16.msra.mxu0 %v1331
  %2012 = vmatpush.bf16.msra.mxu0 %v1327
  %2013 = vmatpush.bf16.msra.mxu0 %v1323
  %2014 = vmatpush.bf16.msra.mxu0 %v1319
  %2015 = vmatmul.bf16.gmra.mxu0 %v67
  %v2016 = vpop.f32.mrf.mxu0
  %v2017 = vadd.f32 %v2004, %v2016
  %v2018 = vpop.f32.mrf.mxu0
  %2019 = vdwg.mxu0
  %v2020 = vld [vmem:[%s2] sm:$0xf]
  %v2021 = vld [vmem:[%s3] sm:$0xf]
  %vm2022 = vcmask 1043456
  %v2023 = vsel %vm2022, %v1705, 0.0
  %v2024 = vrot.slane %v2023, 4
  %v2025 = vadd.f32 %v2023, %v2024
  %v2026 = vrot.slane %v2025, 2
  %v2027 = vadd.f32 %v2025, %v2026
  %v2028 = vrot.slane %v2027, 1
  %v2029 = vadd.f32 %v2027, %v2028
  %v2030 = vsel %vm2022, %v1809, 0.0
  %v2031 = vrot.slane %v2030, 4
  %v2032 = vadd.f32 %v2030, %v2031
  %v2033 = vrot.slane %v2032, 2
  %v2034 = vadd.f32 %v2032, %v2033
  %v2035 = vrot.slane %v2034, 1
  %v2036 = vadd.f32 %v2034, %v2035
  %v2037 = vsel %vm2022, %v1913, 0.0
  %v2038 = vrot.slane %v2037, 4
  %v2039 = vadd.f32 %v2037, %v2038
  %v2040 = vrot.slane %v2039, 2
  %v2041 = vadd.f32 %v2039, %v2040
  %v2042 = vrot.slane %v2041, 1
  %v2043 = vadd.f32 %v2041, %v2042
  %v2044 = vsel %vm2022, %v2017, 0.0
  %v2045 = vrot.slane %v2044, 4
  %v2046 = vadd.f32 %v2044, %v2045
  %v2047 = vrot.slane %v2046, 2
  %v2048 = vadd.f32 %v2046, %v2047
  %v2049 = vrot.slane %v2048, 1
  %v2050 = vadd.f32 %v2048, %v2049
  %v2051 = vrcp.pop 4.0
  %v2052 = vmul.f32 4.0, %v2051
  %v2053 = vsub.f32 1.0, %v2052
  %v2054 = vmul.f32 %v2051, %v2053
  %v2055 = vadd.f32 %v2051, %v2054
  %vm2056 = vweird.f32 %v2051
  %v2057 = vsel %vm2056, %v2051, %v2055
  %v2058 = vmul.f32 %v2029, %v2057
  %v2059 = vmul.f32 %v2036, %v2057
  %v2060 = vmul.f32 %v2043, %v2057
  %v2061 = vmul.f32 %v2050, %v2057
  %v2062 = vmul.f32 %v1705, %v1705
  %v2063 = vmul.f32 %v1809, %v1809
  %v2064 = vmul.f32 %v1913, %v1913
  %v2065 = vmul.f32 %v2017, %v2017
  %v2066 = vsel %vm2022, %v2062, 0.0
  %v2067 = vrot.slane %v2066, 4
  %v2068 = vadd.f32 %v2066, %v2067
  %v2069 = vrot.slane %v2068, 2
  %v2070 = vadd.f32 %v2068, %v2069
  %v2071 = vrot.slane %v2070, 1
  %v2072 = vadd.f32 %v2070, %v2071
  %v2073 = vsel %vm2022, %v2063, 0.0
  %v2074 = vrot.slane %v2073, 4
  %v2075 = vadd.f32 %v2073, %v2074
  %v2076 = vrot.slane %v2075, 2
  %v2077 = vadd.f32 %v2075, %v2076
  %v2078 = vrot.slane %v2077, 1
  %v2079 = vadd.f32 %v2077, %v2078
  %v2080 = vsel %vm2022, %v2064, 0.0
  %v2081 = vrot.slane %v2080, 4
  %v2082 = vadd.f32 %v2080, %v2081
  %v2083 = vrot.slane %v2082, 2
  %v2084 = vadd.f32 %v2082, %v2083
  %v2085 = vrot.slane %v2084, 1
  %v2086 = vadd.f32 %v2084, %v2085
  %v2087 = vsel %vm2022, %v2065, 0.0
  %v2088 = vrot.slane %v2087, 4
  %v2089 = vadd.f32 %v2087, %v2088
  %v2090 = vrot.slane %v2089, 2
  %v2091 = vadd.f32 %v2089, %v2090
  %v2092 = vrot.slane %v2091, 1
  %v2093 = vadd.f32 %v2091, %v2092
  %v2094 = vmul.f32 %v2072, %v2057
  %v2095 = vmul.f32 %v2079, %v2057
  %v2096 = vmul.f32 %v2086, %v2057
  %v2097 = vmul.f32 %v2093, %v2057
  %v2098 = vmul.f32 %v2058, %v2058
  %v2099 = vmul.f32 %v2059, %v2059
  %v2100 = vmul.f32 %v2060, %v2060
  %v2101 = vmul.f32 %v2061, %v2061
  %v2102 = vsub.f32 %v2094, %v2098
  %v2103 = vsub.f32 %v2095, %v2099
  %v2104 = vsub.f32 %v2096, %v2100
  %v2105 = vsub.f32 %v2097, %v2101
  %v2106 = vmax.f32 %v2102, 0.0
  %v2107 = vmax.f32 %v2103, 0.0
  %v2108 = vmax.f32 %v2104, 0.0
  %v2109 = vmax.f32 %v2105, 0.0
  %v2110 = vsub.f32 %v1705, %v2058
  %v2111 = vsub.f32 %v1809, %v2059
  %v2112 = vsub.f32 %v1913, %v2060
  %v2113 = vsub.f32 %v2017, %v2061
  %v2114 = vadd.f32 %v2106, 1e-05
  %v2115 = vadd.f32 %v2107, 1e-05
  %v2116 = vadd.f32 %v2108, 1e-05
  %v2117 = vadd.f32 %v2109, 1e-05
  %v2118 = vrsqrt.pop %v2114
  %v2119 = vmul.f32 %v2118, %v2114
  %v2120 = vmul.f32 %v2119, %v2118
  %v2121 = vmul.f32 0.5, %v2120
  %v2122 = vsub.f32 1.5, %v2121
  %v2123 = vmul.f32 %v2118, %v2122
  %vm2124 = vweird.f32 %v2114
  %vm2125 = vweird.f32 %v2118
  %vm2126 = vmor %vm2124, %vm2125
  %v2127 = vsel %vm2126, %v2118, %v2123
  %v2128 = vrsqrt.pop %v2115
  %v2129 = vmul.f32 %v2128, %v2115
  %v2130 = vmul.f32 %v2129, %v2128
  %v2131 = vmul.f32 0.5, %v2130
  %v2132 = vsub.f32 1.5, %v2131
  %v2133 = vmul.f32 %v2128, %v2132
  %vm2134 = vweird.f32 %v2115
  %vm2135 = vweird.f32 %v2128
  %vm2136 = vmor %vm2134, %vm2135
  %v2137 = vsel %vm2136, %v2128, %v2133
  %v2138 = vrsqrt.pop %v2116
  %v2139 = vmul.f32 %v2138, %v2116
  %v2140 = vmul.f32 %v2139, %v2138
  %v2141 = vmul.f32 0.5, %v2140
  %v2142 = vsub.f32 1.5, %v2141
  %v2143 = vmul.f32 %v2138, %v2142
  %vm2144 = vweird.f32 %v2116
  %vm2145 = vweird.f32 %v2138
  %vm2146 = vmor %vm2144, %vm2145
  %v2147 = vsel %vm2146, %v2138, %v2143
  %v2148 = vrsqrt.pop %v2117
  %v2149 = vmul.f32 %v2148, %v2117
  %v2150 = vmul.f32 %v2149, %v2148
  %v2151 = vmul.f32 0.5, %v2150
  %v2152 = vsub.f32 1.5, %v2151
  %v2153 = vmul.f32 %v2148, %v2152
  %vm2154 = vweird.f32 %v2117
  %vm2155 = vweird.f32 %v2148
  %vm2156 = vmor %vm2154, %vm2155
  %v2157 = vsel %vm2156, %v2148, %v2153
  %v2158 = vmul.f32 %v2110, %v2127
  %v2159 = vmul.f32 %v2111, %v2137
  %v2160 = vmul.f32 %v2112, %v2147
  %v2161 = vmul.f32 %v2113, %v2157
  %v2163 = vperm.slane %v2020, 0
  %v2164 = vperm.slane %v2020, 1
  %v2165 = vperm.slane %v2020, 2
  %v2166 = vperm.slane %v2020, 3
  %v2171 = vmul.f32 %v2158, %v2163
  %v2172 = vmul.f32 %v2159, %v2164
  %v2173 = vmul.f32 %v2160, %v2165
  %v2174 = vmul.f32 %v2161, %v2166
  %v2176 = vperm.slane %v2021, 0
  %v2177 = vperm.slane %v2021, 1
  %v2178 = vperm.slane %v2021, 2
  %v2179 = vperm.slane %v2021, 3
  %v2184 = vadd.f32 %v2171, %v2176
  %v2185 = vadd.f32 %v2172, %v2177
  %v2186 = vadd.f32 %v2173, %v2178
  %v2187 = vadd.f32 %v2174, %v2179
  %v2188 = vmax.f32 %v2184, 0.0
  %v2189 = vmax.f32 %v2185, 0.0
  %v2190 = vmax.f32 %v2186, 0.0
  %v2191 = vmax.f32 %v2187, 0.0
  %v2192 = vpack.c.bf16 %v2188, %v2188
  %v2193 = vpack.c.bf16 %v2189, %v2189
  %v2194 = vpack.c.bf16 %v2190, %v2190
  %v2195 = vpack.c.bf16 %v2191, %v2191
  %v2196 = vld [vmem:[%s4] sm:$0xff]
  %v2197 = vld [vmem:[%s4 + $0x8] sm:$0xff]
  %v2198 = vld [vmem:[%s4 + $0x10] sm:$0xff]
  %v2199 = vld [vmem:[%s4 + $0x18] sm:$0xff]
  %v2200 = vld [vmem:[%s4 + $0x20] sm:$0xff]
  %v2201 = vld [vmem:[%s4 + $0x28] sm:$0xff]
  %v2202 = vld [vmem:[%s4 + $0x30] sm:$0xff]
  %v2203 = vld [vmem:[%s4 + $0x38] sm:$0xff]
  %v2204 = vld [vmem:[%s4 + $0x40] sm:$0xff]
  %v2205 = vld [vmem:[%s4 + $0x48] sm:$0xff]
  %v2206 = vld [vmem:[%s4 + $0x50] sm:$0xff]
  %v2207 = vld [vmem:[%s4 + $0x58] sm:$0xff]
  %v2208 = vld [vmem:[%s4 + $0x60] sm:$0xff]
  %v2209 = vld [vmem:[%s4 + $0x68] sm:$0xff]
  %v2210 = vld [vmem:[%s4 + $0x70] sm:$0xff]
  %v2211 = vld [vmem:[%s4 + $0x78] sm:$0xff]
  %v2212 = vld [vmem:[%s4 + $0x80] sm:$0xff]
  %v2213 = vld [vmem:[%s4 + $0x88] sm:$0xff]
  %v2214 = vld [vmem:[%s4 + $0x90] sm:$0xff]
  %v2215 = vld [vmem:[%s4 + $0x98] sm:$0xff]
  %v2216 = vld [vmem:[%s4 + $0xa0] sm:$0xff]
  %v2217 = vld [vmem:[%s4 + $0xa8] sm:$0xff]
  %v2218 = vld [vmem:[%s4 + $0xb0] sm:$0xff]
  %v2219 = vld [vmem:[%s4 + $0xb8] sm:$0xff]
  %v2220 = vld [vmem:[%s4 + $0xc0] sm:$0xff]
  %v2221 = vld [vmem:[%s4 + $0xc8] sm:$0xff]
  %v2222 = vld [vmem:[%s4 + $0xd0] sm:$0xff]
  %v2223 = vld [vmem:[%s4 + $0xd8] sm:$0xff]
  %v2224 = vld [vmem:[%s4 + $0xe0] sm:$0xff]
  %v2225 = vld [vmem:[%s4 + $0xe8] sm:$0xff]
  %v2226 = vld [vmem:[%s4 + $0xf0] sm:$0xff]
  %v2227 = vld [vmem:[%s4 + $0xf8] sm:$0xff]
  %v2228 = vld [vmem:[%s4 + $0x100] sm:$0xff]
  %v2229 = vld [vmem:[%s4 + $0x108] sm:$0xff]
  %v2230 = vld [vmem:[%s4 + $0x110] sm:$0xff]
  %v2231 = vld [vmem:[%s4 + $0x118] sm:$0xff]
  %v2232 = vld [vmem:[%s4 + $0x120] sm:$0xff]
  %v2233 = vld [vmem:[%s4 + $0x128] sm:$0xff]
  %v2234 = vld [vmem:[%s4 + $0x130] sm:$0xff]
  %v2235 = vld [vmem:[%s4 + $0x138] sm:$0xff]
  %v2236 = vld [vmem:[%s4 + $0x140] sm:$0xff]
  %v2237 = vld [vmem:[%s4 + $0x148] sm:$0xff]
  %v2238 = vld [vmem:[%s4 + $0x150] sm:$0xff]
  %v2239 = vld [vmem:[%s4 + $0x158] sm:$0xff]
  %v2240 = vld [vmem:[%s4 + $0x160] sm:$0xff]
  %v2241 = vld [vmem:[%s4 + $0x168] sm:$0xff]
  %v2242 = vld [vmem:[%s4 + $0x170] sm:$0xff]
  %v2243 = vld [vmem:[%s4 + $0x178] sm:$0xff]
  %v2244 = vld [vmem:[%s4 + $0x180] sm:$0xff]
  %v2245 = vld [vmem:[%s4 + $0x188] sm:$0xff]
  %v2246 = vld [vmem:[%s4 + $0x190] sm:$0xff]
  %v2247 = vld [vmem:[%s4 + $0x198] sm:$0xff]
  %v2248 = vld [vmem:[%s4 + $0x1a0] sm:$0xff]
  %v2249 = vld [vmem:[%s4 + $0x1a8] sm:$0xff]
  %v2250 = vld [vmem:[%s4 + $0x1b0] sm:$0xff]
  %v2251 = vld [vmem:[%s4 + $0x1b8] sm:$0xff]
  %v2252 = vld [vmem:[%s4 + $0x1c0] sm:$0xff]
  %v2253 = vld [vmem:[%s4 + $0x1c8] sm:$0xff]
  %v2254 = vld [vmem:[%s4 + $0x1d0] sm:$0xff]
  %v2255 = vld [vmem:[%s4 + $0x1d8] sm:$0xff]
  %v2256 = vld [vmem:[%s4 + $0x1e0] sm:$0xff]
  %v2257 = vld [vmem:[%s4 + $0x1e8] sm:$0xff]
  %v2258 = vld [vmem:[%s4 + $0x1f0] sm:$0xff]
  %v2259 = vld [vmem:[%s4 + $0x1f8] sm:$0xff]
  %v2324 = vunpack.c.l.b16 %v2196
  %v2325 = vunpack.c.h.b16 %v2196
  %v2326 = vunpack.c.l.b16 %v2197
  %v2327 = vunpack.c.h.b16 %v2197
  %v2328 = vunpack.c.l.b16 %v2198
  %v2329 = vunpack.c.h.b16 %v2198
  %v2330 = vunpack.c.l.b16 %v2199
  %v2331 = vunpack.c.h.b16 %v2199
  %v2332 = vunpack.c.l.b16 %v2200
  %v2333 = vunpack.c.h.b16 %v2200
  %v2334 = vunpack.c.l.b16 %v2201
  %v2335 = vunpack.c.h.b16 %v2201
  %v2336 = vunpack.c.l.b16 %v2202
  %v2337 = vunpack.c.h.b16 %v2202
  %v2338 = vunpack.c.l.b16 %v2203
  %v2339 = vunpack.c.h.b16 %v2203
  %v2340 = vunpack.c.l.b16 %v2204
  %v2341 = vunpack.c.h.b16 %v2204
  %v2342 = vunpack.c.l.b16 %v2205
  %v2343 = vunpack.c.h.b16 %v2205
  %v2344 = vunpack.c.l.b16 %v2206
  %v2345 = vunpack.c.h.b16 %v2206
  %v2346 = vunpack.c.l.b16 %v2207
  %v2347 = vunpack.c.h.b16 %v2207
  %v2348 = vunpack.c.l.b16 %v2208
  %v2349 = vunpack.c.h.b16 %v2208
  %v2350 = vunpack.c.l.b16 %v2209
  %v2351 = vunpack.c.h.b16 %v2209
  %v2352 = vunpack.c.l.b16 %v2210
  %v2353 = vunpack.c.h.b16 %v2210
  %v2354 = vunpack.c.l.b16 %v2211
  %v2355 = vunpack.c.h.b16 %v2211
  %v2356 = vunpack.c.l.b16 %v2212
  %v2357 = vunpack.c.h.b16 %v2212
  %v2358 = vunpack.c.l.b16 %v2213
  %v2359 = vunpack.c.h.b16 %v2213
  %v2360 = vunpack.c.l.b16 %v2214
  %v2361 = vunpack.c.h.b16 %v2214
  %v2362 = vunpack.c.l.b16 %v2215
  %v2363 = vunpack.c.h.b16 %v2215
  %v2364 = vunpack.c.l.b16 %v2216
  %v2365 = vunpack.c.h.b16 %v2216
  %v2366 = vunpack.c.l.b16 %v2217
  %v2367 = vunpack.c.h.b16 %v2217
  %v2368 = vunpack.c.l.b16 %v2218
  %v2369 = vunpack.c.h.b16 %v2218
  %v2370 = vunpack.c.l.b16 %v2219
  %v2371 = vunpack.c.h.b16 %v2219
  %v2372 = vunpack.c.l.b16 %v2220
  %v2373 = vunpack.c.h.b16 %v2220
  %v2374 = vunpack.c.l.b16 %v2221
  %v2375 = vunpack.c.h.b16 %v2221
  %v2376 = vunpack.c.l.b16 %v2222
  %v2377 = vunpack.c.h.b16 %v2222
  %v2378 = vunpack.c.l.b16 %v2223
  %v2379 = vunpack.c.h.b16 %v2223
  %v2380 = vunpack.c.l.b16 %v2224
  %v2381 = vunpack.c.h.b16 %v2224
  %v2382 = vunpack.c.l.b16 %v2225
  %v2383 = vunpack.c.h.b16 %v2225
  %v2384 = vunpack.c.l.b16 %v2226
  %v2385 = vunpack.c.h.b16 %v2226
  %v2386 = vunpack.c.l.b16 %v2227
  %v2387 = vunpack.c.h.b16 %v2227
  %v2388 = vunpack.c.l.b16 %v2228
  %v2389 = vunpack.c.h.b16 %v2228
  %v2390 = vunpack.c.l.b16 %v2229
  %v2391 = vunpack.c.h.b16 %v2229
  %v2392 = vunpack.c.l.b16 %v2230
  %v2393 = vunpack.c.h.b16 %v2230
  %v2394 = vunpack.c.l.b16 %v2231
  %v2395 = vunpack.c.h.b16 %v2231
  %v2396 = vunpack.c.l.b16 %v2232
  %v2397 = vunpack.c.h.b16 %v2232
  %v2398 = vunpack.c.l.b16 %v2233
  %v2399 = vunpack.c.h.b16 %v2233
  %v2400 = vunpack.c.l.b16 %v2234
  %v2401 = vunpack.c.h.b16 %v2234
  %v2402 = vunpack.c.l.b16 %v2235
  %v2403 = vunpack.c.h.b16 %v2235
  %v2404 = vunpack.c.l.b16 %v2236
  %v2405 = vunpack.c.h.b16 %v2236
  %v2406 = vunpack.c.l.b16 %v2237
  %v2407 = vunpack.c.h.b16 %v2237
  %v2408 = vunpack.c.l.b16 %v2238
  %v2409 = vunpack.c.h.b16 %v2238
  %v2410 = vunpack.c.l.b16 %v2239
  %v2411 = vunpack.c.h.b16 %v2239
  %v2412 = vunpack.c.l.b16 %v2240
  %v2413 = vunpack.c.h.b16 %v2240
  %v2414 = vunpack.c.l.b16 %v2241
  %v2415 = vunpack.c.h.b16 %v2241
  %v2416 = vunpack.c.l.b16 %v2242
  %v2417 = vunpack.c.h.b16 %v2242
  %v2418 = vunpack.c.l.b16 %v2243
  %v2419 = vunpack.c.h.b16 %v2243
  %v2420 = vunpack.c.l.b16 %v2244
  %v2421 = vunpack.c.h.b16 %v2244
  %v2422 = vunpack.c.l.b16 %v2245
  %v2423 = vunpack.c.h.b16 %v2245
  %v2424 = vunpack.c.l.b16 %v2246
  %v2425 = vunpack.c.h.b16 %v2246
  %v2426 = vunpack.c.l.b16 %v2247
  %v2427 = vunpack.c.h.b16 %v2247
  %v2428 = vunpack.c.l.b16 %v2248
  %v2429 = vunpack.c.h.b16 %v2248
  %v2430 = vunpack.c.l.b16 %v2249
  %v2431 = vunpack.c.h.b16 %v2249
  %v2432 = vunpack.c.l.b16 %v2250
  %v2433 = vunpack.c.h.b16 %v2250
  %v2434 = vunpack.c.l.b16 %v2251
  %v2435 = vunpack.c.h.b16 %v2251
  %v2436 = vunpack.c.l.b16 %v2252
  %v2437 = vunpack.c.h.b16 %v2252
  %v2438 = vunpack.c.l.b16 %v2253
  %v2439 = vunpack.c.h.b16 %v2253
  %v2440 = vunpack.c.l.b16 %v2254
  %v2441 = vunpack.c.h.b16 %v2254
  %v2442 = vunpack.c.l.b16 %v2255
  %v2443 = vunpack.c.h.b16 %v2255
  %v2444 = vunpack.c.l.b16 %v2256
  %v2445 = vunpack.c.h.b16 %v2256
  %v2446 = vunpack.c.l.b16 %v2257
  %v2447 = vunpack.c.h.b16 %v2257
  %v2448 = vunpack.c.l.b16 %v2258
  %v2449 = vunpack.c.h.b16 %v2258
  %v2450 = vunpack.c.l.b16 %v2259
  %v2451 = vunpack.c.h.b16 %v2259
  %v2452 = vpack.c.b16 %v2326, %v2324
  %v2453 = vpack.c.b16 %v2327, %v2325
  %v2454 = vpack.c.b16 %v2330, %v2328
  %v2455 = vpack.c.b16 %v2331, %v2329
  %v2456 = vpack.c.b16 %v2334, %v2332
  %v2457 = vpack.c.b16 %v2335, %v2333
  %v2458 = vpack.c.b16 %v2338, %v2336
  %v2459 = vpack.c.b16 %v2339, %v2337
  %v2460 = vpack.c.b16 %v2342, %v2340
  %v2461 = vpack.c.b16 %v2343, %v2341
  %v2462 = vpack.c.b16 %v2346, %v2344
  %v2463 = vpack.c.b16 %v2347, %v2345
  %v2464 = vpack.c.b16 %v2350, %v2348
  %v2465 = vpack.c.b16 %v2351, %v2349
  %v2466 = vpack.c.b16 %v2354, %v2352
  %v2467 = vpack.c.b16 %v2355, %v2353
  %v2468 = vpack.c.b16 %v2358, %v2356
  %v2469 = vpack.c.b16 %v2359, %v2357
  %v2470 = vpack.c.b16 %v2362, %v2360
  %v2471 = vpack.c.b16 %v2363, %v2361
  %v2472 = vpack.c.b16 %v2366, %v2364
  %v2473 = vpack.c.b16 %v2367, %v2365
  %v2474 = vpack.c.b16 %v2370, %v2368
  %v2475 = vpack.c.b16 %v2371, %v2369
  %v2476 = vpack.c.b16 %v2374, %v2372
  %v2477 = vpack.c.b16 %v2375, %v2373
  %v2478 = vpack.c.b16 %v2378, %v2376
  %v2479 = vpack.c.b16 %v2379, %v2377
  %v2480 = vpack.c.b16 %v2382, %v2380
  %v2481 = vpack.c.b16 %v2383, %v2381
  %v2482 = vpack.c.b16 %v2386, %v2384
  %v2483 = vpack.c.b16 %v2387, %v2385
  %v2484 = vpack.c.b16 %v2390, %v2388
  %v2485 = vpack.c.b16 %v2391, %v2389
  %v2486 = vpack.c.b16 %v2394, %v2392
  %v2487 = vpack.c.b16 %v2395, %v2393
  %v2488 = vpack.c.b16 %v2398, %v2396
  %v2489 = vpack.c.b16 %v2399, %v2397
  %v2490 = vpack.c.b16 %v2402, %v2400
  %v2491 = vpack.c.b16 %v2403, %v2401
  %v2492 = vpack.c.b16 %v2406, %v2404
  %v2493 = vpack.c.b16 %v2407, %v2405
  %v2494 = vpack.c.b16 %v2410, %v2408
  %v2495 = vpack.c.b16 %v2411, %v2409
  %v2496 = vpack.c.b16 %v2414, %v2412
  %v2497 = vpack.c.b16 %v2415, %v2413
  %v2498 = vpack.c.b16 %v2418, %v2416
  %v2499 = vpack.c.b16 %v2419, %v2417
  %v2500 = vpack.c.b16 %v2422, %v2420
  %v2501 = vpack.c.b16 %v2423, %v2421
  %v2502 = vpack.c.b16 %v2426, %v2424
  %v2503 = vpack.c.b16 %v2427, %v2425
  %v2504 = vpack.c.b16 %v2430, %v2428
  %v2505 = vpack.c.b16 %v2431, %v2429
  %v2506 = vpack.c.b16 %v2434, %v2432
  %v2507 = vpack.c.b16 %v2435, %v2433
  %v2508 = vpack.c.b16 %v2438, %v2436
  %v2509 = vpack.c.b16 %v2439, %v2437
  %v2510 = vpack.c.b16 %v2442, %v2440
  %v2511 = vpack.c.b16 %v2443, %v2441
  %v2512 = vpack.c.b16 %v2446, %v2444
  %v2513 = vpack.c.b16 %v2447, %v2445
  %v2514 = vpack.c.b16 %v2450, %v2448
  %v2515 = vpack.c.b16 %v2451, %v2449
  %2580 = vmatpush.bf16.msra.mxu0 %v2466
  %2581 = vmatpush.bf16.msra.mxu0 %v2464
  %2582 = vmatpush.bf16.msra.mxu0 %v2462
  %2583 = vmatpush.bf16.msra.mxu0 %v2460
  %2584 = vmatpush.bf16.msra.mxu0 %v2458
  %2585 = vmatpush.bf16.msra.mxu0 %v2456
  %2586 = vmatpush.bf16.msra.mxu0 %v2454
  %2587 = vmatpush.bf16.msra.mxu0 %v2452
  %2588 = vmatmul.bf16.gmra.mxu0 %v2192
  %v2589 = vpop.f32.mrf.mxu0
  %v2590 = vadd.f32 0.0, %v2589
  %v2591 = vpop.f32.mrf.mxu0
  %2592 = vdwg.mxu0
  %2593 = vmatpush.bf16.msra.mxu0 %v2482
  %2594 = vmatpush.bf16.msra.mxu0 %v2480
  %2595 = vmatpush.bf16.msra.mxu0 %v2478
  %2596 = vmatpush.bf16.msra.mxu0 %v2476
  %2597 = vmatpush.bf16.msra.mxu0 %v2474
  %2598 = vmatpush.bf16.msra.mxu0 %v2472
  %2599 = vmatpush.bf16.msra.mxu0 %v2470
  %2600 = vmatpush.bf16.msra.mxu0 %v2468
  %2601 = vmatmul.bf16.gmra.mxu0 %v2193
  %v2602 = vpop.f32.mrf.mxu0
  %v2603 = vadd.f32 %v2590, %v2602
  %v2604 = vpop.f32.mrf.mxu0
  %2605 = vdwg.mxu0
  %2606 = vmatpush.bf16.msra.mxu0 %v2498
  %2607 = vmatpush.bf16.msra.mxu0 %v2496
  %2608 = vmatpush.bf16.msra.mxu0 %v2494
  %2609 = vmatpush.bf16.msra.mxu0 %v2492
  %2610 = vmatpush.bf16.msra.mxu0 %v2490
  %2611 = vmatpush.bf16.msra.mxu0 %v2488
  %2612 = vmatpush.bf16.msra.mxu0 %v2486
  %2613 = vmatpush.bf16.msra.mxu0 %v2484
  %2614 = vmatmul.bf16.gmra.mxu0 %v2194
  %v2615 = vpop.f32.mrf.mxu0
  %v2616 = vadd.f32 %v2603, %v2615
  %v2617 = vpop.f32.mrf.mxu0
  %2618 = vdwg.mxu0
  %2619 = vmatpush.bf16.msra.mxu0 %v2514
  %2620 = vmatpush.bf16.msra.mxu0 %v2512
  %2621 = vmatpush.bf16.msra.mxu0 %v2510
  %2622 = vmatpush.bf16.msra.mxu0 %v2508
  %2623 = vmatpush.bf16.msra.mxu0 %v2506
  %2624 = vmatpush.bf16.msra.mxu0 %v2504
  %2625 = vmatpush.bf16.msra.mxu0 %v2502
  %2626 = vmatpush.bf16.msra.mxu0 %v2500
  %2627 = vmatmul.bf16.gmra.mxu0 %v2195
  %v2628 = vpop.f32.mrf.mxu0
  %v2629 = vadd.f32 %v2616, %v2628
  %v2630 = vpop.f32.mrf.mxu0
  %2631 = vdwg.mxu0
  %2632 = vmatpush.bf16.msra.mxu0 %v2467
  %2633 = vmatpush.bf16.msra.mxu0 %v2465
  %2634 = vmatpush.bf16.msra.mxu0 %v2463
  %2635 = vmatpush.bf16.msra.mxu0 %v2461
  %2636 = vmatpush.bf16.msra.mxu0 %v2459
  %2637 = vmatpush.bf16.msra.mxu0 %v2457
  %2638 = vmatpush.bf16.msra.mxu0 %v2455
  %2639 = vmatpush.bf16.msra.mxu0 %v2453
  %2640 = vmatmul.bf16.gmra.mxu0 %v2192
  %v2641 = vpop.f32.mrf.mxu0
  %v2642 = vadd.f32 0.0, %v2641
  %v2643 = vpop.f32.mrf.mxu0
  %2644 = vdwg.mxu0
  %2645 = vmatpush.bf16.msra.mxu0 %v2483
  %2646 = vmatpush.bf16.msra.mxu0 %v2481
  %2647 = vmatpush.bf16.msra.mxu0 %v2479
  %2648 = vmatpush.bf16.msra.mxu0 %v2477
  %2649 = vmatpush.bf16.msra.mxu0 %v2475
  %2650 = vmatpush.bf16.msra.mxu0 %v2473
  %2651 = vmatpush.bf16.msra.mxu0 %v2471
  %2652 = vmatpush.bf16.msra.mxu0 %v2469
  %2653 = vmatmul.bf16.gmra.mxu0 %v2193
  %v2654 = vpop.f32.mrf.mxu0
  %v2655 = vadd.f32 %v2642, %v2654
  %v2656 = vpop.f32.mrf.mxu0
  %2657 = vdwg.mxu0
  %2658 = vmatpush.bf16.msra.mxu0 %v2499
  %2659 = vmatpush.bf16.msra.mxu0 %v2497
  %2660 = vmatpush.bf16.msra.mxu0 %v2495
  %2661 = vmatpush.bf16.msra.mxu0 %v2493
  %2662 = vmatpush.bf16.msra.mxu0 %v2491
  %2663 = vmatpush.bf16.msra.mxu0 %v2489
  %2664 = vmatpush.bf16.msra.mxu0 %v2487
  %2665 = vmatpush.bf16.msra.mxu0 %v2485
  %2666 = vmatmul.bf16.gmra.mxu0 %v2194
  %v2667 = vpop.f32.mrf.mxu0
  %v2668 = vadd.f32 %v2655, %v2667
  %v2669 = vpop.f32.mrf.mxu0
  %2670 = vdwg.mxu0
  %2671 = vmatpush.bf16.msra.mxu0 %v2515
  %2672 = vmatpush.bf16.msra.mxu0 %v2513
  %2673 = vmatpush.bf16.msra.mxu0 %v2511
  %2674 = vmatpush.bf16.msra.mxu0 %v2509
  %2675 = vmatpush.bf16.msra.mxu0 %v2507
  %2676 = vmatpush.bf16.msra.mxu0 %v2505
  %2677 = vmatpush.bf16.msra.mxu0 %v2503
  %2678 = vmatpush.bf16.msra.mxu0 %v2501
  %2679 = vmatmul.bf16.gmra.mxu0 %v2195
  %v2680 = vpop.f32.mrf.mxu0
  %v2681 = vadd.f32 %v2668, %v2680
  %v2682 = vpop.f32.mrf.mxu0
  %2683 = vdwg.mxu0
  %v2684 = vld [vmem:[%s5] sm:$0x3]
  %v2685 = vld [vmem:[%s6] sm:$0x3]
  %v2686 = vsel %vm2022, %v2629, 0.0
  %v2687 = vrot.slane %v2686, 4
  %v2688 = vadd.f32 %v2686, %v2687
  %v2689 = vrot.slane %v2688, 2
  %v2690 = vadd.f32 %v2688, %v2689
  %v2691 = vrot.slane %v2690, 1
  %v2692 = vadd.f32 %v2690, %v2691
  %v2693 = vsel %vm2022, %v2681, 0.0
  %v2694 = vrot.slane %v2693, 4
  %v2695 = vadd.f32 %v2693, %v2694
  %v2696 = vrot.slane %v2695, 2
  %v2697 = vadd.f32 %v2695, %v2696
  %v2698 = vrot.slane %v2697, 1
  %v2699 = vadd.f32 %v2697, %v2698
  %v2700 = vmul.f32 %v2692, %v2057
  %v2701 = vmul.f32 %v2699, %v2057
  %v2702 = vmul.f32 %v2629, %v2629
  %v2703 = vmul.f32 %v2681, %v2681
  %v2704 = vsel %vm2022, %v2702, 0.0
  %v2705 = vrot.slane %v2704, 4
  %v2706 = vadd.f32 %v2704, %v2705
  %v2707 = vrot.slane %v2706, 2
  %v2708 = vadd.f32 %v2706, %v2707
  %v2709 = vrot.slane %v2708, 1
  %v2710 = vadd.f32 %v2708, %v2709
  %v2711 = vsel %vm2022, %v2703, 0.0
  %v2712 = vrot.slane %v2711, 4
  %v2713 = vadd.f32 %v2711, %v2712
  %v2714 = vrot.slane %v2713, 2
  %v2715 = vadd.f32 %v2713, %v2714
  %v2716 = vrot.slane %v2715, 1
  %v2717 = vadd.f32 %v2715, %v2716
  %v2718 = vmul.f32 %v2710, %v2057
  %v2719 = vmul.f32 %v2717, %v2057
  %v2720 = vmul.f32 %v2700, %v2700
  %v2721 = vmul.f32 %v2701, %v2701
  %v2722 = vsub.f32 %v2718, %v2720
  %v2723 = vsub.f32 %v2719, %v2721
  %v2724 = vmax.f32 %v2722, 0.0
  %v2725 = vmax.f32 %v2723, 0.0
  %v2726 = vsub.f32 %v2629, %v2700
  %v2727 = vsub.f32 %v2681, %v2701
  %v2728 = vadd.f32 %v2724, 1e-05
  %v2729 = vadd.f32 %v2725, 1e-05
  %v2730 = vrsqrt.pop %v2728
  %v2731 = vmul.f32 %v2730, %v2728
  %v2732 = vmul.f32 %v2731, %v2730
  %v2733 = vmul.f32 0.5, %v2732
  %v2734 = vsub.f32 1.5, %v2733
  %v2735 = vmul.f32 %v2730, %v2734
  %vm2736 = vweird.f32 %v2728
  %vm2737 = vweird.f32 %v2730
  %vm2738 = vmor %vm2736, %vm2737
  %v2739 = vsel %vm2738, %v2730, %v2735
  %v2740 = vrsqrt.pop %v2729
  %v2741 = vmul.f32 %v2740, %v2729
  %v2742 = vmul.f32 %v2741, %v2740
  %v2743 = vmul.f32 0.5, %v2742
  %v2744 = vsub.f32 1.5, %v2743
  %v2745 = vmul.f32 %v2740, %v2744
  %vm2746 = vweird.f32 %v2729
  %vm2747 = vweird.f32 %v2740
  %vm2748 = vmor %vm2746, %vm2747
  %v2749 = vsel %vm2748, %v2740, %v2745
  %v2750 = vmul.f32 %v2726, %v2739
  %v2751 = vmul.f32 %v2727, %v2749
  %v2753 = vperm.slane %v2684, 0
  %v2754 = vperm.slane %v2684, 1
  %v2757 = vmul.f32 %v2750, %v2753
  %v2758 = vmul.f32 %v2751, %v2754
  %v2760 = vperm.slane %v2685, 0
  %v2761 = vperm.slane %v2685, 1
  %v2764 = vadd.f32 %v2757, %v2760
  %v2765 = vadd.f32 %v2758, %v2761
  %v2766 = vmax.f32 %v2764, 0.0
  %v2767 = vmax.f32 %v2765, 0.0
  %v2768 = vpack.c.bf16 %v2766, %v2766
  %v2769 = vpack.c.bf16 %v2767, %v2767
  %v2770 = vld [vmem:[%s7] sm:$0xf]
  %v2771 = vld [vmem:[%s7 + $0x4] sm:$0xf]
  %v2772 = vld [vmem:[%s7 + $0x8] sm:$0xf]
  %v2773 = vld [vmem:[%s7 + $0xc] sm:$0xf]
  %v2774 = vld [vmem:[%s7 + $0x10] sm:$0xf]
  %v2775 = vld [vmem:[%s7 + $0x14] sm:$0xf]
  %v2776 = vld [vmem:[%s7 + $0x18] sm:$0xf]
  %v2777 = vld [vmem:[%s7 + $0x1c] sm:$0xf]
  %v2778 = vld [vmem:[%s7 + $0x20] sm:$0xf]
  %v2779 = vld [vmem:[%s7 + $0x24] sm:$0xf]
  %v2780 = vld [vmem:[%s7 + $0x28] sm:$0xf]
  %v2781 = vld [vmem:[%s7 + $0x2c] sm:$0xf]
  %v2782 = vld [vmem:[%s7 + $0x30] sm:$0xf]
  %v2783 = vld [vmem:[%s7 + $0x34] sm:$0xf]
  %v2784 = vld [vmem:[%s7 + $0x38] sm:$0xf]
  %v2785 = vld [vmem:[%s7 + $0x3c] sm:$0xf]
  %v2786 = vld [vmem:[%s7 + $0x40] sm:$0xf]
  %v2787 = vld [vmem:[%s7 + $0x44] sm:$0xf]
  %v2788 = vld [vmem:[%s7 + $0x48] sm:$0xf]
  %v2789 = vld [vmem:[%s7 + $0x4c] sm:$0xf]
  %v2790 = vld [vmem:[%s7 + $0x50] sm:$0xf]
  %v2791 = vld [vmem:[%s7 + $0x54] sm:$0xf]
  %v2792 = vld [vmem:[%s7 + $0x58] sm:$0xf]
  %v2793 = vld [vmem:[%s7 + $0x5c] sm:$0xf]
  %v2794 = vld [vmem:[%s7 + $0x60] sm:$0xf]
  %v2795 = vld [vmem:[%s7 + $0x64] sm:$0xf]
  %v2796 = vld [vmem:[%s7 + $0x68] sm:$0xf]
  %v2797 = vld [vmem:[%s7 + $0x6c] sm:$0xf]
  %v2798 = vld [vmem:[%s7 + $0x70] sm:$0xf]
  %v2799 = vld [vmem:[%s7 + $0x74] sm:$0xf]
  %v2800 = vld [vmem:[%s7 + $0x78] sm:$0xf]
  %v2801 = vld [vmem:[%s7 + $0x7c] sm:$0xf]
  %v2834 = vunpack.c.l.b16 %v2770
  %v2835 = vunpack.c.l.b16 %v2771
  %v2836 = vunpack.c.l.b16 %v2772
  %v2837 = vunpack.c.l.b16 %v2773
  %v2838 = vunpack.c.l.b16 %v2774
  %v2839 = vunpack.c.l.b16 %v2775
  %v2840 = vunpack.c.l.b16 %v2776
  %v2841 = vunpack.c.l.b16 %v2777
  %v2842 = vunpack.c.l.b16 %v2778
  %v2843 = vunpack.c.l.b16 %v2779
  %v2844 = vunpack.c.l.b16 %v2780
  %v2845 = vunpack.c.l.b16 %v2781
  %v2846 = vunpack.c.l.b16 %v2782
  %v2847 = vunpack.c.l.b16 %v2783
  %v2848 = vunpack.c.l.b16 %v2784
  %v2849 = vunpack.c.l.b16 %v2785
  %v2850 = vunpack.c.l.b16 %v2786
  %v2851 = vunpack.c.l.b16 %v2787
  %v2852 = vunpack.c.l.b16 %v2788
  %v2853 = vunpack.c.l.b16 %v2789
  %v2854 = vunpack.c.l.b16 %v2790
  %v2855 = vunpack.c.l.b16 %v2791
  %v2856 = vunpack.c.l.b16 %v2792
  %v2857 = vunpack.c.l.b16 %v2793
  %v2858 = vunpack.c.l.b16 %v2794
  %v2859 = vunpack.c.l.b16 %v2795
  %v2860 = vunpack.c.l.b16 %v2796
  %v2861 = vunpack.c.l.b16 %v2797
  %v2862 = vunpack.c.l.b16 %v2798
  %v2863 = vunpack.c.l.b16 %v2799
  %v2864 = vunpack.c.l.b16 %v2800
  %v2865 = vunpack.c.l.b16 %v2801
  %v2866 = vpack.c.b16 %v2835, %v2834
  %v2867 = vpack.c.b16 %v2837, %v2836
  %v2868 = vpack.c.b16 %v2839, %v2838
  %v2869 = vpack.c.b16 %v2841, %v2840
  %v2870 = vpack.c.b16 %v2843, %v2842
  %v2871 = vpack.c.b16 %v2845, %v2844
  %v2872 = vpack.c.b16 %v2847, %v2846
  %v2873 = vpack.c.b16 %v2849, %v2848
  %v2874 = vpack.c.b16 %v2851, %v2850
  %v2875 = vpack.c.b16 %v2853, %v2852
  %v2876 = vpack.c.b16 %v2855, %v2854
  %v2877 = vpack.c.b16 %v2857, %v2856
  %v2878 = vpack.c.b16 %v2859, %v2858
  %v2879 = vpack.c.b16 %v2861, %v2860
  %v2880 = vpack.c.b16 %v2863, %v2862
  %v2881 = vpack.c.b16 %v2865, %v2864
  %2898 = vmatpush.bf16.msra.mxu0 %v2873
  %2899 = vmatpush.bf16.msra.mxu0 %v2872
  %2900 = vmatpush.bf16.msra.mxu0 %v2871
  %2901 = vmatpush.bf16.msra.mxu0 %v2870
  %2902 = vmatpush.bf16.msra.mxu0 %v2869
  %2903 = vmatpush.bf16.msra.mxu0 %v2868
  %2904 = vmatpush.bf16.msra.mxu0 %v2867
  %2905 = vmatpush.bf16.msra.mxu0 %v2866
  %2906 = vmatmul.bf16.gmra.mxu0 %v2768
  %v2907 = vpop.f32.mrf.mxu0
  %v2908 = vadd.f32 0.0, %v2907
  %v2909 = vpop.f32.mrf.mxu0
  %2910 = vdwg.mxu0
  %2911 = vmatpush.bf16.msra.mxu0 %v2881
  %2912 = vmatpush.bf16.msra.mxu0 %v2880
  %2913 = vmatpush.bf16.msra.mxu0 %v2879
  %2914 = vmatpush.bf16.msra.mxu0 %v2878
  %2915 = vmatpush.bf16.msra.mxu0 %v2877
  %2916 = vmatpush.bf16.msra.mxu0 %v2876
  %2917 = vmatpush.bf16.msra.mxu0 %v2875
  %2918 = vmatpush.bf16.msra.mxu0 %v2874
  %2919 = vmatmul.bf16.gmra.mxu0 %v2769
  %v2920 = vpop.f32.mrf.mxu0
  %v2921 = vadd.f32 %v2908, %v2920
  %v2922 = vpop.f32.mrf.mxu0
  %2923 = vdwg.mxu0
  %2924 = vst [vmem:[%s8] sm:$0xf] %v2921
  // Predicated region
  $region34: #{tnet_forward.5} parent=0 // pred_check
    _
  $region35: #{tnet_forward.5} parent=0 // pred_check_branch
    %2926 = sbr.rel (0) target = $region37
  $region36: #{tnet_forward.5} parent=0 // pred_region
    _
  $region37: #{tnet_forward.5} parent=0 // pred_fallthru
    _
  // Predicated region
  $region38: #{tnet_forward.5} parent=0 // pred_check
    _
  $region39: #{tnet_forward.5} parent=0 // pred_check_branch
    %2928 = sbr.rel (0) target = $region41
  $region40: #{tnet_forward.5} parent=0 // pred_region
    _
  $region41: #{tnet_forward.5} parent=0 // pred_fallthru
    _

</llo_original>
